<compile_context>
chip_gen: v6e
topology: v6e:2x2x1
jax: 0.10.0
libtpu: 0.0.40
codegen_flags: <defaults>
</compile_context>

<pallas_src>
import jax
import jax.numpy as jnp
from jax.experimental import pallas as pl
from jax.experimental.pallas import tpu as pltpu

# ---------------- configuration (small, consistent with the module) ----------------
B = 2              # batch
L = 8              # sequence length
G = 4              # number of feature groups (emb_for_label.effective_num_feature_groups)
EMB_DIM = 8        # g.dim
D = G * EMB_DIM    # cat_dim = 32
H = 4              # g.num_heads
HD = D // H        # head dim = 8
DFF = D            # TransformerLayer feedforward dim = cat_dim
NUM_LAYERS = 2     # g.num_self_attn_layers
V = 10             # vocab size per feature group (synthetic)
NUM_LABELS = 3
LANE = 128         # lane-dense minor dim used for QKV proj, label head and both outputs
NEG = -1e9
EPS = 1e-5
BL = B * L

VMEM_SPEC = pl.BlockSpec(memory_space=pltpu.MemorySpace.VMEM)


# ---------------- fused Pallas kernel ----------------
def _layer_norm(x, gamma, beta):
    # var = E[x^2] - mean^2: two independent cross-lane reductions instead of a dependent
    # second pass over (x - mu)^2 (shorter XLU/VPU dependency chain; f32 at D=32 is fine).
    mu = jnp.mean(x, axis=-1, keepdims=True)
    ms = jnp.mean(x * x, axis=-1, keepdims=True)
    var = ms - mu * mu
    return (x - mu) * jax.lax.rsqrt(var + EPS) * gamma + beta


def decipher_fused_kernel(x_ref, pad_ref, pos_ref,
                          wqkv_ref, bqkv_ref, wo_ref, bo_ref,
                          g1_ref, be1_ref, w1_ref, b1_ref, w2_ref, b2_ref,
                          g2_ref, be2_ref,
                          wl1_ref, bl1_ref, wl2_ref, bl2_ref,
                          state_ref, label_ref):
    """Fused: pad-zero + pos-emb + NUM_LAYERS post-norm encoder layers + label MLP + log_softmax."""
    pad = pad_ref[...]                                   # (B, L), 1.0 = padded position
    keep = 1.0 - pad

    # Hoisted once (constant across layers and heads): key-padding bias for the score rows.
    key_bias = (pad * NEG)[:, None, :]                   # (B, 1, L)

    # Embedding zeroed at padded positions, plus positional embedding.
    x = x_ref[...] * keep[:, :, None] + pos_ref[...][None, :, :]     # (B, L, D)
    x2 = x.reshape(BL, D)                                            # flattened row tile

    scale = 1.0 / (HD ** 0.5)

    for l in range(NUM_LAYERS):                                      # static unrolled layer loop
        wqkv = wqkv_ref[l]                                           # (D, LANE), cols>=3D are 0
        bqkv = bqkv_ref[l]                                           # (1, LANE)
        wo = wo_ref[l]                                               # (H, HD, D)
        bo = bo_ref[l]                                               # (1, D)

        # ---- fused QKV projection: one MXU push, full 128-lane output tile ----
        qkv = jnp.dot(x2, wqkv, preferred_element_type=jnp.float32) + bqkv    # (BL, LANE)

        # ---- multi-head self-attention, statically unrolled over H=4 heads.
        # No transposes: each head is an 8-lane slice of qkv; output projection is folded
        # per head (sum_h ctx_h @ wo[h]) so no head-merge relayout is needed.
        attn = None
        for h in range(H):
            q_h = qkv[:, 0 * D + h * HD:0 * D + (h + 1) * HD].reshape(B, L, HD)
            k_h = qkv[:, 1 * D + h * HD:1 * D + (h + 1) * HD].reshape(B, L, HD)
            v_h = qkv[:, 2 * D + h * HD:2 * D + (h + 1) * HD].reshape(B, L, HD)

            s = jnp.einsum('bqd,bkd->bqk', q_h, k_h,
                           preferred_element_type=jnp.float32) * scale        # (B, L, L)
            s = s + key_bias
            s = s - jnp.max(s, axis=-1, keepdims=True)
            p = jnp.exp(s)
            p = p * pl.reciprocal(jnp.sum(p, axis=-1, keepdims=True),
                                  approx=True)                                # EUP, not VALU div

            ctx = jnp.einsum('bqk,bkd->bqd', p, v_h,
                             preferred_element_type=jnp.float32)              # (B, L, HD)
            part = jnp.dot(ctx.reshape(BL, HD), wo[h],
                           preferred_element_type=jnp.float32)                # (BL, D)
            attn = part if attn is None else attn + part
        attn = attn + bo

        # ---- post-norm residual 1 ----
        x2 = _layer_norm(x2 + attn, g1_ref[l], be1_ref[l])

        # ---- feed-forward (ReLU) ----
        ff = jnp.dot(x2, w1_ref[l], preferred_element_type=jnp.float32) + b1_ref[l]
        ff = jnp.maximum(ff, 0.0)
        ff = jnp.dot(ff, w2_ref[l], preferred_element_type=jnp.float32) + b2_ref[l]

        # ---- post-norm residual 2 ----
        x2 = _layer_norm(x2 + ff, g2_ref[l], be2_ref[l])

    # ---- label predictor: Linear -> LeakyReLU(0.1) -> Linear(., LANE) -> log_softmax ----
    hl = jnp.dot(x2, wl1_ref[...], preferred_element_type=jnp.float32) + bl1_ref[...]
    hl = jnp.where(hl > 0, hl, 0.1 * hl)
    logits = jnp.dot(hl, wl2_ref[...],
                     preferred_element_type=jnp.float32) + bl2_ref[...]       # (BL, LANE)
    m = jnp.max(logits, axis=-1, keepdims=True)
    z = logits - m
    lse = jnp.log(jnp.sum(jnp.exp(z), axis=-1, keepdims=True))
    logp = z - lse                                                            # padded lanes ~ -1e9

    # ---- lane-dense flat stores: full (BL, 128) unmasked tiles; transposes live in the wrapper ----
    state_ref[...] = jnp.concatenate(
        [x2, jnp.zeros((BL, LANE - D), jnp.float32)], axis=-1)                # (BL, 128)
    label_ref[...] = logp                                                     # (BL, 128)


# ---------------- pallas_call wrapper ----------------
def _cost_estimate():
    per_layer = (2 * BL * D * LANE                 # fused QKV projection
                 + 2 * 2 * B * H * L * L * HD      # scores + context matmuls (all heads)
                 + 2 * BL * D * D                  # output projection (sum over heads)
                 + 2 * 2 * BL * D * DFF)           # FFN
    label = 2 * BL * D * D + 2 * BL * D * LANE
    flops = NUM_LAYERS * per_layer + label
    transcendentals = (NUM_LAYERS * (B * H * L * L + B * H * L + 2 * BL)
                       + BL * LANE + BL)
    param_elems = (NUM_LAYERS * (D * LANE + LANE + D * D + D + 4 * D
                                 + D * DFF + DFF + DFF * D + D)
                   + D * D + D + D * LANE + LANE)
    io_elems = B * L * D + B * L + L * D + 2 * BL * LANE
    return pl.CostEstimate(flops=flops, transcendentals=transcendentals,
                           bytes_accessed=4 * (param_elems + io_elems))


def decipher_forward(feat_matrix, pad, emb_tables, pos_table, stacked_layer_params, label_params):
    # TODO(synk): FeatEmbedding internals approximated as per-feature-group lookup tables
    # concatenated along the emb dim; the padding-zeroing + pos-add are done inside the kernel.
    embs = [emb_tables[g][feat_matrix[:, :, g]] for g in range(G)]   # each (B, L, EMB_DIM)
    x = jnp.concatenate(embs, axis=-1)                               # (B, L, D)

    inputs = (x, pad, pos_table[:L]) + tuple(stacked_layer_params) + tuple(label_params)
    state_flat, label_flat = pl.pallas_call(
        decipher_fused_kernel,
        out_shape=(jax.ShapeDtypeStruct((BL, LANE), jnp.float32),
                   jax.ShapeDtypeStruct((BL, LANE), jnp.float32)),
        in_specs=[VMEM_SPEC] * len(inputs),
        out_specs=(VMEM_SPEC, VMEM_SPEC),
        cost_estimate=_cost_estimate(),
    )(*inputs)

    # Layout plumbing in plain XLA (free relative to masked in-kernel stores):
    state = jnp.transpose(state_flat[:, :D].reshape(B, L, D), (1, 0, 2))           # (L, B, D)
    label_log_probs = jnp.transpose(
        label_flat[:, :NUM_LABELS].reshape(B, L, NUM_LABELS), (1, 0, 2))           # (L, B, 3)
    # NOTE: reference also builds `label_probs` with [0,0,1] scattered at padded positions,
    # but it is not part of the returned inference-path outputs, so it is omitted here.
    return state, label_log_probs


# ---------------- plain-JAX glue ----------------
def sinusoidal_pos_emb(max_len, dim):
    pos = jnp.arange(max_len, dtype=jnp.float32)[:, None]
    i = jnp.arange(dim // 2, dtype=jnp.float32)[None, :]
    div = jnp.exp(-jnp.log(10000.0) * (2.0 * i) / dim)
    pe = jnp.zeros((max_len, dim), jnp.float32)
    pe = pe.at[:, 0::2].set(jnp.sin(pos * div))
    pe = pe.at[:, 1::2].set(jnp.cos(pos * div))
    return pe


# ---------------- deterministic parameter init ----------------
def init_layer_params(key):
    ks = jax.random.split(key, 8)
    s = 0.1
    return dict(
        wq=jax.random.normal(ks[0], (D, D), jnp.float32) * s,
        wk=jax.random.normal(ks[1], (D, D), jnp.float32) * s,
        wv=jax.random.normal(ks[2], (D, D), jnp.float32) * s,
        wo=jax.random.normal(ks[3], (D, D), jnp.float32) * s,
        w1=jax.random.normal(ks[4], (D, DFF), jnp.float32) * s,
        w2=jax.random.normal(ks[5], (DFF, D), jnp.float32) * s,
        bq=jnp.zeros((1, D), jnp.float32),
        bk=jnp.zeros((1, D), jnp.float32),
        bv=jnp.zeros((1, D), jnp.float32),
        bo=jnp.zeros((1, D), jnp.float32),
        b1=jax.random.normal(ks[6], (1, DFF), jnp.float32) * s,
        b2=jax.random.normal(ks[7], (1, D), jnp.float32) * s,
        g1=jnp.ones((1, D), jnp.float32), be1=jnp.zeros((1, D), jnp.float32),
        g2=jnp.ones((1, D), jnp.float32), be2=jnp.zeros((1, D), jnp.float32),
    )


def stack_layer_params(layers):
    """Stack per-layer params on a leading NUM_LAYERS axis.

    - q/k/v weights & biases fused and zero-padded to 128 lanes (full-tile QKV projection).
    - wo reshaped to (H, HD, D) so the output projection can be folded per head in the kernel.
    """
    def fuse_qkv_w(p):
        w = jnp.concatenate([p['wq'], p['wk'], p['wv']], axis=1)                 # (D, 3D)
        return jnp.concatenate([w, jnp.zeros((D, LANE - 3 * D), jnp.float32)], axis=1)

    def fuse_qkv_b(p):
        b = jnp.concatenate([p['bq'], p['bk'], p['bv']], axis=1)                 # (1, 3D)
        return jnp.concatenate([b, jnp.zeros((1, LANE - 3 * D), jnp.float32)], axis=1)

    wqkv = jnp.stack([fuse_qkv_w(p) for p in layers])                            # (NL, D, 128)
    bqkv = jnp.stack([fuse_qkv_b(p) for p in layers])                            # (NL, 1, 128)
    wo = jnp.stack([p['wo'].reshape(H, HD, D) for p in layers])                  # (NL, H, HD, D)
    stk = lambda name: jnp.stack([p[name] for p in layers])
    return (wqkv, bqkv, wo, stk('bo'), stk('g1'), stk('be1'),
            stk('w1'), stk('b1'), stk('w2'), stk('b2'), stk('g2'), stk('be2'))


def init_label_params(key):
    ks = jax.random.split(key, 4)
    s = 0.1
    wl1 = jax.random.normal(ks[0], (D, D), jnp.float32) * s
    bl1 = jax.random.normal(ks[1], (1, D), jnp.float32) * s
    wl2 = jax.random.normal(ks[2], (D, NUM_LABELS), jnp.float32) * s
    bl2 = jax.random.normal(ks[3], (1, NUM_LABELS), jnp.float32) * s
    # Lane-dense padding: extra columns have zero weight and a -1e9 bias so that
    # log_softmax over LANE lanes equals log_softmax over the real 3 labels.
    wl2p = jnp.zeros((D, LANE), jnp.float32).at[:, :NUM_LABELS].set(wl2)
    bl2p = jnp.full((1, LANE), NEG, jnp.float32).at[:, :NUM_LABELS].set(bl2)
    return (wl1, bl1, wl2p, bl2p)


if __name__ == "__main__":
    key = jax.random.PRNGKey(0)
    k_feat, k_emb, k_lab, *k_layers = jax.random.split(key, 3 + NUM_LAYERS)

    # Inputs: feat_matrix ('batch','length','feat_group'), source_padding ('batch','length')
    feat_matrix = jax.random.randint(k_feat, (B, L, G), 0, V, dtype=jnp.int32)
    lengths = jnp.array([L, L - 2], dtype=jnp.int32)
    source_padding = (jnp.arange(L)[None, :] >= lengths[:, None]).astype(jnp.float32)  # 1 = pad

    emb_tables = jax.random.normal(k_emb, (G, V, EMB_DIM), jnp.float32) * 0.1
    pos_table = sinusoidal_pos_emb(512, D)                     # PositionalEmbedding(512, cat_dim)
    stacked_layer_params = stack_layer_params([init_layer_params(k) for k in k_layers])
    label_params = init_label_params(k_lab)

    state, label_log_probs = decipher_forward(
        feat_matrix, source_padding, emb_tables, pos_table, stacked_layer_params, label_params)

    jax.block_until_ready((state, label_log_probs))
    assert state.shape == (L, B, D)
    assert label_log_probs.shape == (L, B, NUM_LABELS)
    assert bool(jnp.all(jnp.isfinite(state))) and bool(jnp.all(jnp.isfinite(label_log_probs)))
    print("KERNEL_OK")
</pallas_src>

<mosaic_0001>
module attributes {stable_mosaic.version = 11 : i64} {
  func.func @decipher_fused_kernel(%arg0: memref<2x8x32xf32, #tpu.memory_space<vmem>>, %arg1: memref<2x8xf32, #tpu.memory_space<vmem>>, %arg2: memref<8x32xf32, #tpu.memory_space<vmem>>, %arg3: memref<2x32x128xf32, #tpu.memory_space<vmem>>, %arg4: memref<2x1x128xf32, #tpu.memory_space<vmem>>, %arg5: memref<2x4x8x32xf32, #tpu.memory_space<vmem>>, %arg6: memref<2x1x32xf32, #tpu.memory_space<vmem>>, %arg7: memref<2x1x32xf32, #tpu.memory_space<vmem>>, %arg8: memref<2x1x32xf32, #tpu.memory_space<vmem>>, %arg9: memref<2x32x32xf32, #tpu.memory_space<vmem>>, %arg10: memref<2x1x32xf32, #tpu.memory_space<vmem>>, %arg11: memref<2x32x32xf32, #tpu.memory_space<vmem>>, %arg12: memref<2x1x32xf32, #tpu.memory_space<vmem>>, %arg13: memref<2x1x32xf32, #tpu.memory_space<vmem>>, %arg14: memref<2x1x32xf32, #tpu.memory_space<vmem>>, %arg15: memref<32x32xf32, #tpu.memory_space<vmem>>, %arg16: memref<1x32xf32, #tpu.memory_space<vmem>>, %arg17: memref<32x128xf32, #tpu.memory_space<vmem>>, %arg18: memref<1x128xf32, #tpu.memory_space<vmem>>, %arg19: memref<16x128xf32, #tpu.memory_space<vmem>>, %arg20: memref<16x128xf32, #tpu.memory_space<vmem>>) attributes {dimension_semantics = [], scalar_prefetch = 0 : i64, scratch_operands = 0 : i64, tpu.core_type = #tpu.core_type<tc>} {
    %c0 = arith.constant 0 : index
    %c0_0 = arith.constant 0 : index
    %0 = vector.load %arg1[%c0, %c0_0] : memref<2x8xf32, #tpu.memory_space<vmem>>, vector<2x8xf32>
    %cst = arith.constant 1.000000e+00 : f32
    %1 = vector.broadcast %cst : f32 to vector<2x8xf32>
    %2 = arith.subf %1, %0 : vector<2x8xf32>
    %cst_1 = arith.constant -1.000000e+09 : f32
    %3 = vector.broadcast %cst_1 : f32 to vector<2x8xf32>
    %4 = arith.mulf %0, %3 : vector<2x8xf32>
    %5 = vector.shape_cast %4 : vector<2x8xf32> to vector<2x1x8xf32>
    %c0_2 = arith.constant 0 : index
    %c0_3 = arith.constant 0 : index
    %c0_4 = arith.constant 0 : index
    %6 = vector.load %arg0[%c0_2, %c0_3, %c0_4] : memref<2x8x32xf32, #tpu.memory_space<vmem>>, vector<2x8x32xf32>
    %7 = vector.shape_cast %2 : vector<2x8xf32> to vector<2x8x1xf32>
    %8 = vector.broadcast %7 : vector<2x8x1xf32> to vector<2x8x32xf32>
    %9 = arith.mulf %6, %8 : vector<2x8x32xf32>
    %c0_5 = arith.constant 0 : index
    %c0_6 = arith.constant 0 : index
    %10 = vector.load %arg2[%c0_5, %c0_6] : memref<8x32xf32, #tpu.memory_space<vmem>>, vector<8x32xf32>
    %11 = vector.shape_cast %10 : vector<8x32xf32> to vector<1x8x32xf32>
    %12 = vector.broadcast %11 : vector<1x8x32xf32> to vector<2x8x32xf32>
    %13 = arith.addf %9, %12 : vector<2x8x32xf32>
    %14 = vector.shape_cast %13 : vector<2x8x32xf32> to vector<16x32xf32>
    %c0_7 = arith.constant 0 : index
    %c0_8 = arith.constant 0 : index
    %c0_9 = arith.constant 0 : index
    %15 = vector.load %arg3[%c0_7, %c0_8, %c0_9] : memref<2x32x128xf32, #tpu.memory_space<vmem>>, vector<1x32x128xf32>
    %16 = vector.shape_cast %15 : vector<1x32x128xf32> to vector<32x128xf32>
    %c0_10 = arith.constant 0 : index
    %c0_11 = arith.constant 0 : index
    %c0_12 = arith.constant 0 : index
    %17 = vector.load %arg4[%c0_10, %c0_11, %c0_12] : memref<2x1x128xf32, #tpu.memory_space<vmem>>, vector<1x1x128xf32>
    %18 = vector.shape_cast %17 : vector<1x1x128xf32> to vector<1x128xf32>
    %c0_13 = arith.constant 0 : index
    %c0_14 = arith.constant 0 : index
    %c0_15 = arith.constant 0 : index
    %c0_16 = arith.constant 0 : index
    %19 = vector.load %arg5[%c0_13, %c0_14, %c0_15, %c0_16] : memref<2x4x8x32xf32, #tpu.memory_space<vmem>>, vector<1x4x8x32xf32>
    %20 = vector.shape_cast %19 : vector<1x4x8x32xf32> to vector<4x8x32xf32>
    %c0_17 = arith.constant 0 : index
    %c0_18 = arith.constant 0 : index
    %c0_19 = arith.constant 0 : index
    %21 = vector.load %arg6[%c0_17, %c0_18, %c0_19] : memref<2x1x32xf32, #tpu.memory_space<vmem>>, vector<1x1x32xf32>
    %22 = vector.shape_cast %21 : vector<1x1x32xf32> to vector<1x32xf32>
    %cst_20 = arith.constant dense<0.000000e+00> : vector<16x128xf32>
    %23 = tpu.matmul %14, %16, %cst_20 {dimension_numbers = #tpu.dot_dimension_numbers<[1], [0], [0], [1], [0, 0, 1, 1], [], []>} : vector<16x32xf32>, vector<32x128xf32>, vector<16x128xf32> -> vector<16x128xf32>
    %24 = vector.broadcast %18 : vector<1x128xf32> to vector<16x128xf32>
    %25 = arith.addf %23, %24 : vector<16x128xf32>
    %26 = vector.extract_strided_slice %25 {offsets = [0, 0], sizes = [16, 8], strides = [1, 1]} : vector<16x128xf32> to vector<16x8xf32>
    %27 = vector.shape_cast %26 : vector<16x8xf32> to vector<2x8x8xf32>
    %28 = vector.extract_strided_slice %25 {offsets = [0, 32], sizes = [16, 8], strides = [1, 1]} : vector<16x128xf32> to vector<16x8xf32>
    %29 = vector.shape_cast %28 : vector<16x8xf32> to vector<2x8x8xf32>
    %30 = vector.extract_strided_slice %25 {offsets = [0, 64], sizes = [16, 8], strides = [1, 1]} : vector<16x128xf32> to vector<16x8xf32>
    %31 = vector.shape_cast %30 : vector<16x8xf32> to vector<2x8x8xf32>
    "tpu.trace_start"() <{level = 10 : i32, message = "bqd,bkd->bqk"}> : () -> ()
    %cst_21 = arith.constant dense<0.000000e+00> : vector<2x8x8xf32>
    %32 = tpu.matmul %27, %29, %cst_21 {dimension_numbers = #tpu.dot_dimension_numbers<[2], [2], [1], [1], [0, 0, 0, 1, 1, 1], [0], [0]>} : vector<2x8x8xf32>, vector<2x8x8xf32>, vector<2x8x8xf32> -> vector<2x8x8xf32>
    "tpu.trace_stop"() : () -> ()
    %cst_22 = arith.constant 0.353553385 : f32
    %33 = vector.broadcast %cst_22 : f32 to vector<2x8x8xf32>
    %34 = arith.mulf %32, %33 : vector<2x8x8xf32>
    %35 = vector.broadcast %5 : vector<2x1x8xf32> to vector<2x8x8xf32>
    %36 = arith.addf %34, %35 : vector<2x8x8xf32>
    %cst_23 = arith.constant dense<0xFF800000> : vector<2x8xf32>
    %37 = vector.multi_reduction <maximumf>, %36, %cst_23 [2] : vector<2x8x8xf32> to vector<2x8xf32>
    %38 = vector.shape_cast %37 : vector<2x8xf32> to vector<2x8x1xf32>
    %39 = vector.broadcast %38 : vector<2x8x1xf32> to vector<2x8x8xf32>
    %40 = arith.subf %36, %39 : vector<2x8x8xf32>
    %41 = math.exp %40 : vector<2x8x8xf32>
    %cst_24 = arith.constant dense<0.000000e+00> : vector<2x8xf32>
    %42 = vector.multi_reduction <add>, %41, %cst_24 [2] : vector<2x8x8xf32> to vector<2x8xf32>
    %43 = vector.shape_cast %42 : vector<2x8xf32> to vector<2x8x1xf32>
    %44 = tpu.reciprocal %43 {approx = true} : vector<2x8x1xf32> -> vector<2x8x1xf32>
    %45 = vector.broadcast %44 : vector<2x8x1xf32> to vector<2x8x8xf32>
    %46 = arith.mulf %41, %45 : vector<2x8x8xf32>
    "tpu.trace_start"() <{level = 10 : i32, message = "bqk,bkd->bqd"}> : () -> ()
    %cst_25 = arith.constant dense<0.000000e+00> : vector<2x8x8xf32>
    %47 = tpu.matmul %46, %31, %cst_25 {dimension_numbers = #tpu.dot_dimension_numbers<[2], [1], [1], [2], [0, 0, 0, 1, 1, 2], [0], [0]>} : vector<2x8x8xf32>, vector<2x8x8xf32>, vector<2x8x8xf32> -> vector<2x8x8xf32>
    "tpu.trace_stop"() : () -> ()
    %48 = vector.shape_cast %47 : vector<2x8x8xf32> to vector<16x8xf32>
    %49 = vector.extract_strided_slice %20 {offsets = [0, 0, 0], sizes = [1, 8, 32], strides = [1, 1, 1]} : vector<4x8x32xf32> to vector<1x8x32xf32>
    %50 = vector.shape_cast %49 : vector<1x8x32xf32> to vector<8x32xf32>
    %cst_26 = arith.constant dense<0.000000e+00> : vector<16x32xf32>
    %51 = tpu.matmul %48, %50, %cst_26 {dimension_numbers = #tpu.dot_dimension_numbers<[1], [0], [0], [1], [0, 0, 1, 1], [], []>} : vector<16x8xf32>, vector<8x32xf32>, vector<16x32xf32> -> vector<16x32xf32>
    %52 = vector.extract_strided_slice %25 {offsets = [0, 8], sizes = [16, 8], strides = [1, 1]} : vector<16x128xf32> to vector<16x8xf32>
    %53 = vector.shape_cast %52 : vector<16x8xf32> to vector<2x8x8xf32>
    %54 = vector.extract_strided_slice %25 {offsets = [0, 40], sizes = [16, 8], strides = [1, 1]} : vector<16x128xf32> to vector<16x8xf32>
    %55 = vector.shape_cast %54 : vector<16x8xf32> to vector<2x8x8xf32>
    %56 = vector.extract_strided_slice %25 {offsets = [0, 72], sizes = [16, 8], strides = [1, 1]} : vector<16x128xf32> to vector<16x8xf32>
    %57 = vector.shape_cast %56 : vector<16x8xf32> to vector<2x8x8xf32>
    "tpu.trace_start"() <{level = 10 : i32, message = "bqd,bkd->bqk"}> : () -> ()
    %cst_27 = arith.constant dense<0.000000e+00> : vector<2x8x8xf32>
    %58 = tpu.matmul %53, %55, %cst_27 {dimension_numbers = #tpu.dot_dimension_numbers<[2], [2], [1], [1], [0, 0, 0, 1, 1, 1], [0], [0]>} : vector<2x8x8xf32>, vector<2x8x8xf32>, vector<2x8x8xf32> -> vector<2x8x8xf32>
    "tpu.trace_stop"() : () -> ()
    %cst_28 = arith.constant 0.353553385 : f32
    %59 = vector.broadcast %cst_28 : f32 to vector<2x8x8xf32>
    %60 = arith.mulf %58, %59 : vector<2x8x8xf32>
    %61 = vector.broadcast %5 : vector<2x1x8xf32> to vector<2x8x8xf32>
    %62 = arith.addf %60, %61 : vector<2x8x8xf32>
    %cst_29 = arith.constant dense<0xFF800000> : vector<2x8xf32>
    %63 = vector.multi_reduction <maximumf>, %62, %cst_29 [2] : vector<2x8x8xf32> to vector<2x8xf32>
    %64 = vector.shape_cast %63 : vector<2x8xf32> to vector<2x8x1xf32>
    %65 = vector.broadcast %64 : vector<2x8x1xf32> to vector<2x8x8xf32>
    %66 = arith.subf %62, %65 : vector<2x8x8xf32>
    %67 = math.exp %66 : vector<2x8x8xf32>
    %cst_30 = arith.constant dense<0.000000e+00> : vector<2x8xf32>
    %68 = vector.multi_reduction <add>, %67, %cst_30 [2] : vector<2x8x8xf32> to vector<2x8xf32>
    %69 = vector.shape_cast %68 : vector<2x8xf32> to vector<2x8x1xf32>
    %70 = tpu.reciprocal %69 {approx = true} : vector<2x8x1xf32> -> vector<2x8x1xf32>
    %71 = vector.broadcast %70 : vector<2x8x1xf32> to vector<2x8x8xf32>
    %72 = arith.mulf %67, %71 : vector<2x8x8xf32>
    "tpu.trace_start"() <{level = 10 : i32, message = "bqk,bkd->bqd"}> : () -> ()
    %cst_31 = arith.constant dense<0.000000e+00> : vector<2x8x8xf32>
    %73 = tpu.matmul %72, %57, %cst_31 {dimension_numbers = #tpu.dot_dimension_numbers<[2], [1], [1], [2], [0, 0, 0, 1, 1, 2], [0], [0]>} : vector<2x8x8xf32>, vector<2x8x8xf32>, vector<2x8x8xf32> -> vector<2x8x8xf32>
    "tpu.trace_stop"() : () -> ()
    %74 = vector.shape_cast %73 : vector<2x8x8xf32> to vector<16x8xf32>
    %75 = vector.extract_strided_slice %20 {offsets = [1, 0, 0], sizes = [1, 8, 32], strides = [1, 1, 1]} : vector<4x8x32xf32> to vector<1x8x32xf32>
    %76 = vector.shape_cast %75 : vector<1x8x32xf32> to vector<8x32xf32>
    %cst_32 = arith.constant dense<0.000000e+00> : vector<16x32xf32>
    %77 = tpu.matmul %74, %76, %cst_32 {dimension_numbers = #tpu.dot_dimension_numbers<[1], [0], [0], [1], [0, 0, 1, 1], [], []>} : vector<16x8xf32>, vector<8x32xf32>, vector<16x32xf32> -> vector<16x32xf32>
    %78 = arith.addf %51, %77 : vector<16x32xf32>
    %79 = vector.extract_strided_slice %25 {offsets = [0, 16], sizes = [16, 8], strides = [1, 1]} : vector<16x128xf32> to vector<16x8xf32>
    %80 = vector.shape_cast %79 : vector<16x8xf32> to vector<2x8x8xf32>
    %81 = vector.extract_strided_slice %25 {offsets = [0, 48], sizes = [16, 8], strides = [1, 1]} : vector<16x128xf32> to vector<16x8xf32>
    %82 = vector.shape_cast %81 : vector<16x8xf32> to vector<2x8x8xf32>
    %83 = vector.extract_strided_slice %25 {offsets = [0, 80], sizes = [16, 8], strides = [1, 1]} : vector<16x128xf32> to vector<16x8xf32>
    %84 = vector.shape_cast %83 : vector<16x8xf32> to vector<2x8x8xf32>
    "tpu.trace_start"() <{level = 10 : i32, message = "bqd,bkd->bqk"}> : () -> ()
    %cst_33 = arith.constant dense<0.000000e+00> : vector<2x8x8xf32>
    %85 = tpu.matmul %80, %82, %cst_33 {dimension_numbers = #tpu.dot_dimension_numbers<[2], [2], [1], [1], [0, 0, 0, 1, 1, 1], [0], [0]>} : vector<2x8x8xf32>, vector<2x8x8xf32>, vector<2x8x8xf32> -> vector<2x8x8xf32>
    "tpu.trace_stop"() : () -> ()
    %cst_34 = arith.constant 0.353553385 : f32
    %86 = vector.broadcast %cst_34 : f32 to vector<2x8x8xf32>
    %87 = arith.mulf %85, %86 : vector<2x8x8xf32>
    %88 = vector.broadcast %5 : vector<2x1x8xf32> to vector<2x8x8xf32>
    %89 = arith.addf %87, %88 : vector<2x8x8xf32>
    %cst_35 = arith.constant dense<0xFF800000> : vector<2x8xf32>
    %90 = vector.multi_reduction <maximumf>, %89, %cst_35 [2] : vector<2x8x8xf32> to vector<2x8xf32>
    %91 = vector.shape_cast %90 : vector<2x8xf32> to vector<2x8x1xf32>
    %92 = vector.broadcast %91 : vector<2x8x1xf32> to vector<2x8x8xf32>
    %93 = arith.subf %89, %92 : vector<2x8x8xf32>
    %94 = math.exp %93 : vector<2x8x8xf32>
    %cst_36 = arith.constant dense<0.000000e+00> : vector<2x8xf32>
    %95 = vector.multi_reduction <add>, %94, %cst_36 [2] : vector<2x8x8xf32> to vector<2x8xf32>
    %96 = vector.shape_cast %95 : vector<2x8xf32> to vector<2x8x1xf32>
    %97 = tpu.reciprocal %96 {approx = true} : vector<2x8x1xf32> -> vector<2x8x1xf32>
    %98 = vector.broadcast %97 : vector<2x8x1xf32> to vector<2x8x8xf32>
    %99 = arith.mulf %94, %98 : vector<2x8x8xf32>
    "tpu.trace_start"() <{level = 10 : i32, message = "bqk,bkd->bqd"}> : () -> ()
    %cst_37 = arith.constant dense<0.000000e+00> : vector<2x8x8xf32>
    %100 = tpu.matmul %99, %84, %cst_37 {dimension_numbers = #tpu.dot_dimension_numbers<[2], [1], [1], [2], [0, 0, 0, 1, 1, 2], [0], [0]>} : vector<2x8x8xf32>, vector<2x8x8xf32>, vector<2x8x8xf32> -> vector<2x8x8xf32>
    "tpu.trace_stop"() : () -> ()
    %101 = vector.shape_cast %100 : vector<2x8x8xf32> to vector<16x8xf32>
    %102 = vector.extract_strided_slice %20 {offsets = [2, 0, 0], sizes = [1, 8, 32], strides = [1, 1, 1]} : vector<4x8x32xf32> to vector<1x8x32xf32>
    %103 = vector.shape_cast %102 : vector<1x8x32xf32> to vector<8x32xf32>
    %cst_38 = arith.constant dense<0.000000e+00> : vector<16x32xf32>
    %104 = tpu.matmul %101, %103, %cst_38 {dimension_numbers = #tpu.dot_dimension_numbers<[1], [0], [0], [1], [0, 0, 1, 1], [], []>} : vector<16x8xf32>, vector<8x32xf32>, vector<16x32xf32> -> vector<16x32xf32>
    %105 = arith.addf %78, %104 : vector<16x32xf32>
    %106 = vector.extract_strided_slice %25 {offsets = [0, 24], sizes = [16, 8], strides = [1, 1]} : vector<16x128xf32> to vector<16x8xf32>
    %107 = vector.shape_cast %106 : vector<16x8xf32> to vector<2x8x8xf32>
    %108 = vector.extract_strided_slice %25 {offsets = [0, 56], sizes = [16, 8], strides = [1, 1]} : vector<16x128xf32> to vector<16x8xf32>
    %109 = vector.shape_cast %108 : vector<16x8xf32> to vector<2x8x8xf32>
    %110 = vector.extract_strided_slice %25 {offsets = [0, 88], sizes = [16, 8], strides = [1, 1]} : vector<16x128xf32> to vector<16x8xf32>
    %111 = vector.shape_cast %110 : vector<16x8xf32> to vector<2x8x8xf32>
    "tpu.trace_start"() <{level = 10 : i32, message = "bqd,bkd->bqk"}> : () -> ()
    %cst_39 = arith.constant dense<0.000000e+00> : vector<2x8x8xf32>
    %112 = tpu.matmul %107, %109, %cst_39 {dimension_numbers = #tpu.dot_dimension_numbers<[2], [2], [1], [1], [0, 0, 0, 1, 1, 1], [0], [0]>} : vector<2x8x8xf32>, vector<2x8x8xf32>, vector<2x8x8xf32> -> vector<2x8x8xf32>
    "tpu.trace_stop"() : () -> ()
    %cst_40 = arith.constant 0.353553385 : f32
    %113 = vector.broadcast %cst_40 : f32 to vector<2x8x8xf32>
    %114 = arith.mulf %112, %113 : vector<2x8x8xf32>
    %115 = vector.broadcast %5 : vector<2x1x8xf32> to vector<2x8x8xf32>
    %116 = arith.addf %114, %115 : vector<2x8x8xf32>
    %cst_41 = arith.constant dense<0xFF800000> : vector<2x8xf32>
    %117 = vector.multi_reduction <maximumf>, %116, %cst_41 [2] : vector<2x8x8xf32> to vector<2x8xf32>
    %118 = vector.shape_cast %117 : vector<2x8xf32> to vector<2x8x1xf32>
    %119 = vector.broadcast %118 : vector<2x8x1xf32> to vector<2x8x8xf32>
    %120 = arith.subf %116, %119 : vector<2x8x8xf32>
    %121 = math.exp %120 : vector<2x8x8xf32>
    %cst_42 = arith.constant dense<0.000000e+00> : vector<2x8xf32>
    %122 = vector.multi_reduction <add>, %121, %cst_42 [2] : vector<2x8x8xf32> to vector<2x8xf32>
    %123 = vector.shape_cast %122 : vector<2x8xf32> to vector<2x8x1xf32>
    %124 = tpu.reciprocal %123 {approx = true} : vector<2x8x1xf32> -> vector<2x8x1xf32>
    %125 = vector.broadcast %124 : vector<2x8x1xf32> to vector<2x8x8xf32>
    %126 = arith.mulf %121, %125 : vector<2x8x8xf32>
    "tpu.trace_start"() <{level = 10 : i32, message = "bqk,bkd->bqd"}> : () -> ()
    %cst_43 = arith.constant dense<0.000000e+00> : vector<2x8x8xf32>
    %127 = tpu.matmul %126, %111, %cst_43 {dimension_numbers = #tpu.dot_dimension_numbers<[2], [1], [1], [2], [0, 0, 0, 1, 1, 2], [0], [0]>} : vector<2x8x8xf32>, vector<2x8x8xf32>, vector<2x8x8xf32> -> vector<2x8x8xf32>
    "tpu.trace_stop"() : () -> ()
    %128 = vector.shape_cast %127 : vector<2x8x8xf32> to vector<16x8xf32>
    %129 = vector.extract_strided_slice %20 {offsets = [3, 0, 0], sizes = [1, 8, 32], strides = [1, 1, 1]} : vector<4x8x32xf32> to vector<1x8x32xf32>
    %130 = vector.shape_cast %129 : vector<1x8x32xf32> to vector<8x32xf32>
    %cst_44 = arith.constant dense<0.000000e+00> : vector<16x32xf32>
    %131 = tpu.matmul %128, %130, %cst_44 {dimension_numbers = #tpu.dot_dimension_numbers<[1], [0], [0], [1], [0, 0, 1, 1], [], []>} : vector<16x8xf32>, vector<8x32xf32>, vector<16x32xf32> -> vector<16x32xf32>
    %132 = arith.addf %105, %131 : vector<16x32xf32>
    %133 = vector.broadcast %22 : vector<1x32xf32> to vector<16x32xf32>
    %134 = arith.addf %132, %133 : vector<16x32xf32>
    %135 = arith.addf %14, %134 : vector<16x32xf32>
    %c0_45 = arith.constant 0 : index
    %c0_46 = arith.constant 0 : index
    %c0_47 = arith.constant 0 : index
    %136 = vector.load %arg7[%c0_45, %c0_46, %c0_47] : memref<2x1x32xf32, #tpu.memory_space<vmem>>, vector<1x1x32xf32>
    %137 = vector.shape_cast %136 : vector<1x1x32xf32> to vector<1x32xf32>
    %c0_48 = arith.constant 0 : index
    %c0_49 = arith.constant 0 : index
    %c0_50 = arith.constant 0 : index
    %138 = vector.load %arg8[%c0_48, %c0_49, %c0_50] : memref<2x1x32xf32, #tpu.memory_space<vmem>>, vector<1x1x32xf32>
    %139 = vector.shape_cast %138 : vector<1x1x32xf32> to vector<1x32xf32>
    %cst_51 = arith.constant dense<0.000000e+00> : vector<16xf32>
    %140 = vector.multi_reduction <add>, %135, %cst_51 [1] : vector<16x32xf32> to vector<16xf32>
    %141 = vector.shape_cast %140 : vector<16xf32> to vector<16x1xf32>
    %cst_52 = arith.constant 3.200000e+01 : f32
    %142 = vector.broadcast %cst_52 : f32 to vector<16x1xf32>
    %143 = arith.divf %141, %142 : vector<16x1xf32>
    %144 = arith.mulf %135, %135 : vector<16x32xf32>
    %cst_53 = arith.constant dense<0.000000e+00> : vector<16xf32>
    %145 = vector.multi_reduction <add>, %144, %cst_53 [1] : vector<16x32xf32> to vector<16xf32>
    %146 = vector.shape_cast %145 : vector<16xf32> to vector<16x1xf32>
    %cst_54 = arith.constant 3.200000e+01 : f32
    %147 = vector.broadcast %cst_54 : f32 to vector<16x1xf32>
    %148 = arith.divf %146, %147 : vector<16x1xf32>
    %149 = arith.mulf %143, %143 : vector<16x1xf32>
    %150 = arith.subf %148, %149 : vector<16x1xf32>
    %151 = vector.broadcast %143 : vector<16x1xf32> to vector<16x32xf32>
    %152 = arith.subf %135, %151 : vector<16x32xf32>
    %cst_55 = arith.constant 9.99999974E-6 : f32
    %153 = vector.broadcast %cst_55 : f32 to vector<16x1xf32>
    %154 = arith.addf %150, %153 : vector<16x1xf32>
    %155 = math.rsqrt %154 : vector<16x1xf32>
    %156 = vector.broadcast %155 : vector<16x1xf32> to vector<16x32xf32>
    %157 = arith.mulf %152, %156 : vector<16x32xf32>
    %158 = vector.broadcast %137 : vector<1x32xf32> to vector<16x32xf32>
    %159 = arith.mulf %157, %158 : vector<16x32xf32>
    %160 = vector.broadcast %139 : vector<1x32xf32> to vector<16x32xf32>
    %161 = arith.addf %159, %160 : vector<16x32xf32>
    %c0_56 = arith.constant 0 : index
    %c0_57 = arith.constant 0 : index
    %c0_58 = arith.constant 0 : index
    %162 = vector.load %arg9[%c0_56, %c0_57, %c0_58] : memref<2x32x32xf32, #tpu.memory_space<vmem>>, vector<1x32x32xf32>
    %163 = vector.shape_cast %162 : vector<1x32x32xf32> to vector<32x32xf32>
    %cst_59 = arith.constant dense<0.000000e+00> : vector<16x32xf32>
    %164 = tpu.matmul %161, %163, %cst_59 {dimension_numbers = #tpu.dot_dimension_numbers<[1], [0], [0], [1], [0, 0, 1, 1], [], []>} : vector<16x32xf32>, vector<32x32xf32>, vector<16x32xf32> -> vector<16x32xf32>
    %c0_60 = arith.constant 0 : index
    %c0_61 = arith.constant 0 : index
    %c0_62 = arith.constant 0 : index
    %165 = vector.load %arg10[%c0_60, %c0_61, %c0_62] : memref<2x1x32xf32, #tpu.memory_space<vmem>>, vector<1x1x32xf32>
    %166 = vector.shape_cast %165 : vector<1x1x32xf32> to vector<1x32xf32>
    %167 = vector.broadcast %166 : vector<1x32xf32> to vector<16x32xf32>
    %168 = arith.addf %164, %167 : vector<16x32xf32>
    %cst_63 = arith.constant 0.000000e+00 : f32
    %169 = vector.broadcast %cst_63 : f32 to vector<16x32xf32>
    %170 = arith.maximumf %168, %169 : vector<16x32xf32>
    %c0_64 = arith.constant 0 : index
    %c0_65 = arith.constant 0 : index
    %c0_66 = arith.constant 0 : index
    %171 = vector.load %arg11[%c0_64, %c0_65, %c0_66] : memref<2x32x32xf32, #tpu.memory_space<vmem>>, vector<1x32x32xf32>
    %172 = vector.shape_cast %171 : vector<1x32x32xf32> to vector<32x32xf32>
    %cst_67 = arith.constant dense<0.000000e+00> : vector<16x32xf32>
    %173 = tpu.matmul %170, %172, %cst_67 {dimension_numbers = #tpu.dot_dimension_numbers<[1], [0], [0], [1], [0, 0, 1, 1], [], []>} : vector<16x32xf32>, vector<32x32xf32>, vector<16x32xf32> -> vector<16x32xf32>
    %c0_68 = arith.constant 0 : index
    %c0_69 = arith.constant 0 : index
    %c0_70 = arith.constant 0 : index
    %174 = vector.load %arg12[%c0_68, %c0_69, %c0_70] : memref<2x1x32xf32, #tpu.memory_space<vmem>>, vector<1x1x32xf32>
    %175 = vector.shape_cast %174 : vector<1x1x32xf32> to vector<1x32xf32>
    %176 = vector.broadcast %175 : vector<1x32xf32> to vector<16x32xf32>
    %177 = arith.addf %173, %176 : vector<16x32xf32>
    %178 = arith.addf %161, %177 : vector<16x32xf32>
    %c0_71 = arith.constant 0 : index
    %c0_72 = arith.constant 0 : index
    %c0_73 = arith.constant 0 : index
    %179 = vector.load %arg13[%c0_71, %c0_72, %c0_73] : memref<2x1x32xf32, #tpu.memory_space<vmem>>, vector<1x1x32xf32>
    %180 = vector.shape_cast %179 : vector<1x1x32xf32> to vector<1x32xf32>
    %c0_74 = arith.constant 0 : index
    %c0_75 = arith.constant 0 : index
    %c0_76 = arith.constant 0 : index
    %181 = vector.load %arg14[%c0_74, %c0_75, %c0_76] : memref<2x1x32xf32, #tpu.memory_space<vmem>>, vector<1x1x32xf32>
    %182 = vector.shape_cast %181 : vector<1x1x32xf32> to vector<1x32xf32>
    %cst_77 = arith.constant dense<0.000000e+00> : vector<16xf32>
    %183 = vector.multi_reduction <add>, %178, %cst_77 [1] : vector<16x32xf32> to vector<16xf32>
    %184 = vector.shape_cast %183 : vector<16xf32> to vector<16x1xf32>
    %cst_78 = arith.constant 3.200000e+01 : f32
    %185 = vector.broadcast %cst_78 : f32 to vector<16x1xf32>
    %186 = arith.divf %184, %185 : vector<16x1xf32>
    %187 = arith.mulf %178, %178 : vector<16x32xf32>
    %cst_79 = arith.constant dense<0.000000e+00> : vector<16xf32>
    %188 = vector.multi_reduction <add>, %187, %cst_79 [1] : vector<16x32xf32> to vector<16xf32>
    %189 = vector.shape_cast %188 : vector<16xf32> to vector<16x1xf32>
    %cst_80 = arith.constant 3.200000e+01 : f32
    %190 = vector.broadcast %cst_80 : f32 to vector<16x1xf32>
    %191 = arith.divf %189, %190 : vector<16x1xf32>
    %192 = arith.mulf %186, %186 : vector<16x1xf32>
    %193 = arith.subf %191, %192 : vector<16x1xf32>
    %194 = vector.broadcast %186 : vector<16x1xf32> to vector<16x32xf32>
    %195 = arith.subf %178, %194 : vector<16x32xf32>
    %cst_81 = arith.constant 9.99999974E-6 : f32
    %196 = vector.broadcast %cst_81 : f32 to vector<16x1xf32>
    %197 = arith.addf %193, %196 : vector<16x1xf32>
    %198 = math.rsqrt %197 : vector<16x1xf32>
    %199 = vector.broadcast %198 : vector<16x1xf32> to vector<16x32xf32>
    %200 = arith.mulf %195, %199 : vector<16x32xf32>
    %201 = vector.broadcast %180 : vector<1x32xf32> to vector<16x32xf32>
    %202 = arith.mulf %200, %201 : vector<16x32xf32>
    %203 = vector.broadcast %182 : vector<1x32xf32> to vector<16x32xf32>
    %204 = arith.addf %202, %203 : vector<16x32xf32>
    %c1 = arith.constant 1 : index
    %c0_82 = arith.constant 0 : index
    %c0_83 = arith.constant 0 : index
    %205 = vector.load %arg3[%c1, %c0_82, %c0_83] : memref<2x32x128xf32, #tpu.memory_space<vmem>>, vector<1x32x128xf32>
    %206 = vector.shape_cast %205 : vector<1x32x128xf32> to vector<32x128xf32>
    %c1_84 = arith.constant 1 : index
    %c0_85 = arith.constant 0 : index
    %c0_86 = arith.constant 0 : index
    %207 = vector.load %arg4[%c1_84, %c0_85, %c0_86] : memref<2x1x128xf32, #tpu.memory_space<vmem>>, vector<1x1x128xf32>
    %208 = vector.shape_cast %207 : vector<1x1x128xf32> to vector<1x128xf32>
    %c1_87 = arith.constant 1 : index
    %c0_88 = arith.constant 0 : index
    %c0_89 = arith.constant 0 : index
    %c0_90 = arith.constant 0 : index
    %209 = vector.load %arg5[%c1_87, %c0_88, %c0_89, %c0_90] : memref<2x4x8x32xf32, #tpu.memory_space<vmem>>, vector<1x4x8x32xf32>
    %210 = vector.shape_cast %209 : vector<1x4x8x32xf32> to vector<4x8x32xf32>
    %c1_91 = arith.constant 1 : index
    %c0_92 = arith.constant 0 : index
    %c0_93 = arith.constant 0 : index
    %211 = vector.load %arg6[%c1_91, %c0_92, %c0_93] : memref<2x1x32xf32, #tpu.memory_space<vmem>>, vector<1x1x32xf32>
    %212 = vector.shape_cast %211 : vector<1x1x32xf32> to vector<1x32xf32>
    %cst_94 = arith.constant dense<0.000000e+00> : vector<16x128xf32>
    %213 = tpu.matmul %204, %206, %cst_94 {dimension_numbers = #tpu.dot_dimension_numbers<[1], [0], [0], [1], [0, 0, 1, 1], [], []>} : vector<16x32xf32>, vector<32x128xf32>, vector<16x128xf32> -> vector<16x128xf32>
    %214 = vector.broadcast %208 : vector<1x128xf32> to vector<16x128xf32>
    %215 = arith.addf %213, %214 : vector<16x128xf32>
    %216 = vector.extract_strided_slice %215 {offsets = [0, 0], sizes = [16, 8], strides = [1, 1]} : vector<16x128xf32> to vector<16x8xf32>
    %217 = vector.shape_cast %216 : vector<16x8xf32> to vector<2x8x8xf32>
    %218 = vector.extract_strided_slice %215 {offsets = [0, 32], sizes = [16, 8], strides = [1, 1]} : vector<16x128xf32> to vector<16x8xf32>
    %219 = vector.shape_cast %218 : vector<16x8xf32> to vector<2x8x8xf32>
    %220 = vector.extract_strided_slice %215 {offsets = [0, 64], sizes = [16, 8], strides = [1, 1]} : vector<16x128xf32> to vector<16x8xf32>
    %221 = vector.shape_cast %220 : vector<16x8xf32> to vector<2x8x8xf32>
    "tpu.trace_start"() <{level = 10 : i32, message = "bqd,bkd->bqk"}> : () -> ()
    %cst_95 = arith.constant dense<0.000000e+00> : vector<2x8x8xf32>
    %222 = tpu.matmul %217, %219, %cst_95 {dimension_numbers = #tpu.dot_dimension_numbers<[2], [2], [1], [1], [0, 0, 0, 1, 1, 1], [0], [0]>} : vector<2x8x8xf32>, vector<2x8x8xf32>, vector<2x8x8xf32> -> vector<2x8x8xf32>
    "tpu.trace_stop"() : () -> ()
    %cst_96 = arith.constant 0.353553385 : f32
    %223 = vector.broadcast %cst_96 : f32 to vector<2x8x8xf32>
    %224 = arith.mulf %222, %223 : vector<2x8x8xf32>
    %225 = vector.broadcast %5 : vector<2x1x8xf32> to vector<2x8x8xf32>
    %226 = arith.addf %224, %225 : vector<2x8x8xf32>
    %cst_97 = arith.constant dense<0xFF800000> : vector<2x8xf32>
    %227 = vector.multi_reduction <maximumf>, %226, %cst_97 [2] : vector<2x8x8xf32> to vector<2x8xf32>
    %228 = vector.shape_cast %227 : vector<2x8xf32> to vector<2x8x1xf32>
    %229 = vector.broadcast %228 : vector<2x8x1xf32> to vector<2x8x8xf32>
    %230 = arith.subf %226, %229 : vector<2x8x8xf32>
    %231 = math.exp %230 : vector<2x8x8xf32>
    %cst_98 = arith.constant dense<0.000000e+00> : vector<2x8xf32>
    %232 = vector.multi_reduction <add>, %231, %cst_98 [2] : vector<2x8x8xf32> to vector<2x8xf32>
    %233 = vector.shape_cast %232 : vector<2x8xf32> to vector<2x8x1xf32>
    %234 = tpu.reciprocal %233 {approx = true} : vector<2x8x1xf32> -> vector<2x8x1xf32>
    %235 = vector.broadcast %234 : vector<2x8x1xf32> to vector<2x8x8xf32>
    %236 = arith.mulf %231, %235 : vector<2x8x8xf32>
    "tpu.trace_start"() <{level = 10 : i32, message = "bqk,bkd->bqd"}> : () -> ()
    %cst_99 = arith.constant dense<0.000000e+00> : vector<2x8x8xf32>
    %237 = tpu.matmul %236, %221, %cst_99 {dimension_numbers = #tpu.dot_dimension_numbers<[2], [1], [1], [2], [0, 0, 0, 1, 1, 2], [0], [0]>} : vector<2x8x8xf32>, vector<2x8x8xf32>, vector<2x8x8xf32> -> vector<2x8x8xf32>
    "tpu.trace_stop"() : () -> ()
    %238 = vector.shape_cast %237 : vector<2x8x8xf32> to vector<16x8xf32>
    %239 = vector.extract_strided_slice %210 {offsets = [0, 0, 0], sizes = [1, 8, 32], strides = [1, 1, 1]} : vector<4x8x32xf32> to vector<1x8x32xf32>
    %240 = vector.shape_cast %239 : vector<1x8x32xf32> to vector<8x32xf32>
    %cst_100 = arith.constant dense<0.000000e+00> : vector<16x32xf32>
    %241 = tpu.matmul %238, %240, %cst_100 {dimension_numbers = #tpu.dot_dimension_numbers<[1], [0], [0], [1], [0, 0, 1, 1], [], []>} : vector<16x8xf32>, vector<8x32xf32>, vector<16x32xf32> -> vector<16x32xf32>
    %242 = vector.extract_strided_slice %215 {offsets = [0, 8], sizes = [16, 8], strides = [1, 1]} : vector<16x128xf32> to vector<16x8xf32>
    %243 = vector.shape_cast %242 : vector<16x8xf32> to vector<2x8x8xf32>
    %244 = vector.extract_strided_slice %215 {offsets = [0, 40], sizes = [16, 8], strides = [1, 1]} : vector<16x128xf32> to vector<16x8xf32>
    %245 = vector.shape_cast %244 : vector<16x8xf32> to vector<2x8x8xf32>
    %246 = vector.extract_strided_slice %215 {offsets = [0, 72], sizes = [16, 8], strides = [1, 1]} : vector<16x128xf32> to vector<16x8xf32>
    %247 = vector.shape_cast %246 : vector<16x8xf32> to vector<2x8x8xf32>
    "tpu.trace_start"() <{level = 10 : i32, message = "bqd,bkd->bqk"}> : () -> ()
    %cst_101 = arith.constant dense<0.000000e+00> : vector<2x8x8xf32>
    %248 = tpu.matmul %243, %245, %cst_101 {dimension_numbers = #tpu.dot_dimension_numbers<[2], [2], [1], [1], [0, 0, 0, 1, 1, 1], [0], [0]>} : vector<2x8x8xf32>, vector<2x8x8xf32>, vector<2x8x8xf32> -> vector<2x8x8xf32>
    "tpu.trace_stop"() : () -> ()
    %cst_102 = arith.constant 0.353553385 : f32
    %249 = vector.broadcast %cst_102 : f32 to vector<2x8x8xf32>
    %250 = arith.mulf %248, %249 : vector<2x8x8xf32>
    %251 = vector.broadcast %5 : vector<2x1x8xf32> to vector<2x8x8xf32>
    %252 = arith.addf %250, %251 : vector<2x8x8xf32>
    %cst_103 = arith.constant dense<0xFF800000> : vector<2x8xf32>
    %253 = vector.multi_reduction <maximumf>, %252, %cst_103 [2] : vector<2x8x8xf32> to vector<2x8xf32>
    %254 = vector.shape_cast %253 : vector<2x8xf32> to vector<2x8x1xf32>
    %255 = vector.broadcast %254 : vector<2x8x1xf32> to vector<2x8x8xf32>
    %256 = arith.subf %252, %255 : vector<2x8x8xf32>
    %257 = math.exp %256 : vector<2x8x8xf32>
    %cst_104 = arith.constant dense<0.000000e+00> : vector<2x8xf32>
    %258 = vector.multi_reduction <add>, %257, %cst_104 [2] : vector<2x8x8xf32> to vector<2x8xf32>
    %259 = vector.shape_cast %258 : vector<2x8xf32> to vector<2x8x1xf32>
    %260 = tpu.reciprocal %259 {approx = true} : vector<2x8x1xf32> -> vector<2x8x1xf32>
    %261 = vector.broadcast %260 : vector<2x8x1xf32> to vector<2x8x8xf32>
    %262 = arith.mulf %257, %261 : vector<2x8x8xf32>
    "tpu.trace_start"() <{level = 10 : i32, message = "bqk,bkd->bqd"}> : () -> ()
    %cst_105 = arith.constant dense<0.000000e+00> : vector<2x8x8xf32>
    %263 = tpu.matmul %262, %247, %cst_105 {dimension_numbers = #tpu.dot_dimension_numbers<[2], [1], [1], [2], [0, 0, 0, 1, 1, 2], [0], [0]>} : vector<2x8x8xf32>, vector<2x8x8xf32>, vector<2x8x8xf32> -> vector<2x8x8xf32>
    "tpu.trace_stop"() : () -> ()
    %264 = vector.shape_cast %263 : vector<2x8x8xf32> to vector<16x8xf32>
    %265 = vector.extract_strided_slice %210 {offsets = [1, 0, 0], sizes = [1, 8, 32], strides = [1, 1, 1]} : vector<4x8x32xf32> to vector<1x8x32xf32>
    %266 = vector.shape_cast %265 : vector<1x8x32xf32> to vector<8x32xf32>
    %cst_106 = arith.constant dense<0.000000e+00> : vector<16x32xf32>
    %267 = tpu.matmul %264, %266, %cst_106 {dimension_numbers = #tpu.dot_dimension_numbers<[1], [0], [0], [1], [0, 0, 1, 1], [], []>} : vector<16x8xf32>, vector<8x32xf32>, vector<16x32xf32> -> vector<16x32xf32>
    %268 = arith.addf %241, %267 : vector<16x32xf32>
    %269 = vector.extract_strided_slice %215 {offsets = [0, 16], sizes = [16, 8], strides = [1, 1]} : vector<16x128xf32> to vector<16x8xf32>
    %270 = vector.shape_cast %269 : vector<16x8xf32> to vector<2x8x8xf32>
    %271 = vector.extract_strided_slice %215 {offsets = [0, 48], sizes = [16, 8], strides = [1, 1]} : vector<16x128xf32> to vector<16x8xf32>
    %272 = vector.shape_cast %271 : vector<16x8xf32> to vector<2x8x8xf32>
    %273 = vector.extract_strided_slice %215 {offsets = [0, 80], sizes = [16, 8], strides = [1, 1]} : vector<16x128xf32> to vector<16x8xf32>
    %274 = vector.shape_cast %273 : vector<16x8xf32> to vector<2x8x8xf32>
    "tpu.trace_start"() <{level = 10 : i32, message = "bqd,bkd->bqk"}> : () -> ()
    %cst_107 = arith.constant dense<0.000000e+00> : vector<2x8x8xf32>
    %275 = tpu.matmul %270, %272, %cst_107 {dimension_numbers = #tpu.dot_dimension_numbers<[2], [2], [1], [1], [0, 0, 0, 1, 1, 1], [0], [0]>} : vector<2x8x8xf32>, vector<2x8x8xf32>, vector<2x8x8xf32> -> vector<2x8x8xf32>
    "tpu.trace_stop"() : () -> ()
    %cst_108 = arith.constant 0.353553385 : f32
    %276 = vector.broadcast %cst_108 : f32 to vector<2x8x8xf32>
    %277 = arith.mulf %275, %276 : vector<2x8x8xf32>
    %278 = vector.broadcast %5 : vector<2x1x8xf32> to vector<2x8x8xf32>
    %279 = arith.addf %277, %278 : vector<2x8x8xf32>
    %cst_109 = arith.constant dense<0xFF800000> : vector<2x8xf32>
    %280 = vector.multi_reduction <maximumf>, %279, %cst_109 [2] : vector<2x8x8xf32> to vector<2x8xf32>
    %281 = vector.shape_cast %280 : vector<2x8xf32> to vector<2x8x1xf32>
    %282 = vector.broadcast %281 : vector<2x8x1xf32> to vector<2x8x8xf32>
    %283 = arith.subf %279, %282 : vector<2x8x8xf32>
    %284 = math.exp %283 : vector<2x8x8xf32>
    %cst_110 = arith.constant dense<0.000000e+00> : vector<2x8xf32>
    %285 = vector.multi_reduction <add>, %284, %cst_110 [2] : vector<2x8x8xf32> to vector<2x8xf32>
    %286 = vector.shape_cast %285 : vector<2x8xf32> to vector<2x8x1xf32>
    %287 = tpu.reciprocal %286 {approx = true} : vector<2x8x1xf32> -> vector<2x8x1xf32>
    %288 = vector.broadcast %287 : vector<2x8x1xf32> to vector<2x8x8xf32>
    %289 = arith.mulf %284, %288 : vector<2x8x8xf32>
    "tpu.trace_start"() <{level = 10 : i32, message = "bqk,bkd->bqd"}> : () -> ()
    %cst_111 = arith.constant dense<0.000000e+00> : vector<2x8x8xf32>
    %290 = tpu.matmul %289, %274, %cst_111 {dimension_numbers = #tpu.dot_dimension_numbers<[2], [1], [1], [2], [0, 0, 0, 1, 1, 2], [0], [0]>} : vector<2x8x8xf32>, vector<2x8x8xf32>, vector<2x8x8xf32> -> vector<2x8x8xf32>
    "tpu.trace_stop"() : () -> ()
    %291 = vector.shape_cast %290 : vector<2x8x8xf32> to vector<16x8xf32>
    %292 = vector.extract_strided_slice %210 {offsets = [2, 0, 0], sizes = [1, 8, 32], strides = [1, 1, 1]} : vector<4x8x32xf32> to vector<1x8x32xf32>
    %293 = vector.shape_cast %292 : vector<1x8x32xf32> to vector<8x32xf32>
    %cst_112 = arith.constant dense<0.000000e+00> : vector<16x32xf32>
    %294 = tpu.matmul %291, %293, %cst_112 {dimension_numbers = #tpu.dot_dimension_numbers<[1], [0], [0], [1], [0, 0, 1, 1], [], []>} : vector<16x8xf32>, vector<8x32xf32>, vector<16x32xf32> -> vector<16x32xf32>
    %295 = arith.addf %268, %294 : vector<16x32xf32>
    %296 = vector.extract_strided_slice %215 {offsets = [0, 24], sizes = [16, 8], strides = [1, 1]} : vector<16x128xf32> to vector<16x8xf32>
    %297 = vector.shape_cast %296 : vector<16x8xf32> to vector<2x8x8xf32>
    %298 = vector.extract_strided_slice %215 {offsets = [0, 56], sizes = [16, 8], strides = [1, 1]} : vector<16x128xf32> to vector<16x8xf32>
    %299 = vector.shape_cast %298 : vector<16x8xf32> to vector<2x8x8xf32>
    %300 = vector.extract_strided_slice %215 {offsets = [0, 88], sizes = [16, 8], strides = [1, 1]} : vector<16x128xf32> to vector<16x8xf32>
    %301 = vector.shape_cast %300 : vector<16x8xf32> to vector<2x8x8xf32>
    "tpu.trace_start"() <{level = 10 : i32, message = "bqd,bkd->bqk"}> : () -> ()
    %cst_113 = arith.constant dense<0.000000e+00> : vector<2x8x8xf32>
    %302 = tpu.matmul %297, %299, %cst_113 {dimension_numbers = #tpu.dot_dimension_numbers<[2], [2], [1], [1], [0, 0, 0, 1, 1, 1], [0], [0]>} : vector<2x8x8xf32>, vector<2x8x8xf32>, vector<2x8x8xf32> -> vector<2x8x8xf32>
    "tpu.trace_stop"() : () -> ()
    %cst_114 = arith.constant 0.353553385 : f32
    %303 = vector.broadcast %cst_114 : f32 to vector<2x8x8xf32>
    %304 = arith.mulf %302, %303 : vector<2x8x8xf32>
    %305 = vector.broadcast %5 : vector<2x1x8xf32> to vector<2x8x8xf32>
    %306 = arith.addf %304, %305 : vector<2x8x8xf32>
    %cst_115 = arith.constant dense<0xFF800000> : vector<2x8xf32>
    %307 = vector.multi_reduction <maximumf>, %306, %cst_115 [2] : vector<2x8x8xf32> to vector<2x8xf32>
    %308 = vector.shape_cast %307 : vector<2x8xf32> to vector<2x8x1xf32>
    %309 = vector.broadcast %308 : vector<2x8x1xf32> to vector<2x8x8xf32>
    %310 = arith.subf %306, %309 : vector<2x8x8xf32>
    %311 = math.exp %310 : vector<2x8x8xf32>
    %cst_116 = arith.constant dense<0.000000e+00> : vector<2x8xf32>
    %312 = vector.multi_reduction <add>, %311, %cst_116 [2] : vector<2x8x8xf32> to vector<2x8xf32>
    %313 = vector.shape_cast %312 : vector<2x8xf32> to vector<2x8x1xf32>
    %314 = tpu.reciprocal %313 {approx = true} : vector<2x8x1xf32> -> vector<2x8x1xf32>
    %315 = vector.broadcast %314 : vector<2x8x1xf32> to vector<2x8x8xf32>
    %316 = arith.mulf %311, %315 : vector<2x8x8xf32>
    "tpu.trace_start"() <{level = 10 : i32, message = "bqk,bkd->bqd"}> : () -> ()
    %cst_117 = arith.constant dense<0.000000e+00> : vector<2x8x8xf32>
    %317 = tpu.matmul %316, %301, %cst_117 {dimension_numbers = #tpu.dot_dimension_numbers<[2], [1], [1], [2], [0, 0, 0, 1, 1, 2], [0], [0]>} : vector<2x8x8xf32>, vector<2x8x8xf32>, vector<2x8x8xf32> -> vector<2x8x8xf32>
    "tpu.trace_stop"() : () -> ()
    %318 = vector.shape_cast %317 : vector<2x8x8xf32> to vector<16x8xf32>
    %319 = vector.extract_strided_slice %210 {offsets = [3, 0, 0], sizes = [1, 8, 32], strides = [1, 1, 1]} : vector<4x8x32xf32> to vector<1x8x32xf32>
    %320 = vector.shape_cast %319 : vector<1x8x32xf32> to vector<8x32xf32>
    %cst_118 = arith.constant dense<0.000000e+00> : vector<16x32xf32>
    %321 = tpu.matmul %318, %320, %cst_118 {dimension_numbers = #tpu.dot_dimension_numbers<[1], [0], [0], [1], [0, 0, 1, 1], [], []>} : vector<16x8xf32>, vector<8x32xf32>, vector<16x32xf32> -> vector<16x32xf32>
    %322 = arith.addf %295, %321 : vector<16x32xf32>
    %323 = vector.broadcast %212 : vector<1x32xf32> to vector<16x32xf32>
    %324 = arith.addf %322, %323 : vector<16x32xf32>
    %325 = arith.addf %204, %324 : vector<16x32xf32>
    %c1_119 = arith.constant 1 : index
    %c0_120 = arith.constant 0 : index
    %c0_121 = arith.constant 0 : index
    %326 = vector.load %arg7[%c1_119, %c0_120, %c0_121] : memref<2x1x32xf32, #tpu.memory_space<vmem>>, vector<1x1x32xf32>
    %327 = vector.shape_cast %326 : vector<1x1x32xf32> to vector<1x32xf32>
    %c1_122 = arith.constant 1 : index
    %c0_123 = arith.constant 0 : index
    %c0_124 = arith.constant 0 : index
    %328 = vector.load %arg8[%c1_122, %c0_123, %c0_124] : memref<2x1x32xf32, #tpu.memory_space<vmem>>, vector<1x1x32xf32>
    %329 = vector.shape_cast %328 : vector<1x1x32xf32> to vector<1x32xf32>
    %cst_125 = arith.constant dense<0.000000e+00> : vector<16xf32>
    %330 = vector.multi_reduction <add>, %325, %cst_125 [1] : vector<16x32xf32> to vector<16xf32>
    %331 = vector.shape_cast %330 : vector<16xf32> to vector<16x1xf32>
    %cst_126 = arith.constant 3.200000e+01 : f32
    %332 = vector.broadcast %cst_126 : f32 to vector<16x1xf32>
    %333 = arith.divf %331, %332 : vector<16x1xf32>
    %334 = arith.mulf %325, %325 : vector<16x32xf32>
    %cst_127 = arith.constant dense<0.000000e+00> : vector<16xf32>
    %335 = vector.multi_reduction <add>, %334, %cst_127 [1] : vector<16x32xf32> to vector<16xf32>
    %336 = vector.shape_cast %335 : vector<16xf32> to vector<16x1xf32>
    %cst_128 = arith.constant 3.200000e+01 : f32
    %337 = vector.broadcast %cst_128 : f32 to vector<16x1xf32>
    %338 = arith.divf %336, %337 : vector<16x1xf32>
    %339 = arith.mulf %333, %333 : vector<16x1xf32>
    %340 = arith.subf %338, %339 : vector<16x1xf32>
    %341 = vector.broadcast %333 : vector<16x1xf32> to vector<16x32xf32>
    %342 = arith.subf %325, %341 : vector<16x32xf32>
    %cst_129 = arith.constant 9.99999974E-6 : f32
    %343 = vector.broadcast %cst_129 : f32 to vector<16x1xf32>
    %344 = arith.addf %340, %343 : vector<16x1xf32>
    %345 = math.rsqrt %344 : vector<16x1xf32>
    %346 = vector.broadcast %345 : vector<16x1xf32> to vector<16x32xf32>
    %347 = arith.mulf %342, %346 : vector<16x32xf32>
    %348 = vector.broadcast %327 : vector<1x32xf32> to vector<16x32xf32>
    %349 = arith.mulf %347, %348 : vector<16x32xf32>
    %350 = vector.broadcast %329 : vector<1x32xf32> to vector<16x32xf32>
    %351 = arith.addf %349, %350 : vector<16x32xf32>
    %c1_130 = arith.constant 1 : index
    %c0_131 = arith.constant 0 : index
    %c0_132 = arith.constant 0 : index
    %352 = vector.load %arg9[%c1_130, %c0_131, %c0_132] : memref<2x32x32xf32, #tpu.memory_space<vmem>>, vector<1x32x32xf32>
    %353 = vector.shape_cast %352 : vector<1x32x32xf32> to vector<32x32xf32>
    %cst_133 = arith.constant dense<0.000000e+00> : vector<16x32xf32>
    %354 = tpu.matmul %351, %353, %cst_133 {dimension_numbers = #tpu.dot_dimension_numbers<[1], [0], [0], [1], [0, 0, 1, 1], [], []>} : vector<16x32xf32>, vector<32x32xf32>, vector<16x32xf32> -> vector<16x32xf32>
    %c1_134 = arith.constant 1 : index
    %c0_135 = arith.constant 0 : index
    %c0_136 = arith.constant 0 : index
    %355 = vector.load %arg10[%c1_134, %c0_135, %c0_136] : memref<2x1x32xf32, #tpu.memory_space<vmem>>, vector<1x1x32xf32>
    %356 = vector.shape_cast %355 : vector<1x1x32xf32> to vector<1x32xf32>
    %357 = vector.broadcast %356 : vector<1x32xf32> to vector<16x32xf32>
    %358 = arith.addf %354, %357 : vector<16x32xf32>
    %cst_137 = arith.constant 0.000000e+00 : f32
    %359 = vector.broadcast %cst_137 : f32 to vector<16x32xf32>
    %360 = arith.maximumf %358, %359 : vector<16x32xf32>
    %c1_138 = arith.constant 1 : index
    %c0_139 = arith.constant 0 : index
    %c0_140 = arith.constant 0 : index
    %361 = vector.load %arg11[%c1_138, %c0_139, %c0_140] : memref<2x32x32xf32, #tpu.memory_space<vmem>>, vector<1x32x32xf32>
    %362 = vector.shape_cast %361 : vector<1x32x32xf32> to vector<32x32xf32>
    %cst_141 = arith.constant dense<0.000000e+00> : vector<16x32xf32>
    %363 = tpu.matmul %360, %362, %cst_141 {dimension_numbers = #tpu.dot_dimension_numbers<[1], [0], [0], [1], [0, 0, 1, 1], [], []>} : vector<16x32xf32>, vector<32x32xf32>, vector<16x32xf32> -> vector<16x32xf32>
    %c1_142 = arith.constant 1 : index
    %c0_143 = arith.constant 0 : index
    %c0_144 = arith.constant 0 : index
    %364 = vector.load %arg12[%c1_142, %c0_143, %c0_144] : memref<2x1x32xf32, #tpu.memory_space<vmem>>, vector<1x1x32xf32>
    %365 = vector.shape_cast %364 : vector<1x1x32xf32> to vector<1x32xf32>
    %366 = vector.broadcast %365 : vector<1x32xf32> to vector<16x32xf32>
    %367 = arith.addf %363, %366 : vector<16x32xf32>
    %368 = arith.addf %351, %367 : vector<16x32xf32>
    %c1_145 = arith.constant 1 : index
    %c0_146 = arith.constant 0 : index
    %c0_147 = arith.constant 0 : index
    %369 = vector.load %arg13[%c1_145, %c0_146, %c0_147] : memref<2x1x32xf32, #tpu.memory_space<vmem>>, vector<1x1x32xf32>
    %370 = vector.shape_cast %369 : vector<1x1x32xf32> to vector<1x32xf32>
    %c1_148 = arith.constant 1 : index
    %c0_149 = arith.constant 0 : index
    %c0_150 = arith.constant 0 : index
    %371 = vector.load %arg14[%c1_148, %c0_149, %c0_150] : memref<2x1x32xf32, #tpu.memory_space<vmem>>, vector<1x1x32xf32>
    %372 = vector.shape_cast %371 : vector<1x1x32xf32> to vector<1x32xf32>
    %cst_151 = arith.constant dense<0.000000e+00> : vector<16xf32>
    %373 = vector.multi_reduction <add>, %368, %cst_151 [1] : vector<16x32xf32> to vector<16xf32>
    %374 = vector.shape_cast %373 : vector<16xf32> to vector<16x1xf32>
    %cst_152 = arith.constant 3.200000e+01 : f32
    %375 = vector.broadcast %cst_152 : f32 to vector<16x1xf32>
    %376 = arith.divf %374, %375 : vector<16x1xf32>
    %377 = arith.mulf %368, %368 : vector<16x32xf32>
    %cst_153 = arith.constant dense<0.000000e+00> : vector<16xf32>
    %378 = vector.multi_reduction <add>, %377, %cst_153 [1] : vector<16x32xf32> to vector<16xf32>
    %379 = vector.shape_cast %378 : vector<16xf32> to vector<16x1xf32>
    %cst_154 = arith.constant 3.200000e+01 : f32
    %380 = vector.broadcast %cst_154 : f32 to vector<16x1xf32>
    %381 = arith.divf %379, %380 : vector<16x1xf32>
    %382 = arith.mulf %376, %376 : vector<16x1xf32>
    %383 = arith.subf %381, %382 : vector<16x1xf32>
    %384 = vector.broadcast %376 : vector<16x1xf32> to vector<16x32xf32>
    %385 = arith.subf %368, %384 : vector<16x32xf32>
    %cst_155 = arith.constant 9.99999974E-6 : f32
    %386 = vector.broadcast %cst_155 : f32 to vector<16x1xf32>
    %387 = arith.addf %383, %386 : vector<16x1xf32>
    %388 = math.rsqrt %387 : vector<16x1xf32>
    %389 = vector.broadcast %388 : vector<16x1xf32> to vector<16x32xf32>
    %390 = arith.mulf %385, %389 : vector<16x32xf32>
    %391 = vector.broadcast %370 : vector<1x32xf32> to vector<16x32xf32>
    %392 = arith.mulf %390, %391 : vector<16x32xf32>
    %393 = vector.broadcast %372 : vector<1x32xf32> to vector<16x32xf32>
    %394 = arith.addf %392, %393 : vector<16x32xf32>
    %c0_156 = arith.constant 0 : index
    %c0_157 = arith.constant 0 : index
    %395 = vector.load %arg15[%c0_156, %c0_157] : memref<32x32xf32, #tpu.memory_space<vmem>>, vector<32x32xf32>
    %cst_158 = arith.constant dense<0.000000e+00> : vector<16x32xf32>
    %396 = tpu.matmul %394, %395, %cst_158 {dimension_numbers = #tpu.dot_dimension_numbers<[1], [0], [0], [1], [0, 0, 1, 1], [], []>} : vector<16x32xf32>, vector<32x32xf32>, vector<16x32xf32> -> vector<16x32xf32>
    %c0_159 = arith.constant 0 : index
    %c0_160 = arith.constant 0 : index
    %397 = vector.load %arg16[%c0_159, %c0_160] : memref<1x32xf32, #tpu.memory_space<vmem>>, vector<1x32xf32>
    %398 = vector.broadcast %397 : vector<1x32xf32> to vector<16x32xf32>
    %399 = arith.addf %396, %398 : vector<16x32xf32>
    %cst_161 = arith.constant 0.000000e+00 : f32
    %400 = vector.broadcast %cst_161 : f32 to vector<16x32xf32>
    %401 = arith.cmpf ogt, %399, %400 : vector<16x32xf32>
    %cst_162 = arith.constant 1.000000e-01 : f32
    %402 = vector.broadcast %cst_162 : f32 to vector<16x32xf32>
    %403 = arith.mulf %402, %399 : vector<16x32xf32>
    %404 = arith.select %401, %399, %403 : vector<16x32xi1>, vector<16x32xf32>
    %c0_163 = arith.constant 0 : index
    %c0_164 = arith.constant 0 : index
    %405 = vector.load %arg17[%c0_163, %c0_164] : memref<32x128xf32, #tpu.memory_space<vmem>>, vector<32x128xf32>
    %cst_165 = arith.constant dense<0.000000e+00> : vector<16x128xf32>
    %406 = tpu.matmul %404, %405, %cst_165 {dimension_numbers = #tpu.dot_dimension_numbers<[1], [0], [0], [1], [0, 0, 1, 1], [], []>} : vector<16x32xf32>, vector<32x128xf32>, vector<16x128xf32> -> vector<16x128xf32>
    %c0_166 = arith.constant 0 : index
    %c0_167 = arith.constant 0 : index
    %407 = vector.load %arg18[%c0_166, %c0_167] : memref<1x128xf32, #tpu.memory_space<vmem>>, vector<1x128xf32>
    %408 = vector.broadcast %407 : vector<1x128xf32> to vector<16x128xf32>
    %409 = arith.addf %406, %408 : vector<16x128xf32>
    %cst_168 = arith.constant dense<0xFF800000> : vector<16xf32>
    %410 = vector.multi_reduction <maximumf>, %409, %cst_168 [1] : vector<16x128xf32> to vector<16xf32>
    %411 = vector.shape_cast %410 : vector<16xf32> to vector<16x1xf32>
    %412 = vector.broadcast %411 : vector<16x1xf32> to vector<16x128xf32>
    %413 = arith.subf %409, %412 : vector<16x128xf32>
    %414 = math.exp %413 : vector<16x128xf32>
    %cst_169 = arith.constant dense<0.000000e+00> : vector<16xf32>
    %415 = vector.multi_reduction <add>, %414, %cst_169 [1] : vector<16x128xf32> to vector<16xf32>
    %416 = vector.shape_cast %415 : vector<16xf32> to vector<16x1xf32>
    %417 = math.log %416 : vector<16x1xf32>
    %418 = vector.broadcast %417 : vector<16x1xf32> to vector<16x128xf32>
    %419 = arith.subf %413, %418 : vector<16x128xf32>
    %cst_170 = arith.constant 0.000000e+00 : f32
    %420 = vector.broadcast %cst_170 : f32 to vector<16x96xf32>
    %421 = tpu.concatenate %394, %420 in 1 : vector<16x32xf32>, vector<16x96xf32> -> vector<16x128xf32>
    %c0_171 = arith.constant 0 : index
    %c0_172 = arith.constant 0 : index
    %422 = vector.load %arg19[%c0_171, %c0_172] : memref<16x128xf32, #tpu.memory_space<vmem>>, vector<16x128xf32>
    tpu.vector_store %arg19[%c0_171, %c0_172], %421 {strides = array<i32>} : memref<16x128xf32, #tpu.memory_space<vmem>>, vector<16x128xf32>,
    %c0_173 = arith.constant 0 : index
    %c0_174 = arith.constant 0 : index
    %423 = vector.load %arg20[%c0_173, %c0_174] : memref<16x128xf32, #tpu.memory_space<vmem>>, vector<16x128xf32>
    tpu.vector_store %arg20[%c0_173, %c0_174], %419 {strides = array<i32>} : memref<16x128xf32, #tpu.memory_space<vmem>>, vector<16x128xf32>,
    return
  }
}

</mosaic_0001>

<llo_original>
// kernel: tpu_custom_call.1
$region0: #{tpu_custom_call.1}
  #allocation0 [shape = 'u32[]', space=smem, size = 0x4, offset = 0x4, fixed_abs, tag = 'smem constant byte address 0x4 - core index']
  #allocation1 [shape = 'u32[144,128]{1,0:T(1,128)}', space=vmem, size = 0x12000, scoped, tag = 'internal scratch']
  %s0 = inlined_call_operand.hbm [shape: f32[2,8,32], index: 0, kind: input, shape index: {}]
  %s1 = inlined_call_operand.hbm [shape: f32[2,8], index: 1, kind: input, shape index: {}]
  %s2 = inlined_call_operand.hbm [shape: f32[8,32], index: 2, kind: input, shape index: {}]
  %s3 = inlined_call_operand.hbm [shape: f32[2,32,128], index: 3, kind: input, shape index: {}]
  %s4 = inlined_call_operand.vmem [shape: f32[2,1,128], index: 4, kind: input, shape index: {}]
  %s5 = inlined_call_operand.hbm [shape: f32[2,4,8,32], index: 5, kind: input, shape index: {}]
  %s6 = inlined_call_operand.vmem [shape: f32[2,1,32], index: 6, kind: input, shape index: {}]
  %s7 = inlined_call_operand.vmem [shape: f32[2,1,32], index: 7, kind: input, shape index: {}]
  %s8 = inlined_call_operand.vmem [shape: f32[2,1,32], index: 8, kind: input, shape index: {}]
  %s9 = inlined_call_operand.hbm [shape: f32[2,32,32], index: 9, kind: input, shape index: {}]
  %s10 = inlined_call_operand.vmem [shape: f32[2,1,32], index: 10, kind: input, shape index: {}]
  %s11 = inlined_call_operand.hbm [shape: f32[2,32,32], index: 11, kind: input, shape index: {}]
  %s12 = inlined_call_operand.vmem [shape: f32[2,1,32], index: 12, kind: input, shape index: {}]
  %s13 = inlined_call_operand.vmem [shape: f32[2,1,32], index: 13, kind: input, shape index: {}]
  %s14 = inlined_call_operand.vmem [shape: f32[2,1,32], index: 14, kind: input, shape index: {}]
  %s15 = inlined_call_operand.hbm [shape: f32[32,32], index: 15, kind: input, shape index: {}]
  %s16 = inlined_call_operand.vmem [shape: f32[1,32], index: 16, kind: input, shape index: {}]
  %s17 = inlined_call_operand.hbm [shape: f32[32,128], index: 17, kind: input, shape index: {}]
  %s18 = inlined_call_operand.vmem [shape: f32[1,128], index: 18, kind: input, shape index: {}]
  %s19 = inlined_call_operand.hbm [shape: f32[16,128], index: 19, kind: output, shape index: {0}]
  %s20 = inlined_call_operand.hbm [shape: f32[16,128], index: 20, kind: output, shape index: {1}]
  %21 = xla_tuple %s19, %s20
  %s22 = sld [smem:[#allocation0]]
  $region130: #{tpu_custom_call.1} parent=0
    _
  %s24 = ssub.s32 1, %s22
  %s25 = scalar_select 0, %s24, %s22
  $region1: #{tpu_custom_call.1} parent=0
    #allocation2 [shape = 'u8[8192]{0}', space=vmem, size = 0x2000, scoped, tag = 'input window, operand 0, single buffered']
    #allocation3 [shape = 's32[1]{0}', space=sflag, size = 0x4, scoped, tag = 'scoped memory for tpu_custom_call.1']
    #allocation4 [shape = 's32[1]{0}', space=sflag, size = 0x4, scoped, tag = 'scoped memory for tpu_custom_call.1']
    #allocation5 [shape = 'u8[1024]{0}', space=vmem, size = 0x400, scoped, tag = 'input window, operand 1, single buffered']
    #allocation6 [shape = 's32[1]{0}', space=sflag, size = 0x4, scoped, tag = 'scoped memory for tpu_custom_call.1']
    #allocation7 [shape = 'u8[4096]{0}', space=vmem, size = 0x1000, scoped, tag = 'input window, operand 2, single buffered']
    #allocation8 [shape = 'u8[32768]{0}', space=vmem, size = 0x8000, scoped, tag = 'input window, operand 3, single buffered']
    #allocation9 [shape = 's32[1]{0}', space=sflag, size = 0x4, scoped, tag = 'scoped memory for tpu_custom_call.1']
    #allocation10 [shape = 'u8[32768]{0}', space=vmem, size = 0x8000, scoped, tag = 'input window, operand 5, single buffered']
    #allocation11 [shape = 'u8[32768]{0}', space=vmem, size = 0x8000, scoped, tag = 'input window, operand 9, single buffered']
    #allocation12 [shape = 's32[1]{0}', space=sflag, size = 0x4, scoped, tag = 'scoped memory for tpu_custom_call.1']
    #allocation13 [shape = 'u8[32768]{0}', space=vmem, size = 0x8000, scoped, tag = 'input window, operand 11, single buffered']
    #allocation14 [shape = 'u8[16384]{0}', space=vmem, size = 0x4000, scoped, tag = 'input window, operand 15, single buffered']
    #allocation15 [shape = 's32[1]{0}', space=sflag, size = 0x4, scoped, tag = 'scoped memory for tpu_custom_call.1']
    #allocation16 [shape = 'u8[16384]{0}', space=vmem, size = 0x4000, scoped, tag = 'input window, operand 17, single buffered']
    #allocation17 [shape = 'u8[8192]{0}', space=vmem, size = 0x2000, scoped, tag = 'output window, operand 0, single buffered']
    #allocation18 [shape = 'u8[8192]{0}', space=vmem, size = 0x2000, scoped, tag = 'output window, operand 1, single buffered']
    #allocation19 [shape = 's32[1]{0}', space=sflag, size = 0x4, scoped, tag = 'scoped memory for tpu_custom_call.1']
    %26 = vsyncpa [#allocation3], 0
    %27 = vsyncpa [#allocation6], 0
    %28 = vsyncpa [#allocation9], 0
    %29 = vsyncpa [#allocation12], 0
    %30 = vsyncpa [#allocation15], 0
    %31 = vsyncpa [#allocation4], 0
    %32 = vsyncpa [#allocation19], 0
    // Predicated region
    $region2: #{tpu_custom_call.1} parent=1 // pred_check
      _
    $region3: #{tpu_custom_call.1} parent=1 // pred_check_branch
      %34 = sbr.rel (0) target = $region5
    $region4: #{tpu_custom_call.1} parent=1 // pred_region
      %s36 = ssub.s32 256, 256
      %37 = vsyncadd [#allocation3], %s36
      %s38 = sshll.u32 [#allocation2], 4
      %s39 = int_to_ptr.vmem [resolvable:$true] %s38
      %44 = dma.hbm_to_vmem [thread:$0]  %s0, 256, %s39, [#allocation3], 128, 128, 8
    $region5: #{tpu_custom_call.1} parent=1 // pred_fallthru
      _
    // Predicated region
    $region6: #{tpu_custom_call.1} parent=1 // pred_check
      _
    $region7: #{tpu_custom_call.1} parent=1 // pred_check_branch
      %46 = sbr.rel (0) target = $region9
    $region8: #{tpu_custom_call.1} parent=1 // pred_region
      %s48 = ssub.s32 32, 32
      %49 = vsyncadd [#allocation6], %s48
      %s51 = sshll.u32 [#allocation5], 4
      %s52 = int_to_ptr.vmem [resolvable:$true] %s51
      %54 = dma.hbm_to_vmem [thread:$0]  %s1, 32, %s52, [#allocation6]
    $region9: #{tpu_custom_call.1} parent=1 // pred_fallthru
      _
    // Predicated region
    $region10: #{tpu_custom_call.1} parent=1 // pred_check
      _
    $region11: #{tpu_custom_call.1} parent=1 // pred_check_branch
      %56 = sbr.rel (0) target = $region13
    $region12: #{tpu_custom_call.1} parent=1 // pred_region
      %s58 = ssub.s32 128, 128
      %59 = vsyncadd [#allocation6], %s58
      %s61 = sshll.u32 [#allocation7], 4
      %s62 = int_to_ptr.vmem [resolvable:$true] %s61
      %64 = dma.hbm_to_vmem [thread:$0]  %s2, 128, %s62, [#allocation6]
    $region13: #{tpu_custom_call.1} parent=1 // pred_fallthru
      _
    // Predicated region
    $region14: #{tpu_custom_call.1} parent=1 // pred_check
      _
    $region15: #{tpu_custom_call.1} parent=1 // pred_check_branch
      %66 = sbr.rel (0) target = $region17
    $region16: #{tpu_custom_call.1} parent=1 // pred_region
      %s68 = ssub.s32 1024, 1024
      %69 = vsyncadd [#allocation9], %s68
      %s70 = sshll.u32 [#allocation8], 4
      %s71 = int_to_ptr.vmem [resolvable:$true] %s70
      %76 = dma.hbm_to_vmem [thread:$0]  %s3, 1024, %s71, [#allocation9], 128, 128, 8
    $region17: #{tpu_custom_call.1} parent=1 // pred_fallthru
      _
    // Predicated region
    $region18: #{tpu_custom_call.1} parent=1 // pred_check
      _
    $region19: #{tpu_custom_call.1} parent=1 // pred_check_branch
      %78 = sbr.rel (0) target = $region21
    $region20: #{tpu_custom_call.1} parent=1 // pred_region
      _
    $region21: #{tpu_custom_call.1} parent=1 // pred_fallthru
      _
    // Predicated region
    $region22: #{tpu_custom_call.1} parent=1 // pred_check
      _
    $region23: #{tpu_custom_call.1} parent=1 // pred_check_branch
      %80 = sbr.rel (0) target = $region25
    $region24: #{tpu_custom_call.1} parent=1 // pred_region
      %s82 = ssub.s32 1024, 1024
      %83 = vsyncadd [#allocation9], %s82
      %s84 = sshll.u32 [#allocation10], 4
      %s85 = int_to_ptr.vmem [resolvable:$true] %s84
      %90 = dma.hbm_to_vmem [thread:$0]  %s5, 1024, %s85, [#allocation9], 128, 128, 8
    $region25: #{tpu_custom_call.1} parent=1 // pred_fallthru
      _
    // Predicated region
    $region26: #{tpu_custom_call.1} parent=1 // pred_check
      _
    $region27: #{tpu_custom_call.1} parent=1 // pred_check_branch
      %92 = sbr.rel (0) target = $region29
    $region28: #{tpu_custom_call.1} parent=1 // pred_region
      _
    $region29: #{tpu_custom_call.1} parent=1 // pred_fallthru
      _
    // Predicated region
    $region30: #{tpu_custom_call.1} parent=1 // pred_check
      _
    $region31: #{tpu_custom_call.1} parent=1 // pred_check_branch
      %94 = sbr.rel (0) target = $region33
    $region32: #{tpu_custom_call.1} parent=1 // pred_region
      _
    $region33: #{tpu_custom_call.1} parent=1 // pred_fallthru
      _
    // Predicated region
    $region34: #{tpu_custom_call.1} parent=1 // pred_check
      _
    $region35: #{tpu_custom_call.1} parent=1 // pred_check_branch
      %96 = sbr.rel (0) target = $region37
    $region36: #{tpu_custom_call.1} parent=1 // pred_region
      _
    $region37: #{tpu_custom_call.1} parent=1 // pred_fallthru
      _
    // Predicated region
    $region38: #{tpu_custom_call.1} parent=1 // pred_check
      _
    $region39: #{tpu_custom_call.1} parent=1 // pred_check_branch
      %98 = sbr.rel (0) target = $region41
    $region40: #{tpu_custom_call.1} parent=1 // pred_region
      %s100 = ssub.s32 1024, 1024
      %101 = vsyncadd [#allocation12], %s100
      %s102 = sshll.u32 [#allocation11], 4
      %s103 = int_to_ptr.vmem [resolvable:$true] %s102
      %108 = dma.hbm_to_vmem [thread:$0]  %s9, 1024, %s103, [#allocation12], 128, 128, 8
    $region41: #{tpu_custom_call.1} parent=1 // pred_fallthru
      _
    // Predicated region
    $region42: #{tpu_custom_call.1} parent=1 // pred_check
      _
    $region43: #{tpu_custom_call.1} parent=1 // pred_check_branch
      %110 = sbr.rel (0) target = $region45
    $region44: #{tpu_custom_call.1} parent=1 // pred_region
      _
    $region45: #{tpu_custom_call.1} parent=1 // pred_fallthru
      _
    // Predicated region
    $region46: #{tpu_custom_call.1} parent=1 // pred_check
      _
    $region47: #{tpu_custom_call.1} parent=1 // pred_check_branch
      %112 = sbr.rel (0) target = $region49
    $region48: #{tpu_custom_call.1} parent=1 // pred_region
      %s114 = ssub.s32 1024, 1024
      %115 = vsyncadd [#allocation12], %s114
      %s116 = sshll.u32 [#allocation13], 4
      %s117 = int_to_ptr.vmem [resolvable:$true] %s116
      %122 = dma.hbm_to_vmem [thread:$0]  %s11, 1024, %s117, [#allocation12], 128, 128, 8
    $region49: #{tpu_custom_call.1} parent=1 // pred_fallthru
      _
    // Predicated region
    $region50: #{tpu_custom_call.1} parent=1 // pred_check
      _
    $region51: #{tpu_custom_call.1} parent=1 // pred_check_branch
      %124 = sbr.rel (0) target = $region53
    $region52: #{tpu_custom_call.1} parent=1 // pred_region
      _
    $region53: #{tpu_custom_call.1} parent=1 // pred_fallthru
      _
    // Predicated region
    $region54: #{tpu_custom_call.1} parent=1 // pred_check
      _
    $region55: #{tpu_custom_call.1} parent=1 // pred_check_branch
      %126 = sbr.rel (0) target = $region57
    $region56: #{tpu_custom_call.1} parent=1 // pred_region
      _
    $region57: #{tpu_custom_call.1} parent=1 // pred_fallthru
      _
    // Predicated region
    $region58: #{tpu_custom_call.1} parent=1 // pred_check
      _
    $region59: #{tpu_custom_call.1} parent=1 // pred_check_branch
      %128 = sbr.rel (0) target = $region61
    $region60: #{tpu_custom_call.1} parent=1 // pred_region
      _
    $region61: #{tpu_custom_call.1} parent=1 // pred_fallthru
      _
    // Predicated region
    $region62: #{tpu_custom_call.1} parent=1 // pred_check
      _
    $region63: #{tpu_custom_call.1} parent=1 // pred_check_branch
      %130 = sbr.rel (0) target = $region65
    $region64: #{tpu_custom_call.1} parent=1 // pred_region
      %s132 = ssub.s32 512, 512
      %133 = vsyncadd [#allocation15], %s132
      %s134 = sshll.u32 [#allocation14], 4
      %s135 = int_to_ptr.vmem [resolvable:$true] %s134
      %140 = dma.hbm_to_vmem [thread:$0]  %s15, 512, %s135, [#allocation15], 128, 128, 8
    $region65: #{tpu_custom_call.1} parent=1 // pred_fallthru
      _
    // Predicated region
    $region66: #{tpu_custom_call.1} parent=1 // pred_check
      _
    $region67: #{tpu_custom_call.1} parent=1 // pred_check_branch
      %142 = sbr.rel (0) target = $region69
    $region68: #{tpu_custom_call.1} parent=1 // pred_region
      _
    $region69: #{tpu_custom_call.1} parent=1 // pred_fallthru
      _
    // Predicated region
    $region70: #{tpu_custom_call.1} parent=1 // pred_check
      _
    $region71: #{tpu_custom_call.1} parent=1 // pred_check_branch
      %144 = sbr.rel (0) target = $region73
    $region72: #{tpu_custom_call.1} parent=1 // pred_region
      %s146 = ssub.s32 512, 512
      %147 = vsyncadd [#allocation15], %s146
      %s148 = sshll.u32 [#allocation16], 4
      %s149 = int_to_ptr.vmem [resolvable:$true] %s148
      %154 = dma.hbm_to_vmem [thread:$0]  %s17, 512, %s149, [#allocation15], 128, 128, 8
    $region73: #{tpu_custom_call.1} parent=1 // pred_fallthru
      _
    // Predicated region
    $region74: #{tpu_custom_call.1} parent=1 // pred_check
      _
    $region75: #{tpu_custom_call.1} parent=1 // pred_check_branch
      %156 = sbr.rel (0) target = $region77
    $region76: #{tpu_custom_call.1} parent=1 // pred_region
      _
    $region77: #{tpu_custom_call.1} parent=1 // pred_fallthru
      _
    // Predicated region
    $region78: #{tpu_custom_call.1} parent=1 // pred_check
      _
    $region79: #{tpu_custom_call.1} parent=1 // pred_check_branch
      %158 = sbr.rel (0) target = $region81
    $region80: #{tpu_custom_call.1} parent=1 // pred_region
      %159 = dma.done [#allocation3], 256
    $region81: #{tpu_custom_call.1} parent=1 // pred_fallthru
      _
    // Predicated region
    $region82: #{tpu_custom_call.1} parent=1 // pred_check
      _
    $region83: #{tpu_custom_call.1} parent=1 // pred_check_branch
      %161 = sbr.rel (0) target = $region85
    $region84: #{tpu_custom_call.1} parent=1 // pred_region
      %162 = dma.done [#allocation6], 32
    $region85: #{tpu_custom_call.1} parent=1 // pred_fallthru
      _
    // Predicated region
    $region86: #{tpu_custom_call.1} parent=1 // pred_check
      _
    $region87: #{tpu_custom_call.1} parent=1 // pred_check_branch
      %164 = sbr.rel (0) target = $region89
    $region88: #{tpu_custom_call.1} parent=1 // pred_region
      %165 = dma.done [#allocation6], 128
    $region89: #{tpu_custom_call.1} parent=1 // pred_fallthru
      _
    // Predicated region
    $region90: #{tpu_custom_call.1} parent=1 // pred_check
      _
    $region91: #{tpu_custom_call.1} parent=1 // pred_check_branch
      %167 = sbr.rel (0) target = $region93
    $region92: #{tpu_custom_call.1} parent=1 // pred_region
      %168 = dma.done [#allocation9], 1024
    $region93: #{tpu_custom_call.1} parent=1 // pred_fallthru
      _
    // Predicated region
    $region94: #{tpu_custom_call.1} parent=1 // pred_check
      _
    $region95: #{tpu_custom_call.1} parent=1 // pred_check_branch
      %170 = sbr.rel (0) target = $region97
    $region96: #{tpu_custom_call.1} parent=1 // pred_region
      %171 = dma.done [#allocation9], 1024
    $region97: #{tpu_custom_call.1} parent=1 // pred_fallthru
      _
    // Predicated region
    $region98: #{tpu_custom_call.1} parent=1 // pred_check
      _
    $region99: #{tpu_custom_call.1} parent=1 // pred_check_branch
      %173 = sbr.rel (0) target = $region101
    $region100: #{tpu_custom_call.1} parent=1 // pred_region
      %174 = dma.done [#allocation12], 1024
    $region101: #{tpu_custom_call.1} parent=1 // pred_fallthru
      _
    // Predicated region
    $region102: #{tpu_custom_call.1} parent=1 // pred_check
      _
    $region103: #{tpu_custom_call.1} parent=1 // pred_check_branch
      %176 = sbr.rel (0) target = $region105
    $region104: #{tpu_custom_call.1} parent=1 // pred_region
      %177 = dma.done [#allocation12], 1024
    $region105: #{tpu_custom_call.1} parent=1 // pred_fallthru
      _
    // Predicated region
    $region106: #{tpu_custom_call.1} parent=1 // pred_check
      _
    $region107: #{tpu_custom_call.1} parent=1 // pred_check_branch
      %179 = sbr.rel (0) target = $region109
    $region108: #{tpu_custom_call.1} parent=1 // pred_region
      %180 = dma.done [#allocation15], 512
    $region109: #{tpu_custom_call.1} parent=1 // pred_fallthru
      _
    // Predicated region
    $region110: #{tpu_custom_call.1} parent=1 // pred_check
      _
    $region111: #{tpu_custom_call.1} parent=1 // pred_check_branch
      %182 = sbr.rel (0) target = $region113
    $region112: #{tpu_custom_call.1} parent=1 // pred_region
      %183 = dma.done [#allocation15], 512
    $region113: #{tpu_custom_call.1} parent=1 // pred_fallthru
      _
    %v184 = vld [vmem:[#allocation5] sm:$0x3]
    %v185 = vsub.f32 1.0, %v184
    %v186 = vmul.f32 %v184, -1e+09
    %v189 = vunpack.c.l.s4 1966171168
    %v190 = vunpack.c.0.s8 %v189
    %v191 = vlaneseq
    %v192 = vshrl.u32 %v191, 7
    %v193 = vsub.s32 %v190, %v192
    %v194 = vrot.slane %v186, %v193
    %v195 = vcombine.high %v194, %v194
    %v197 = vunpack.c.l.s4 1966171168
    %v198 = vunpack.c.0.s8 %v197
    %v199 = vlaneseq
    %v200 = vshrl.u32 %v199, 7
    %v201 = vsub.s32 %v198, %v200
    %v202 = vrot.slane %v194, %v201
    %v204 = vunpack.c.l.s4 1966171168
    %v205 = vunpack.c.0.s8 %v204
    %v206 = vlaneseq
    %v207 = vshrl.u32 %v206, 7
    %v208 = vsub.s32 %v205, %v207
    %v209 = vrot.slane %v195, %v208
    %v210 = vld [vmem:[#allocation2] sm:$0xff]
    %v211 = vld [vmem:[#allocation2 + $0x8] sm:$0xff]
    %v212 = vlaneseq
    %v213 = vshrl.u32 %v212, 7
    %v214 = vsub.s32 0, %v213
    %v215 = vrot.slane %v185, %v214
    %217 = vbcast.lane.b32.xlu0 %v215, 256
    %v218 = vpop.permute.xlu0 %217
    %v219 = vlaneseq
    %v220 = vshrl.u32 %v219, 7
    %v221 = vsub.s32 1, %v220
    %v222 = vrot.slane %v185, %v221
    %224 = vbcast.lane.b32.xlu0 %v222, 256
    %v225 = vpop.permute.xlu0 %224
    %v226 = vmul.f32 %v210, %v218
    %v227 = vmul.f32 %v211, %v225
    %v228 = vld [vmem:[#allocation7] sm:$0xff]
    %v229 = vadd.f32 %v226, %v228
    %v230 = vadd.f32 %v227, %v228
    %v231 = vld [vmem:[#allocation8] sm:$0xff]
    %v232 = vld [vmem:[#allocation8 + $0x8] sm:$0xff]
    %v233 = vld [vmem:[#allocation8 + $0x10] sm:$0xff]
    %v234 = vld [vmem:[#allocation8 + $0x18] sm:$0xff]
    %v235 = vld [vmem:[%s4] sm:$0x1]
    %v236 = vld [vmem:[#allocation10] sm:$0xff]
    %v237 = vld [vmem:[#allocation10 + $0x8] sm:$0xff]
    %v238 = vld [vmem:[#allocation10 + $0x10] sm:$0xff]
    %v239 = vld [vmem:[#allocation10 + $0x18] sm:$0xff]
    %v240 = vld [vmem:[%s6] sm:$0x1]
    %v242 = vlaneseq
    %v243 = vshrl.u32 %v242, 7
    %v244 = vsub.s32 0, %v243
    %v245 = vrot.slane %v235, %v244
    %vm247 = vcmask 261120
    %v249 = vsel %vm247, %v229, 0
    %v252 = vsel %vm247, %v230, 0
    %254 = vmatprep.subr.mxu0 0.0
    %255 = vmatpush1.msra.mxu0 0.0
    %256 = vmatprep.subr.mxu0 0.0
    %257 = vmatpush1.msra.mxu0 0.0
    %258 = vmatprep.subr.mxu0 0.0
    %259 = vmatpush1.msra.mxu0 0.0
    %260 = vmatprep.subr.mxu0 0.0
    %261 = vmatpush1.msra.mxu0 0.0
    %262 = vmatprep.subr.mxu0 0.0
    %263 = vmatpush1.msra.mxu0 0.0
    %264 = vmatprep.subr.mxu0 0.0
    %265 = vmatpush1.msra.mxu0 0.0
    %266 = vmatprep.subr.mxu0 0.0
    %267 = vmatpush1.msra.mxu0 0.0
    %268 = vmatprep.subr.mxu0 0.0
    %269 = vmatpush1.msra.mxu0 0.0
    %270 = vmatprep.subr.mxu0 0.0
    %271 = vmatpush1.msra.mxu0 0.0
    %272 = vmatprep.subr.mxu0 0.0
    %273 = vmatpush1.msra.mxu0 0.0
    %274 = vmatprep.subr.mxu0 0.0
    %275 = vmatpush1.msra.mxu0 0.0
    %276 = vmatprep.subr.mxu0 0.0
    %277 = vmatpush1.msra.mxu0 0.0
    %278 = vmatprep.subr.mxu0 0.0
    %279 = vmatpush1.msra.mxu0 %v234
    %280 = vmatprep.subr.mxu0 0.0
    %281 = vmatpush1.msra.mxu0 %v233
    %282 = vmatprep.subr.mxu0 0.0
    %283 = vmatpush1.msra.mxu0 %v232
    %284 = vmatprep.subr.mxu0 0.0
    %285 = vmatpush1.msra.mxu0 %v231
    %286 = vmatprep.subr.mxu0 0.0
    %287 = vmatpush2.msra.mxu0 0.0
    %288 = vmatprep.subr.mxu0 0.0
    %289 = vmatpush2.msra.mxu0 0.0
    %290 = vmatprep.subr.mxu0 0.0
    %291 = vmatpush2.msra.mxu0 0.0
    %292 = vmatprep.subr.mxu0 0.0
    %293 = vmatpush2.msra.mxu0 0.0
    %294 = vmatprep.subr.mxu0 0.0
    %295 = vmatpush2.msra.mxu0 0.0
    %296 = vmatprep.subr.mxu0 0.0
    %297 = vmatpush2.msra.mxu0 0.0
    %298 = vmatprep.subr.mxu0 0.0
    %299 = vmatpush2.msra.mxu0 0.0
    %300 = vmatprep.subr.mxu0 0.0
    %301 = vmatpush2.msra.mxu0 0.0
    %302 = vmatprep.subr.mxu0 0.0
    %303 = vmatpush2.msra.mxu0 0.0
    %304 = vmatprep.subr.mxu0 0.0
    %305 = vmatpush2.msra.mxu0 0.0
    %306 = vmatprep.subr.mxu0 0.0
    %307 = vmatpush2.msra.mxu0 0.0
    %308 = vmatprep.subr.mxu0 0.0
    %309 = vmatpush2.msra.mxu0 0.0
    %310 = vmatprep.subr.mxu0 0.0
    %311 = vmatpush2.msra.mxu0 0.0
    %312 = vmatprep.subr.mxu0 0.0
    %313 = vmatpush2.msra.mxu0 0.0
    %314 = vmatprep.subr.mxu0 0.0
    %315 = vmatpush2.msra.mxu0 0.0
    %316 = vmatprep.subr.mxu0 0.0
    %317 = vmatpush2.msra.mxu0 0.0
    %318 = vmatprep.mubr.f32.mxu0 0.0
    %319 = vmatmul.mubr.f32.gmra.mxu0 %v249
    %v320 = vpop.f32.mrf.mxu0
    %v321 = vadd.f32 %v245, %v320
    %v322 = vpop.f32.mrf.mxu0
    %323 = vmatprep.mubr.f32.mxu0 0.0
    %324 = vmatmul.mubr.f32.gmra.mxu0 %v252
    %v325 = vpop.f32.mrf.mxu0
    %v326 = vadd.f32 %v245, %v325
    %v327 = vpop.f32.mrf.mxu0
    %328 = vdwg.mxu0
    %330 = vrot.lane.b32.xlu0 %v321, 96
    %v331 = vpop.permute.xlu0 %330
    %vm332 = vcmask 64512
    %v333 = vsel %vm332, %v321, 0
    %v335 = vsel %vm332, %v331, 0
    %337 = vmatprep.subr.mxu0 0.0
    %338 = vmatpush1.xpose.msra.mxu0 0.0
    %339 = vmatprep.subr.mxu0 0.0
    %340 = vmatpush1.xpose.msra.mxu0 0.0
    %341 = vmatprep.subr.mxu0 0.0
    %342 = vmatpush1.xpose.msra.mxu0 0.0
    %343 = vmatprep.subr.mxu0 0.0
    %344 = vmatpush1.xpose.msra.mxu0 0.0
    %345 = vmatprep.subr.mxu0 0.0
    %346 = vmatpush1.xpose.msra.mxu0 0.0
    %347 = vmatprep.subr.mxu0 0.0
    %348 = vmatpush1.xpose.msra.mxu0 0.0
    %349 = vmatprep.subr.mxu0 0.0
    %350 = vmatpush1.xpose.msra.mxu0 0.0
    %351 = vmatprep.subr.mxu0 0.0
    %352 = vmatpush1.xpose.msra.mxu0 0.0
    %353 = vmatprep.subr.mxu0 0.0
    %354 = vmatpush1.xpose.msra.mxu0 0.0
    %355 = vmatprep.subr.mxu0 0.0
    %356 = vmatpush1.xpose.msra.mxu0 0.0
    %357 = vmatprep.subr.mxu0 0.0
    %358 = vmatpush1.xpose.msra.mxu0 0.0
    %359 = vmatprep.subr.mxu0 0.0
    %360 = vmatpush1.xpose.msra.mxu0 0.0
    %361 = vmatprep.subr.mxu0 0.0
    %362 = vmatpush1.xpose.msra.mxu0 0.0
    %363 = vmatprep.subr.mxu0 0.0
    %364 = vmatpush1.xpose.msra.mxu0 0.0
    %365 = vmatprep.subr.mxu0 0.0
    %366 = vmatpush1.xpose.msra.mxu0 0.0
    %367 = vmatprep.subr.mxu0 0.0
    %368 = vmatpush1.xpose.msra.mxu0 %v335
    %369 = vmatprep.subr.mxu0 0.0
    %370 = vmatpush2.xpose.msra.mxu0 0.0
    %371 = vmatprep.subr.mxu0 0.0
    %372 = vmatpush2.xpose.msra.mxu0 0.0
    %373 = vmatprep.subr.mxu0 0.0
    %374 = vmatpush2.xpose.msra.mxu0 0.0
    %375 = vmatprep.subr.mxu0 0.0
    %376 = vmatpush2.xpose.msra.mxu0 0.0
    %377 = vmatprep.subr.mxu0 0.0
    %378 = vmatpush2.xpose.msra.mxu0 0.0
    %379 = vmatprep.subr.mxu0 0.0
    %380 = vmatpush2.xpose.msra.mxu0 0.0
    %381 = vmatprep.subr.mxu0 0.0
    %382 = vmatpush2.xpose.msra.mxu0 0.0
    %383 = vmatprep.subr.mxu0 0.0
    %384 = vmatpush2.xpose.msra.mxu0 0.0
    %385 = vmatprep.subr.mxu0 0.0
    %386 = vmatpush2.xpose.msra.mxu0 0.0
    %387 = vmatprep.subr.mxu0 0.0
    %388 = vmatpush2.xpose.msra.mxu0 0.0
    %389 = vmatprep.subr.mxu0 0.0
    %390 = vmatpush2.xpose.msra.mxu0 0.0
    %391 = vmatprep.subr.mxu0 0.0
    %392 = vmatpush2.xpose.msra.mxu0 0.0
    %393 = vmatprep.subr.mxu0 0.0
    %394 = vmatpush2.xpose.msra.mxu0 0.0
    %395 = vmatprep.subr.mxu0 0.0
    %396 = vmatpush2.xpose.msra.mxu0 0.0
    %397 = vmatprep.subr.mxu0 0.0
    %398 = vmatpush2.xpose.msra.mxu0 0.0
    %399 = vmatprep.subr.mxu0 0.0
    %400 = vmatpush2.xpose.msra.mxu0 0.0
    %401 = vmatprep.mubr.f32.mxu0 0.0
    %402 = vmatmul.mubr.f32.gmra.mxu0 %v333
    %v403 = vpop.f32.mrf.mxu0
    %v404 = vadd.f32 0.0, %v403
    %v405 = vpop.f32.mrf.mxu0
    %406 = vdwg.mxu0
    %408 = vrot.lane.b32.xlu0 %v326, 96
    %v409 = vpop.permute.xlu0 %408
    %v410 = vsel %vm332, %v326, 0
    %v412 = vsel %vm332, %v409, 0
    %414 = vmatprep.subr.mxu0 0.0
    %415 = vmatpush1.xpose.msra.mxu0 0.0
    %416 = vmatprep.subr.mxu0 0.0
    %417 = vmatpush1.xpose.msra.mxu0 0.0
    %418 = vmatprep.subr.mxu0 0.0
    %419 = vmatpush1.xpose.msra.mxu0 0.0
    %420 = vmatprep.subr.mxu0 0.0
    %421 = vmatpush1.xpose.msra.mxu0 0.0
    %422 = vmatprep.subr.mxu0 0.0
    %423 = vmatpush1.xpose.msra.mxu0 0.0
    %424 = vmatprep.subr.mxu0 0.0
    %425 = vmatpush1.xpose.msra.mxu0 0.0
    %426 = vmatprep.subr.mxu0 0.0
    %427 = vmatpush1.xpose.msra.mxu0 0.0
    %428 = vmatprep.subr.mxu0 0.0
    %429 = vmatpush1.xpose.msra.mxu0 0.0
    %430 = vmatprep.subr.mxu0 0.0
    %431 = vmatpush1.xpose.msra.mxu0 0.0
    %432 = vmatprep.subr.mxu0 0.0
    %433 = vmatpush1.xpose.msra.mxu0 0.0
    %434 = vmatprep.subr.mxu0 0.0
    %435 = vmatpush1.xpose.msra.mxu0 0.0
    %436 = vmatprep.subr.mxu0 0.0
    %437 = vmatpush1.xpose.msra.mxu0 0.0
    %438 = vmatprep.subr.mxu0 0.0
    %439 = vmatpush1.xpose.msra.mxu0 0.0
    %440 = vmatprep.subr.mxu0 0.0
    %441 = vmatpush1.xpose.msra.mxu0 0.0
    %442 = vmatprep.subr.mxu0 0.0
    %443 = vmatpush1.xpose.msra.mxu0 0.0
    %444 = vmatprep.subr.mxu0 0.0
    %445 = vmatpush1.xpose.msra.mxu0 %v412
    %446 = vmatprep.subr.mxu0 0.0
    %447 = vmatpush2.xpose.msra.mxu0 0.0
    %448 = vmatprep.subr.mxu0 0.0
    %449 = vmatpush2.xpose.msra.mxu0 0.0
    %450 = vmatprep.subr.mxu0 0.0
    %451 = vmatpush2.xpose.msra.mxu0 0.0
    %452 = vmatprep.subr.mxu0 0.0
    %453 = vmatpush2.xpose.msra.mxu0 0.0
    %454 = vmatprep.subr.mxu0 0.0
    %455 = vmatpush2.xpose.msra.mxu0 0.0
    %456 = vmatprep.subr.mxu0 0.0
    %457 = vmatpush2.xpose.msra.mxu0 0.0
    %458 = vmatprep.subr.mxu0 0.0
    %459 = vmatpush2.xpose.msra.mxu0 0.0
    %460 = vmatprep.subr.mxu0 0.0
    %461 = vmatpush2.xpose.msra.mxu0 0.0
    %462 = vmatprep.subr.mxu0 0.0
    %463 = vmatpush2.xpose.msra.mxu0 0.0
    %464 = vmatprep.subr.mxu0 0.0
    %465 = vmatpush2.xpose.msra.mxu0 0.0
    %466 = vmatprep.subr.mxu0 0.0
    %467 = vmatpush2.xpose.msra.mxu0 0.0
    %468 = vmatprep.subr.mxu0 0.0
    %469 = vmatpush2.xpose.msra.mxu0 0.0
    %470 = vmatprep.subr.mxu0 0.0
    %471 = vmatpush2.xpose.msra.mxu0 0.0
    %472 = vmatprep.subr.mxu0 0.0
    %473 = vmatpush2.xpose.msra.mxu0 0.0
    %474 = vmatprep.subr.mxu0 0.0
    %475 = vmatpush2.xpose.msra.mxu0 0.0
    %476 = vmatprep.subr.mxu0 0.0
    %477 = vmatpush2.xpose.msra.mxu0 0.0
    %478 = vmatprep.mubr.f32.mxu0 0.0
    %479 = vmatmul.mubr.f32.gmra.mxu0 %v410
    %v480 = vpop.f32.mrf.mxu0
    %v481 = vadd.f32 0.0, %v480
    %v482 = vpop.f32.mrf.mxu0
    %483 = vdwg.mxu0
    %v484 = vmul.f32 %v404, 0.35355338
    %v485 = vmul.f32 %v481, 0.35355338
    %v486 = vlaneseq
    %v487 = vshrl.u32 %v486, 7
    %v488 = vsub.s32 0, %v487
    %v489 = vrot.slane %v202, %v488
    %v490 = vlaneseq
    %v491 = vshrl.u32 %v490, 7
    %v492 = vsub.s32 0, %v491
    %v493 = vrot.slane %v209, %v492
    %v496 = vadd.f32 %v484, %v489
    %v497 = vadd.f32 %v485, %v493
    %v498 = vsel %vm332, %v496, -inf
    %499 = vmax.xlane.f32.xlu0 %v498
    %v500 = vpop.xlane.xlu0 %499
    %v501 = vsel %vm332, %v497, -inf
    %502 = vmax.xlane.f32.xlu0 %v501
    %v503 = vpop.xlane.xlu0 %502
    %v504 = vsub.f32 %v496, %v500
    %v505 = vsub.f32 %v497, %v503
    %v506 = vmul.f32 %v504, 1.442695
    %v507 = vpow.pop %v506
    %v508 = vmul.f32 %v505, 1.442695
    %v509 = vpow.pop %v508
    %v510 = vsel %vm332, %v507, 0.0
    %511 = vadd.xlane.f32.xlu0 %v510
    %v512 = vpop.xlane.xlu0 %511
    %v513 = vsel %vm332, %v509, 0.0
    %514 = vadd.xlane.f32.xlu0 %v513
    %v515 = vpop.xlane.xlu0 %514
    %v516 = vrcp.pop %v512
    %v517 = vrcp.pop %v515
    %v518 = vmul.f32 %v507, %v516
    %v519 = vmul.f32 %v509, %v517
    %520 = vrot.lane.b32.xlu0 %v321, 64
    %v521 = vpop.permute.xlu0 %520
    %v524 = vsel %vm332, %v518, 0
    %526 = vmatprep.subr.mxu0 0.0
    %527 = vmatpush1.msra.mxu0 0.0
    %528 = vmatprep.subr.mxu0 0.0
    %529 = vmatpush1.msra.mxu0 0.0
    %530 = vmatprep.subr.mxu0 0.0
    %531 = vmatpush1.msra.mxu0 0.0
    %532 = vmatprep.subr.mxu0 0.0
    %533 = vmatpush1.msra.mxu0 0.0
    %534 = vmatprep.subr.mxu0 0.0
    %535 = vmatpush1.msra.mxu0 0.0
    %536 = vmatprep.subr.mxu0 0.0
    %537 = vmatpush1.msra.mxu0 0.0
    %538 = vmatprep.subr.mxu0 0.0
    %539 = vmatpush1.msra.mxu0 0.0
    %540 = vmatprep.subr.mxu0 0.0
    %541 = vmatpush1.msra.mxu0 0.0
    %542 = vmatprep.subr.mxu0 0.0
    %543 = vmatpush1.msra.mxu0 0.0
    %544 = vmatprep.subr.mxu0 0.0
    %545 = vmatpush1.msra.mxu0 0.0
    %546 = vmatprep.subr.mxu0 0.0
    %547 = vmatpush1.msra.mxu0 0.0
    %548 = vmatprep.subr.mxu0 0.0
    %549 = vmatpush1.msra.mxu0 0.0
    %550 = vmatprep.subr.mxu0 0.0
    %551 = vmatpush1.msra.mxu0 0.0
    %552 = vmatprep.subr.mxu0 0.0
    %553 = vmatpush1.msra.mxu0 0.0
    %554 = vmatprep.subr.mxu0 0.0
    %555 = vmatpush1.msra.mxu0 0.0
    %556 = vmatprep.subr.mxu0 0.0
    %557 = vmatpush1.msra.mxu0 %v521
    %558 = vmatprep.subr.mxu0 0.0
    %559 = vmatpush2.msra.mxu0 0.0
    %560 = vmatprep.subr.mxu0 0.0
    %561 = vmatpush2.msra.mxu0 0.0
    %562 = vmatprep.subr.mxu0 0.0
    %563 = vmatpush2.msra.mxu0 0.0
    %564 = vmatprep.subr.mxu0 0.0
    %565 = vmatpush2.msra.mxu0 0.0
    %566 = vmatprep.subr.mxu0 0.0
    %567 = vmatpush2.msra.mxu0 0.0
    %568 = vmatprep.subr.mxu0 0.0
    %569 = vmatpush2.msra.mxu0 0.0
    %570 = vmatprep.subr.mxu0 0.0
    %571 = vmatpush2.msra.mxu0 0.0
    %572 = vmatprep.subr.mxu0 0.0
    %573 = vmatpush2.msra.mxu0 0.0
    %574 = vmatprep.subr.mxu0 0.0
    %575 = vmatpush2.msra.mxu0 0.0
    %576 = vmatprep.subr.mxu0 0.0
    %577 = vmatpush2.msra.mxu0 0.0
    %578 = vmatprep.subr.mxu0 0.0
    %579 = vmatpush2.msra.mxu0 0.0
    %580 = vmatprep.subr.mxu0 0.0
    %581 = vmatpush2.msra.mxu0 0.0
    %582 = vmatprep.subr.mxu0 0.0
    %583 = vmatpush2.msra.mxu0 0.0
    %584 = vmatprep.subr.mxu0 0.0
    %585 = vmatpush2.msra.mxu0 0.0
    %586 = vmatprep.subr.mxu0 0.0
    %587 = vmatpush2.msra.mxu0 0.0
    %588 = vmatprep.subr.mxu0 0.0
    %589 = vmatpush2.msra.mxu0 0.0
    %590 = vmatprep.mubr.f32.mxu0 0.0
    %591 = vmatmul.mubr.f32.gmra.mxu0 %v524
    %v592 = vpop.f32.mrf.mxu0
    %v593 = vadd.f32 0.0, %v592
    %v594 = vpop.f32.mrf.mxu0
    %595 = vdwg.mxu0
    %596 = vrot.lane.b32.xlu0 %v326, 64
    %v597 = vpop.permute.xlu0 %596
    %v600 = vsel %vm332, %v519, 0
    %602 = vmatprep.subr.mxu0 0.0
    %603 = vmatpush1.msra.mxu0 0.0
    %604 = vmatprep.subr.mxu0 0.0
    %605 = vmatpush1.msra.mxu0 0.0
    %606 = vmatprep.subr.mxu0 0.0
    %607 = vmatpush1.msra.mxu0 0.0
    %608 = vmatprep.subr.mxu0 0.0
    %609 = vmatpush1.msra.mxu0 0.0
    %610 = vmatprep.subr.mxu0 0.0
    %611 = vmatpush1.msra.mxu0 0.0
    %612 = vmatprep.subr.mxu0 0.0
    %613 = vmatpush1.msra.mxu0 0.0
    %614 = vmatprep.subr.mxu0 0.0
    %615 = vmatpush1.msra.mxu0 0.0
    %616 = vmatprep.subr.mxu0 0.0
    %617 = vmatpush1.msra.mxu0 0.0
    %618 = vmatprep.subr.mxu0 0.0
    %619 = vmatpush1.msra.mxu0 0.0
    %620 = vmatprep.subr.mxu0 0.0
    %621 = vmatpush1.msra.mxu0 0.0
    %622 = vmatprep.subr.mxu0 0.0
    %623 = vmatpush1.msra.mxu0 0.0
    %624 = vmatprep.subr.mxu0 0.0
    %625 = vmatpush1.msra.mxu0 0.0
    %626 = vmatprep.subr.mxu0 0.0
    %627 = vmatpush1.msra.mxu0 0.0
    %628 = vmatprep.subr.mxu0 0.0
    %629 = vmatpush1.msra.mxu0 0.0
    %630 = vmatprep.subr.mxu0 0.0
    %631 = vmatpush1.msra.mxu0 0.0
    %632 = vmatprep.subr.mxu0 0.0
    %633 = vmatpush1.msra.mxu0 %v597
    %634 = vmatprep.subr.mxu0 0.0
    %635 = vmatpush2.msra.mxu0 0.0
    %636 = vmatprep.subr.mxu0 0.0
    %637 = vmatpush2.msra.mxu0 0.0
    %638 = vmatprep.subr.mxu0 0.0
    %639 = vmatpush2.msra.mxu0 0.0
    %640 = vmatprep.subr.mxu0 0.0
    %641 = vmatpush2.msra.mxu0 0.0
    %642 = vmatprep.subr.mxu0 0.0
    %643 = vmatpush2.msra.mxu0 0.0
    %644 = vmatprep.subr.mxu0 0.0
    %645 = vmatpush2.msra.mxu0 0.0
    %646 = vmatprep.subr.mxu0 0.0
    %647 = vmatpush2.msra.mxu0 0.0
    %648 = vmatprep.subr.mxu0 0.0
    %649 = vmatpush2.msra.mxu0 0.0
    %650 = vmatprep.subr.mxu0 0.0
    %651 = vmatpush2.msra.mxu0 0.0
    %652 = vmatprep.subr.mxu0 0.0
    %653 = vmatpush2.msra.mxu0 0.0
    %654 = vmatprep.subr.mxu0 0.0
    %655 = vmatpush2.msra.mxu0 0.0
    %656 = vmatprep.subr.mxu0 0.0
    %657 = vmatpush2.msra.mxu0 0.0
    %658 = vmatprep.subr.mxu0 0.0
    %659 = vmatpush2.msra.mxu0 0.0
    %660 = vmatprep.subr.mxu0 0.0
    %661 = vmatpush2.msra.mxu0 0.0
    %662 = vmatprep.subr.mxu0 0.0
    %663 = vmatpush2.msra.mxu0 0.0
    %664 = vmatprep.subr.mxu0 0.0
    %665 = vmatpush2.msra.mxu0 0.0
    %666 = vmatprep.mubr.f32.mxu0 0.0
    %667 = vmatmul.mubr.f32.gmra.mxu0 %v600
    %v668 = vpop.f32.mrf.mxu0
    %v669 = vadd.f32 0.0, %v668
    %v670 = vpop.f32.mrf.mxu0
    %671 = vdwg.mxu0
    %672 = vrot.lane.b32.xlu0 %v321, 120
    %v673 = vpop.permute.xlu0 %672
    %674 = vrot.lane.b32.xlu0 %v321, 88
    %v675 = vpop.permute.xlu0 %674
    %v676 = vsel %vm332, %v673, 0
    %v678 = vsel %vm332, %v675, 0
    %680 = vmatprep.subr.mxu0 0.0
    %681 = vmatpush1.xpose.msra.mxu0 0.0
    %682 = vmatprep.subr.mxu0 0.0
    %683 = vmatpush1.xpose.msra.mxu0 0.0
    %684 = vmatprep.subr.mxu0 0.0
    %685 = vmatpush1.xpose.msra.mxu0 0.0
    %686 = vmatprep.subr.mxu0 0.0
    %687 = vmatpush1.xpose.msra.mxu0 0.0
    %688 = vmatprep.subr.mxu0 0.0
    %689 = vmatpush1.xpose.msra.mxu0 0.0
    %690 = vmatprep.subr.mxu0 0.0
    %691 = vmatpush1.xpose.msra.mxu0 0.0
    %692 = vmatprep.subr.mxu0 0.0
    %693 = vmatpush1.xpose.msra.mxu0 0.0
    %694 = vmatprep.subr.mxu0 0.0
    %695 = vmatpush1.xpose.msra.mxu0 0.0
    %696 = vmatprep.subr.mxu0 0.0
    %697 = vmatpush1.xpose.msra.mxu0 0.0
    %698 = vmatprep.subr.mxu0 0.0
    %699 = vmatpush1.xpose.msra.mxu0 0.0
    %700 = vmatprep.subr.mxu0 0.0
    %701 = vmatpush1.xpose.msra.mxu0 0.0
    %702 = vmatprep.subr.mxu0 0.0
    %703 = vmatpush1.xpose.msra.mxu0 0.0
    %704 = vmatprep.subr.mxu0 0.0
    %705 = vmatpush1.xpose.msra.mxu0 0.0
    %706 = vmatprep.subr.mxu0 0.0
    %707 = vmatpush1.xpose.msra.mxu0 0.0
    %708 = vmatprep.subr.mxu0 0.0
    %709 = vmatpush1.xpose.msra.mxu0 0.0
    %710 = vmatprep.subr.mxu0 0.0
    %711 = vmatpush1.xpose.msra.mxu0 %v678
    %712 = vmatprep.subr.mxu0 0.0
    %713 = vmatpush2.xpose.msra.mxu0 0.0
    %714 = vmatprep.subr.mxu0 0.0
    %715 = vmatpush2.xpose.msra.mxu0 0.0
    %716 = vmatprep.subr.mxu0 0.0
    %717 = vmatpush2.xpose.msra.mxu0 0.0
    %718 = vmatprep.subr.mxu0 0.0
    %719 = vmatpush2.xpose.msra.mxu0 0.0
    %720 = vmatprep.subr.mxu0 0.0
    %721 = vmatpush2.xpose.msra.mxu0 0.0
    %722 = vmatprep.subr.mxu0 0.0
    %723 = vmatpush2.xpose.msra.mxu0 0.0
    %724 = vmatprep.subr.mxu0 0.0
    %725 = vmatpush2.xpose.msra.mxu0 0.0
    %726 = vmatprep.subr.mxu0 0.0
    %727 = vmatpush2.xpose.msra.mxu0 0.0
    %728 = vmatprep.subr.mxu0 0.0
    %729 = vmatpush2.xpose.msra.mxu0 0.0
    %730 = vmatprep.subr.mxu0 0.0
    %731 = vmatpush2.xpose.msra.mxu0 0.0
    %732 = vmatprep.subr.mxu0 0.0
    %733 = vmatpush2.xpose.msra.mxu0 0.0
    %734 = vmatprep.subr.mxu0 0.0
    %735 = vmatpush2.xpose.msra.mxu0 0.0
    %736 = vmatprep.subr.mxu0 0.0
    %737 = vmatpush2.xpose.msra.mxu0 0.0
    %738 = vmatprep.subr.mxu0 0.0
    %739 = vmatpush2.xpose.msra.mxu0 0.0
    %740 = vmatprep.subr.mxu0 0.0
    %741 = vmatpush2.xpose.msra.mxu0 0.0
    %742 = vmatprep.subr.mxu0 0.0
    %743 = vmatpush2.xpose.msra.mxu0 0.0
    %744 = vmatprep.mubr.f32.mxu0 0.0
    %745 = vmatmul.mubr.f32.gmra.mxu0 %v676
    %v746 = vpop.f32.mrf.mxu0
    %v747 = vadd.f32 0.0, %v746
    %v748 = vpop.f32.mrf.mxu0
    %749 = vdwg.mxu0
    %750 = vrot.lane.b32.xlu0 %v326, 120
    %v751 = vpop.permute.xlu0 %750
    %752 = vrot.lane.b32.xlu0 %v326, 88
    %v753 = vpop.permute.xlu0 %752
    %v754 = vsel %vm332, %v751, 0
    %v756 = vsel %vm332, %v753, 0
    %758 = vmatprep.subr.mxu0 0.0
    %759 = vmatpush1.xpose.msra.mxu0 0.0
    %760 = vmatprep.subr.mxu0 0.0
    %761 = vmatpush1.xpose.msra.mxu0 0.0
    %762 = vmatprep.subr.mxu0 0.0
    %763 = vmatpush1.xpose.msra.mxu0 0.0
    %764 = vmatprep.subr.mxu0 0.0
    %765 = vmatpush1.xpose.msra.mxu0 0.0
    %766 = vmatprep.subr.mxu0 0.0
    %767 = vmatpush1.xpose.msra.mxu0 0.0
    %768 = vmatprep.subr.mxu0 0.0
    %769 = vmatpush1.xpose.msra.mxu0 0.0
    %770 = vmatprep.subr.mxu0 0.0
    %771 = vmatpush1.xpose.msra.mxu0 0.0
    %772 = vmatprep.subr.mxu0 0.0
    %773 = vmatpush1.xpose.msra.mxu0 0.0
    %774 = vmatprep.subr.mxu0 0.0
    %775 = vmatpush1.xpose.msra.mxu0 0.0
    %776 = vmatprep.subr.mxu0 0.0
    %777 = vmatpush1.xpose.msra.mxu0 0.0
    %778 = vmatprep.subr.mxu0 0.0
    %779 = vmatpush1.xpose.msra.mxu0 0.0
    %780 = vmatprep.subr.mxu0 0.0
    %781 = vmatpush1.xpose.msra.mxu0 0.0
    %782 = vmatprep.subr.mxu0 0.0
    %783 = vmatpush1.xpose.msra.mxu0 0.0
    %784 = vmatprep.subr.mxu0 0.0
    %785 = vmatpush1.xpose.msra.mxu0 0.0
    %786 = vmatprep.subr.mxu0 0.0
    %787 = vmatpush1.xpose.msra.mxu0 0.0
    %788 = vmatprep.subr.mxu0 0.0
    %789 = vmatpush1.xpose.msra.mxu0 %v756
    %790 = vmatprep.subr.mxu0 0.0
    %791 = vmatpush2.xpose.msra.mxu0 0.0
    %792 = vmatprep.subr.mxu0 0.0
    %793 = vmatpush2.xpose.msra.mxu0 0.0
    %794 = vmatprep.subr.mxu0 0.0
    %795 = vmatpush2.xpose.msra.mxu0 0.0
    %796 = vmatprep.subr.mxu0 0.0
    %797 = vmatpush2.xpose.msra.mxu0 0.0
    %798 = vmatprep.subr.mxu0 0.0
    %799 = vmatpush2.xpose.msra.mxu0 0.0
    %800 = vmatprep.subr.mxu0 0.0
    %801 = vmatpush2.xpose.msra.mxu0 0.0
    %802 = vmatprep.subr.mxu0 0.0
    %803 = vmatpush2.xpose.msra.mxu0 0.0
    %804 = vmatprep.subr.mxu0 0.0
    %805 = vmatpush2.xpose.msra.mxu0 0.0
    %806 = vmatprep.subr.mxu0 0.0
    %807 = vmatpush2.xpose.msra.mxu0 0.0
    %808 = vmatprep.subr.mxu0 0.0
    %809 = vmatpush2.xpose.msra.mxu0 0.0
    %810 = vmatprep.subr.mxu0 0.0
    %811 = vmatpush2.xpose.msra.mxu0 0.0
    %812 = vmatprep.subr.mxu0 0.0
    %813 = vmatpush2.xpose.msra.mxu0 0.0
    %814 = vmatprep.subr.mxu0 0.0
    %815 = vmatpush2.xpose.msra.mxu0 0.0
    %816 = vmatprep.subr.mxu0 0.0
    %817 = vmatpush2.xpose.msra.mxu0 0.0
    %818 = vmatprep.subr.mxu0 0.0
    %819 = vmatpush2.xpose.msra.mxu0 0.0
    %820 = vmatprep.subr.mxu0 0.0
    %821 = vmatpush2.xpose.msra.mxu0 0.0
    %822 = vmatprep.mubr.f32.mxu0 0.0
    %823 = vmatmul.mubr.f32.gmra.mxu0 %v754
    %v824 = vpop.f32.mrf.mxu0
    %v825 = vadd.f32 0.0, %v824
    %v826 = vpop.f32.mrf.mxu0
    %827 = vdwg.mxu0
    %v828 = vmul.f32 %v747, 0.35355338
    %v829 = vmul.f32 %v825, 0.35355338
    %v830 = vadd.f32 %v828, %v489
    %v831 = vadd.f32 %v829, %v493
    %v832 = vsel %vm332, %v830, -inf
    %833 = vmax.xlane.f32.xlu0 %v832
    %v834 = vpop.xlane.xlu0 %833
    %v835 = vsel %vm332, %v831, -inf
    %836 = vmax.xlane.f32.xlu0 %v835
    %v837 = vpop.xlane.xlu0 %836
    %v838 = vsub.f32 %v830, %v834
    %v839 = vsub.f32 %v831, %v837
    %v840 = vmul.f32 %v838, 1.442695
    %v841 = vpow.pop %v840
    %v842 = vmul.f32 %v839, 1.442695
    %v843 = vpow.pop %v842
    %v844 = vsel %vm332, %v841, 0.0
    %845 = vadd.xlane.f32.xlu0 %v844
    %v846 = vpop.xlane.xlu0 %845
    %v847 = vsel %vm332, %v843, 0.0
    %848 = vadd.xlane.f32.xlu0 %v847
    %v849 = vpop.xlane.xlu0 %848
    %v850 = vrcp.pop %v846
    %v851 = vrcp.pop %v849
    %v852 = vmul.f32 %v841, %v850
    %v853 = vmul.f32 %v843, %v851
    %854 = vrot.lane.b32.xlu0 %v321, 56
    %v855 = vpop.permute.xlu0 %854
    %v858 = vsel %vm332, %v852, 0
    %860 = vmatprep.subr.mxu0 0.0
    %861 = vmatpush1.msra.mxu0 0.0
    %862 = vmatprep.subr.mxu0 0.0
    %863 = vmatpush1.msra.mxu0 0.0
    %864 = vmatprep.subr.mxu0 0.0
    %865 = vmatpush1.msra.mxu0 0.0
    %866 = vmatprep.subr.mxu0 0.0
    %867 = vmatpush1.msra.mxu0 0.0
    %868 = vmatprep.subr.mxu0 0.0
    %869 = vmatpush1.msra.mxu0 0.0
    %870 = vmatprep.subr.mxu0 0.0
    %871 = vmatpush1.msra.mxu0 0.0
    %872 = vmatprep.subr.mxu0 0.0
    %873 = vmatpush1.msra.mxu0 0.0
    %874 = vmatprep.subr.mxu0 0.0
    %875 = vmatpush1.msra.mxu0 0.0
    %876 = vmatprep.subr.mxu0 0.0
    %877 = vmatpush1.msra.mxu0 0.0
    %878 = vmatprep.subr.mxu0 0.0
    %879 = vmatpush1.msra.mxu0 0.0
    %880 = vmatprep.subr.mxu0 0.0
    %881 = vmatpush1.msra.mxu0 0.0
    %882 = vmatprep.subr.mxu0 0.0
    %883 = vmatpush1.msra.mxu0 0.0
    %884 = vmatprep.subr.mxu0 0.0
    %885 = vmatpush1.msra.mxu0 0.0
    %886 = vmatprep.subr.mxu0 0.0
    %887 = vmatpush1.msra.mxu0 0.0
    %888 = vmatprep.subr.mxu0 0.0
    %889 = vmatpush1.msra.mxu0 0.0
    %890 = vmatprep.subr.mxu0 0.0
    %891 = vmatpush1.msra.mxu0 %v855
    %892 = vmatprep.subr.mxu0 0.0
    %893 = vmatpush2.msra.mxu0 0.0
    %894 = vmatprep.subr.mxu0 0.0
    %895 = vmatpush2.msra.mxu0 0.0
    %896 = vmatprep.subr.mxu0 0.0
    %897 = vmatpush2.msra.mxu0 0.0
    %898 = vmatprep.subr.mxu0 0.0
    %899 = vmatpush2.msra.mxu0 0.0
    %900 = vmatprep.subr.mxu0 0.0
    %901 = vmatpush2.msra.mxu0 0.0
    %902 = vmatprep.subr.mxu0 0.0
    %903 = vmatpush2.msra.mxu0 0.0
    %904 = vmatprep.subr.mxu0 0.0
    %905 = vmatpush2.msra.mxu0 0.0
    %906 = vmatprep.subr.mxu0 0.0
    %907 = vmatpush2.msra.mxu0 0.0
    %908 = vmatprep.subr.mxu0 0.0
    %909 = vmatpush2.msra.mxu0 0.0
    %910 = vmatprep.subr.mxu0 0.0
    %911 = vmatpush2.msra.mxu0 0.0
    %912 = vmatprep.subr.mxu0 0.0
    %913 = vmatpush2.msra.mxu0 0.0
    %914 = vmatprep.subr.mxu0 0.0
    %915 = vmatpush2.msra.mxu0 0.0
    %916 = vmatprep.subr.mxu0 0.0
    %917 = vmatpush2.msra.mxu0 0.0
    %918 = vmatprep.subr.mxu0 0.0
    %919 = vmatpush2.msra.mxu0 0.0
    %920 = vmatprep.subr.mxu0 0.0
    %921 = vmatpush2.msra.mxu0 0.0
    %922 = vmatprep.subr.mxu0 0.0
    %923 = vmatpush2.msra.mxu0 0.0
    %924 = vmatprep.mubr.f32.mxu0 0.0
    %925 = vmatmul.mubr.f32.gmra.mxu0 %v858
    %v926 = vpop.f32.mrf.mxu0
    %v927 = vadd.f32 0.0, %v926
    %v928 = vpop.f32.mrf.mxu0
    %929 = vdwg.mxu0
    %930 = vrot.lane.b32.xlu0 %v326, 56
    %v931 = vpop.permute.xlu0 %930
    %v934 = vsel %vm332, %v853, 0
    %936 = vmatprep.subr.mxu0 0.0
    %937 = vmatpush1.msra.mxu0 0.0
    %938 = vmatprep.subr.mxu0 0.0
    %939 = vmatpush1.msra.mxu0 0.0
    %940 = vmatprep.subr.mxu0 0.0
    %941 = vmatpush1.msra.mxu0 0.0
    %942 = vmatprep.subr.mxu0 0.0
    %943 = vmatpush1.msra.mxu0 0.0
    %944 = vmatprep.subr.mxu0 0.0
    %945 = vmatpush1.msra.mxu0 0.0
    %946 = vmatprep.subr.mxu0 0.0
    %947 = vmatpush1.msra.mxu0 0.0
    %948 = vmatprep.subr.mxu0 0.0
    %949 = vmatpush1.msra.mxu0 0.0
    %950 = vmatprep.subr.mxu0 0.0
    %951 = vmatpush1.msra.mxu0 0.0
    %952 = vmatprep.subr.mxu0 0.0
    %953 = vmatpush1.msra.mxu0 0.0
    %954 = vmatprep.subr.mxu0 0.0
    %955 = vmatpush1.msra.mxu0 0.0
    %956 = vmatprep.subr.mxu0 0.0
    %957 = vmatpush1.msra.mxu0 0.0
    %958 = vmatprep.subr.mxu0 0.0
    %959 = vmatpush1.msra.mxu0 0.0
    %960 = vmatprep.subr.mxu0 0.0
    %961 = vmatpush1.msra.mxu0 0.0
    %962 = vmatprep.subr.mxu0 0.0
    %963 = vmatpush1.msra.mxu0 0.0
    %964 = vmatprep.subr.mxu0 0.0
    %965 = vmatpush1.msra.mxu0 0.0
    %966 = vmatprep.subr.mxu0 0.0
    %967 = vmatpush1.msra.mxu0 %v931
    %968 = vmatprep.subr.mxu0 0.0
    %969 = vmatpush2.msra.mxu0 0.0
    %970 = vmatprep.subr.mxu0 0.0
    %971 = vmatpush2.msra.mxu0 0.0
    %972 = vmatprep.subr.mxu0 0.0
    %973 = vmatpush2.msra.mxu0 0.0
    %974 = vmatprep.subr.mxu0 0.0
    %975 = vmatpush2.msra.mxu0 0.0
    %976 = vmatprep.subr.mxu0 0.0
    %977 = vmatpush2.msra.mxu0 0.0
    %978 = vmatprep.subr.mxu0 0.0
    %979 = vmatpush2.msra.mxu0 0.0
    %980 = vmatprep.subr.mxu0 0.0
    %981 = vmatpush2.msra.mxu0 0.0
    %982 = vmatprep.subr.mxu0 0.0
    %983 = vmatpush2.msra.mxu0 0.0
    %984 = vmatprep.subr.mxu0 0.0
    %985 = vmatpush2.msra.mxu0 0.0
    %986 = vmatprep.subr.mxu0 0.0
    %987 = vmatpush2.msra.mxu0 0.0
    %988 = vmatprep.subr.mxu0 0.0
    %989 = vmatpush2.msra.mxu0 0.0
    %990 = vmatprep.subr.mxu0 0.0
    %991 = vmatpush2.msra.mxu0 0.0
    %992 = vmatprep.subr.mxu0 0.0
    %993 = vmatpush2.msra.mxu0 0.0
    %994 = vmatprep.subr.mxu0 0.0
    %995 = vmatpush2.msra.mxu0 0.0
    %996 = vmatprep.subr.mxu0 0.0
    %997 = vmatpush2.msra.mxu0 0.0
    %998 = vmatprep.subr.mxu0 0.0
    %999 = vmatpush2.msra.mxu0 0.0
    %1000 = vmatprep.mubr.f32.mxu0 0.0
    %1001 = vmatmul.mubr.f32.gmra.mxu0 %v934
    %v1002 = vpop.f32.mrf.mxu0
    %v1003 = vadd.f32 0.0, %v1002
    %v1004 = vpop.f32.mrf.mxu0
    %1005 = vdwg.mxu0
    %v1007 = vsel %vm332, %v927, 0
    %v1010 = vsel %vm332, %v1003, 0
    %1012 = vmatprep.subr.mxu0 0.0
    %1013 = vmatpush1.msra.mxu0 0.0
    %1014 = vmatprep.subr.mxu0 0.0
    %1015 = vmatpush1.msra.mxu0 0.0
    %1016 = vmatprep.subr.mxu0 0.0
    %1017 = vmatpush1.msra.mxu0 0.0
    %1018 = vmatprep.subr.mxu0 0.0
    %1019 = vmatpush1.msra.mxu0 0.0
    %1020 = vmatprep.subr.mxu0 0.0
    %1021 = vmatpush1.msra.mxu0 0.0
    %1022 = vmatprep.subr.mxu0 0.0
    %1023 = vmatpush1.msra.mxu0 0.0
    %1024 = vmatprep.subr.mxu0 0.0
    %1025 = vmatpush1.msra.mxu0 0.0
    %1026 = vmatprep.subr.mxu0 0.0
    %1027 = vmatpush1.msra.mxu0 0.0
    %1028 = vmatprep.subr.mxu0 0.0
    %1029 = vmatpush1.msra.mxu0 0.0
    %1030 = vmatprep.subr.mxu0 0.0
    %1031 = vmatpush1.msra.mxu0 0.0
    %1032 = vmatprep.subr.mxu0 0.0
    %1033 = vmatpush1.msra.mxu0 0.0
    %1034 = vmatprep.subr.mxu0 0.0
    %1035 = vmatpush1.msra.mxu0 0.0
    %1036 = vmatprep.subr.mxu0 0.0
    %1037 = vmatpush1.msra.mxu0 0.0
    %1038 = vmatprep.subr.mxu0 0.0
    %1039 = vmatpush1.msra.mxu0 0.0
    %1040 = vmatprep.subr.mxu0 0.0
    %1041 = vmatpush1.msra.mxu0 0.0
    %1042 = vmatprep.subr.mxu0 0.0
    %1043 = vmatpush1.msra.mxu0 %v237
    %1044 = vmatprep.subr.mxu0 0.0
    %1045 = vmatpush2.msra.mxu0 0.0
    %1046 = vmatprep.subr.mxu0 0.0
    %1047 = vmatpush2.msra.mxu0 0.0
    %1048 = vmatprep.subr.mxu0 0.0
    %1049 = vmatpush2.msra.mxu0 0.0
    %1050 = vmatprep.subr.mxu0 0.0
    %1051 = vmatpush2.msra.mxu0 0.0
    %1052 = vmatprep.subr.mxu0 0.0
    %1053 = vmatpush2.msra.mxu0 0.0
    %1054 = vmatprep.subr.mxu0 0.0
    %1055 = vmatpush2.msra.mxu0 0.0
    %1056 = vmatprep.subr.mxu0 0.0
    %1057 = vmatpush2.msra.mxu0 0.0
    %1058 = vmatprep.subr.mxu0 0.0
    %1059 = vmatpush2.msra.mxu0 0.0
    %1060 = vmatprep.subr.mxu0 0.0
    %1061 = vmatpush2.msra.mxu0 0.0
    %1062 = vmatprep.subr.mxu0 0.0
    %1063 = vmatpush2.msra.mxu0 0.0
    %1064 = vmatprep.subr.mxu0 0.0
    %1065 = vmatpush2.msra.mxu0 0.0
    %1066 = vmatprep.subr.mxu0 0.0
    %1067 = vmatpush2.msra.mxu0 0.0
    %1068 = vmatprep.subr.mxu0 0.0
    %1069 = vmatpush2.msra.mxu0 0.0
    %1070 = vmatprep.subr.mxu0 0.0
    %1071 = vmatpush2.msra.mxu0 0.0
    %1072 = vmatprep.subr.mxu0 0.0
    %1073 = vmatpush2.msra.mxu0 0.0
    %1074 = vmatprep.subr.mxu0 0.0
    %1075 = vmatpush2.msra.mxu0 0.0
    %1076 = vmatprep.mubr.f32.mxu0 0.0
    %1077 = vmatmul.mubr.f32.gmra.mxu0 %v1007
    %v1078 = vpop.f32.mrf.mxu0
    %v1079 = vadd.f32 0.0, %v1078
    %v1080 = vpop.f32.mrf.mxu0
    %1081 = vmatprep.mubr.f32.mxu0 0.0
    %1082 = vmatmul.mubr.f32.gmra.mxu0 %v1010
    %v1083 = vpop.f32.mrf.mxu0
    %v1084 = vadd.f32 0.0, %v1083
    %v1085 = vpop.f32.mrf.mxu0
    %1086 = vdwg.mxu0
    %v1088 = vsel %vm332, %v593, 0
    %v1091 = vsel %vm332, %v669, 0
    %1093 = vmatprep.subr.mxu0 0.0
    %1094 = vmatpush1.msra.mxu0 0.0
    %1095 = vmatprep.subr.mxu0 0.0
    %1096 = vmatpush1.msra.mxu0 0.0
    %1097 = vmatprep.subr.mxu0 0.0
    %1098 = vmatpush1.msra.mxu0 0.0
    %1099 = vmatprep.subr.mxu0 0.0
    %1100 = vmatpush1.msra.mxu0 0.0
    %1101 = vmatprep.subr.mxu0 0.0
    %1102 = vmatpush1.msra.mxu0 0.0
    %1103 = vmatprep.subr.mxu0 0.0
    %1104 = vmatpush1.msra.mxu0 0.0
    %1105 = vmatprep.subr.mxu0 0.0
    %1106 = vmatpush1.msra.mxu0 0.0
    %1107 = vmatprep.subr.mxu0 0.0
    %1108 = vmatpush1.msra.mxu0 0.0
    %1109 = vmatprep.subr.mxu0 0.0
    %1110 = vmatpush1.msra.mxu0 0.0
    %1111 = vmatprep.subr.mxu0 0.0
    %1112 = vmatpush1.msra.mxu0 0.0
    %1113 = vmatprep.subr.mxu0 0.0
    %1114 = vmatpush1.msra.mxu0 0.0
    %1115 = vmatprep.subr.mxu0 0.0
    %1116 = vmatpush1.msra.mxu0 0.0
    %1117 = vmatprep.subr.mxu0 0.0
    %1118 = vmatpush1.msra.mxu0 0.0
    %1119 = vmatprep.subr.mxu0 0.0
    %1120 = vmatpush1.msra.mxu0 0.0
    %1121 = vmatprep.subr.mxu0 0.0
    %1122 = vmatpush1.msra.mxu0 0.0
    %1123 = vmatprep.subr.mxu0 0.0
    %1124 = vmatpush1.msra.mxu0 %v236
    %1125 = vmatprep.subr.mxu0 0.0
    %1126 = vmatpush2.msra.mxu0 0.0
    %1127 = vmatprep.subr.mxu0 0.0
    %1128 = vmatpush2.msra.mxu0 0.0
    %1129 = vmatprep.subr.mxu0 0.0
    %1130 = vmatpush2.msra.mxu0 0.0
    %1131 = vmatprep.subr.mxu0 0.0
    %1132 = vmatpush2.msra.mxu0 0.0
    %1133 = vmatprep.subr.mxu0 0.0
    %1134 = vmatpush2.msra.mxu0 0.0
    %1135 = vmatprep.subr.mxu0 0.0
    %1136 = vmatpush2.msra.mxu0 0.0
    %1137 = vmatprep.subr.mxu0 0.0
    %1138 = vmatpush2.msra.mxu0 0.0
    %1139 = vmatprep.subr.mxu0 0.0
    %1140 = vmatpush2.msra.mxu0 0.0
    %1141 = vmatprep.subr.mxu0 0.0
    %1142 = vmatpush2.msra.mxu0 0.0
    %1143 = vmatprep.subr.mxu0 0.0
    %1144 = vmatpush2.msra.mxu0 0.0
    %1145 = vmatprep.subr.mxu0 0.0
    %1146 = vmatpush2.msra.mxu0 0.0
    %1147 = vmatprep.subr.mxu0 0.0
    %1148 = vmatpush2.msra.mxu0 0.0
    %1149 = vmatprep.subr.mxu0 0.0
    %1150 = vmatpush2.msra.mxu0 0.0
    %1151 = vmatprep.subr.mxu0 0.0
    %1152 = vmatpush2.msra.mxu0 0.0
    %1153 = vmatprep.subr.mxu0 0.0
    %1154 = vmatpush2.msra.mxu0 0.0
    %1155 = vmatprep.subr.mxu0 0.0
    %1156 = vmatpush2.msra.mxu0 0.0
    %1157 = vmatprep.mubr.f32.mxu0 0.0
    %1158 = vmatmul.mubr.f32.gmra.mxu0 %v1088
    %v1159 = vpop.f32.mrf.mxu0
    %v1160 = vadd.f32 %v1079, %v1159
    %v1161 = vpop.f32.mrf.mxu0
    %1162 = vmatprep.mubr.f32.mxu0 0.0
    %1163 = vmatmul.mubr.f32.gmra.mxu0 %v1091
    %v1164 = vpop.f32.mrf.mxu0
    %v1165 = vadd.f32 %v1084, %v1164
    %v1166 = vpop.f32.mrf.mxu0
    %1167 = vdwg.mxu0
    %1168 = vrot.lane.b32.xlu0 %v321, 112
    %v1169 = vpop.permute.xlu0 %1168
    %1170 = vrot.lane.b32.xlu0 %v321, 80
    %v1171 = vpop.permute.xlu0 %1170
    %v1172 = vsel %vm332, %v1169, 0
    %v1174 = vsel %vm332, %v1171, 0
    %1176 = vmatprep.subr.mxu0 0.0
    %1177 = vmatpush1.xpose.msra.mxu0 0.0
    %1178 = vmatprep.subr.mxu0 0.0
    %1179 = vmatpush1.xpose.msra.mxu0 0.0
    %1180 = vmatprep.subr.mxu0 0.0
    %1181 = vmatpush1.xpose.msra.mxu0 0.0
    %1182 = vmatprep.subr.mxu0 0.0
    %1183 = vmatpush1.xpose.msra.mxu0 0.0
    %1184 = vmatprep.subr.mxu0 0.0
    %1185 = vmatpush1.xpose.msra.mxu0 0.0
    %1186 = vmatprep.subr.mxu0 0.0
    %1187 = vmatpush1.xpose.msra.mxu0 0.0
    %1188 = vmatprep.subr.mxu0 0.0
    %1189 = vmatpush1.xpose.msra.mxu0 0.0
    %1190 = vmatprep.subr.mxu0 0.0
    %1191 = vmatpush1.xpose.msra.mxu0 0.0
    %1192 = vmatprep.subr.mxu0 0.0
    %1193 = vmatpush1.xpose.msra.mxu0 0.0
    %1194 = vmatprep.subr.mxu0 0.0
    %1195 = vmatpush1.xpose.msra.mxu0 0.0
    %1196 = vmatprep.subr.mxu0 0.0
    %1197 = vmatpush1.xpose.msra.mxu0 0.0
    %1198 = vmatprep.subr.mxu0 0.0
    %1199 = vmatpush1.xpose.msra.mxu0 0.0
    %1200 = vmatprep.subr.mxu0 0.0
    %1201 = vmatpush1.xpose.msra.mxu0 0.0
    %1202 = vmatprep.subr.mxu0 0.0
    %1203 = vmatpush1.xpose.msra.mxu0 0.0
    %1204 = vmatprep.subr.mxu0 0.0
    %1205 = vmatpush1.xpose.msra.mxu0 0.0
    %1206 = vmatprep.subr.mxu0 0.0
    %1207 = vmatpush1.xpose.msra.mxu0 %v1174
    %1208 = vmatprep.subr.mxu0 0.0
    %1209 = vmatpush2.xpose.msra.mxu0 0.0
    %1210 = vmatprep.subr.mxu0 0.0
    %1211 = vmatpush2.xpose.msra.mxu0 0.0
    %1212 = vmatprep.subr.mxu0 0.0
    %1213 = vmatpush2.xpose.msra.mxu0 0.0
    %1214 = vmatprep.subr.mxu0 0.0
    %1215 = vmatpush2.xpose.msra.mxu0 0.0
    %1216 = vmatprep.subr.mxu0 0.0
    %1217 = vmatpush2.xpose.msra.mxu0 0.0
    %1218 = vmatprep.subr.mxu0 0.0
    %1219 = vmatpush2.xpose.msra.mxu0 0.0
    %1220 = vmatprep.subr.mxu0 0.0
    %1221 = vmatpush2.xpose.msra.mxu0 0.0
    %1222 = vmatprep.subr.mxu0 0.0
    %1223 = vmatpush2.xpose.msra.mxu0 0.0
    %1224 = vmatprep.subr.mxu0 0.0
    %1225 = vmatpush2.xpose.msra.mxu0 0.0
    %1226 = vmatprep.subr.mxu0 0.0
    %1227 = vmatpush2.xpose.msra.mxu0 0.0
    %1228 = vmatprep.subr.mxu0 0.0
    %1229 = vmatpush2.xpose.msra.mxu0 0.0
    %1230 = vmatprep.subr.mxu0 0.0
    %1231 = vmatpush2.xpose.msra.mxu0 0.0
    %1232 = vmatprep.subr.mxu0 0.0
    %1233 = vmatpush2.xpose.msra.mxu0 0.0
    %1234 = vmatprep.subr.mxu0 0.0
    %1235 = vmatpush2.xpose.msra.mxu0 0.0
    %1236 = vmatprep.subr.mxu0 0.0
    %1237 = vmatpush2.xpose.msra.mxu0 0.0
    %1238 = vmatprep.subr.mxu0 0.0
    %1239 = vmatpush2.xpose.msra.mxu0 0.0
    %1240 = vmatprep.mubr.f32.mxu0 0.0
    %1241 = vmatmul.mubr.f32.gmra.mxu0 %v1172
    %v1242 = vpop.f32.mrf.mxu0
    %v1243 = vadd.f32 0.0, %v1242
    %v1244 = vpop.f32.mrf.mxu0
    %1245 = vdwg.mxu0
    %1246 = vrot.lane.b32.xlu0 %v326, 112
    %v1247 = vpop.permute.xlu0 %1246
    %1248 = vrot.lane.b32.xlu0 %v326, 80
    %v1249 = vpop.permute.xlu0 %1248
    %v1250 = vsel %vm332, %v1247, 0
    %v1252 = vsel %vm332, %v1249, 0
    %1254 = vmatprep.subr.mxu0 0.0
    %1255 = vmatpush1.xpose.msra.mxu0 0.0
    %1256 = vmatprep.subr.mxu0 0.0
    %1257 = vmatpush1.xpose.msra.mxu0 0.0
    %1258 = vmatprep.subr.mxu0 0.0
    %1259 = vmatpush1.xpose.msra.mxu0 0.0
    %1260 = vmatprep.subr.mxu0 0.0
    %1261 = vmatpush1.xpose.msra.mxu0 0.0
    %1262 = vmatprep.subr.mxu0 0.0
    %1263 = vmatpush1.xpose.msra.mxu0 0.0
    %1264 = vmatprep.subr.mxu0 0.0
    %1265 = vmatpush1.xpose.msra.mxu0 0.0
    %1266 = vmatprep.subr.mxu0 0.0
    %1267 = vmatpush1.xpose.msra.mxu0 0.0
    %1268 = vmatprep.subr.mxu0 0.0
    %1269 = vmatpush1.xpose.msra.mxu0 0.0
    %1270 = vmatprep.subr.mxu0 0.0
    %1271 = vmatpush1.xpose.msra.mxu0 0.0
    %1272 = vmatprep.subr.mxu0 0.0
    %1273 = vmatpush1.xpose.msra.mxu0 0.0
    %1274 = vmatprep.subr.mxu0 0.0
    %1275 = vmatpush1.xpose.msra.mxu0 0.0
    %1276 = vmatprep.subr.mxu0 0.0
    %1277 = vmatpush1.xpose.msra.mxu0 0.0
    %1278 = vmatprep.subr.mxu0 0.0
    %1279 = vmatpush1.xpose.msra.mxu0 0.0
    %1280 = vmatprep.subr.mxu0 0.0
    %1281 = vmatpush1.xpose.msra.mxu0 0.0
    %1282 = vmatprep.subr.mxu0 0.0
    %1283 = vmatpush1.xpose.msra.mxu0 0.0
    %1284 = vmatprep.subr.mxu0 0.0
    %1285 = vmatpush1.xpose.msra.mxu0 %v1252
    %1286 = vmatprep.subr.mxu0 0.0
    %1287 = vmatpush2.xpose.msra.mxu0 0.0
    %1288 = vmatprep.subr.mxu0 0.0
    %1289 = vmatpush2.xpose.msra.mxu0 0.0
    %1290 = vmatprep.subr.mxu0 0.0
    %1291 = vmatpush2.xpose.msra.mxu0 0.0
    %1292 = vmatprep.subr.mxu0 0.0
    %1293 = vmatpush2.xpose.msra.mxu0 0.0
    %1294 = vmatprep.subr.mxu0 0.0
    %1295 = vmatpush2.xpose.msra.mxu0 0.0
    %1296 = vmatprep.subr.mxu0 0.0
    %1297 = vmatpush2.xpose.msra.mxu0 0.0
    %1298 = vmatprep.subr.mxu0 0.0
    %1299 = vmatpush2.xpose.msra.mxu0 0.0
    %1300 = vmatprep.subr.mxu0 0.0
    %1301 = vmatpush2.xpose.msra.mxu0 0.0
    %1302 = vmatprep.subr.mxu0 0.0
    %1303 = vmatpush2.xpose.msra.mxu0 0.0
    %1304 = vmatprep.subr.mxu0 0.0
    %1305 = vmatpush2.xpose.msra.mxu0 0.0
    %1306 = vmatprep.subr.mxu0 0.0
    %1307 = vmatpush2.xpose.msra.mxu0 0.0
    %1308 = vmatprep.subr.mxu0 0.0
    %1309 = vmatpush2.xpose.msra.mxu0 0.0
    %1310 = vmatprep.subr.mxu0 0.0
    %1311 = vmatpush2.xpose.msra.mxu0 0.0
    %1312 = vmatprep.subr.mxu0 0.0
    %1313 = vmatpush2.xpose.msra.mxu0 0.0
    %1314 = vmatprep.subr.mxu0 0.0
    %1315 = vmatpush2.xpose.msra.mxu0 0.0
    %1316 = vmatprep.subr.mxu0 0.0
    %1317 = vmatpush2.xpose.msra.mxu0 0.0
    %1318 = vmatprep.mubr.f32.mxu0 0.0
    %1319 = vmatmul.mubr.f32.gmra.mxu0 %v1250
    %v1320 = vpop.f32.mrf.mxu0
    %v1321 = vadd.f32 0.0, %v1320
    %v1322 = vpop.f32.mrf.mxu0
    %1323 = vdwg.mxu0
    %v1324 = vmul.f32 %v1243, 0.35355338
    %v1325 = vmul.f32 %v1321, 0.35355338
    %v1326 = vadd.f32 %v1324, %v489
    %v1327 = vadd.f32 %v1325, %v493
    %v1328 = vsel %vm332, %v1326, -inf
    %1329 = vmax.xlane.f32.xlu0 %v1328
    %v1330 = vpop.xlane.xlu0 %1329
    %v1331 = vsel %vm332, %v1327, -inf
    %1332 = vmax.xlane.f32.xlu0 %v1331
    %v1333 = vpop.xlane.xlu0 %1332
    %v1334 = vsub.f32 %v1326, %v1330
    %v1335 = vsub.f32 %v1327, %v1333
    %v1336 = vmul.f32 %v1334, 1.442695
    %v1337 = vpow.pop %v1336
    %v1338 = vmul.f32 %v1335, 1.442695
    %v1339 = vpow.pop %v1338
    %v1340 = vsel %vm332, %v1337, 0.0
    %1341 = vadd.xlane.f32.xlu0 %v1340
    %v1342 = vpop.xlane.xlu0 %1341
    %v1343 = vsel %vm332, %v1339, 0.0
    %1344 = vadd.xlane.f32.xlu0 %v1343
    %v1345 = vpop.xlane.xlu0 %1344
    %v1346 = vrcp.pop %v1342
    %v1347 = vrcp.pop %v1345
    %v1348 = vmul.f32 %v1337, %v1346
    %v1349 = vmul.f32 %v1339, %v1347
    %1350 = vrot.lane.b32.xlu0 %v321, 48
    %v1351 = vpop.permute.xlu0 %1350
    %v1354 = vsel %vm332, %v1348, 0
    %1356 = vmatprep.subr.mxu0 0.0
    %1357 = vmatpush1.msra.mxu0 0.0
    %1358 = vmatprep.subr.mxu0 0.0
    %1359 = vmatpush1.msra.mxu0 0.0
    %1360 = vmatprep.subr.mxu0 0.0
    %1361 = vmatpush1.msra.mxu0 0.0
    %1362 = vmatprep.subr.mxu0 0.0
    %1363 = vmatpush1.msra.mxu0 0.0
    %1364 = vmatprep.subr.mxu0 0.0
    %1365 = vmatpush1.msra.mxu0 0.0
    %1366 = vmatprep.subr.mxu0 0.0
    %1367 = vmatpush1.msra.mxu0 0.0
    %1368 = vmatprep.subr.mxu0 0.0
    %1369 = vmatpush1.msra.mxu0 0.0
    %1370 = vmatprep.subr.mxu0 0.0
    %1371 = vmatpush1.msra.mxu0 0.0
    %1372 = vmatprep.subr.mxu0 0.0
    %1373 = vmatpush1.msra.mxu0 0.0
    %1374 = vmatprep.subr.mxu0 0.0
    %1375 = vmatpush1.msra.mxu0 0.0
    %1376 = vmatprep.subr.mxu0 0.0
    %1377 = vmatpush1.msra.mxu0 0.0
    %1378 = vmatprep.subr.mxu0 0.0
    %1379 = vmatpush1.msra.mxu0 0.0
    %1380 = vmatprep.subr.mxu0 0.0
    %1381 = vmatpush1.msra.mxu0 0.0
    %1382 = vmatprep.subr.mxu0 0.0
    %1383 = vmatpush1.msra.mxu0 0.0
    %1384 = vmatprep.subr.mxu0 0.0
    %1385 = vmatpush1.msra.mxu0 0.0
    %1386 = vmatprep.subr.mxu0 0.0
    %1387 = vmatpush1.msra.mxu0 %v1351
    %1388 = vmatprep.subr.mxu0 0.0
    %1389 = vmatpush2.msra.mxu0 0.0
    %1390 = vmatprep.subr.mxu0 0.0
    %1391 = vmatpush2.msra.mxu0 0.0
    %1392 = vmatprep.subr.mxu0 0.0
    %1393 = vmatpush2.msra.mxu0 0.0
    %1394 = vmatprep.subr.mxu0 0.0
    %1395 = vmatpush2.msra.mxu0 0.0
    %1396 = vmatprep.subr.mxu0 0.0
    %1397 = vmatpush2.msra.mxu0 0.0
    %1398 = vmatprep.subr.mxu0 0.0
    %1399 = vmatpush2.msra.mxu0 0.0
    %1400 = vmatprep.subr.mxu0 0.0
    %1401 = vmatpush2.msra.mxu0 0.0
    %1402 = vmatprep.subr.mxu0 0.0
    %1403 = vmatpush2.msra.mxu0 0.0
    %1404 = vmatprep.subr.mxu0 0.0
    %1405 = vmatpush2.msra.mxu0 0.0
    %1406 = vmatprep.subr.mxu0 0.0
    %1407 = vmatpush2.msra.mxu0 0.0
    %1408 = vmatprep.subr.mxu0 0.0
    %1409 = vmatpush2.msra.mxu0 0.0
    %1410 = vmatprep.subr.mxu0 0.0
    %1411 = vmatpush2.msra.mxu0 0.0
    %1412 = vmatprep.subr.mxu0 0.0
    %1413 = vmatpush2.msra.mxu0 0.0
    %1414 = vmatprep.subr.mxu0 0.0
    %1415 = vmatpush2.msra.mxu0 0.0
    %1416 = vmatprep.subr.mxu0 0.0
    %1417 = vmatpush2.msra.mxu0 0.0
    %1418 = vmatprep.subr.mxu0 0.0
    %1419 = vmatpush2.msra.mxu0 0.0
    %1420 = vmatprep.mubr.f32.mxu0 0.0
    %1421 = vmatmul.mubr.f32.gmra.mxu0 %v1354
    %v1422 = vpop.f32.mrf.mxu0
    %v1423 = vadd.f32 0.0, %v1422
    %v1424 = vpop.f32.mrf.mxu0
    %1425 = vdwg.mxu0
    %1426 = vrot.lane.b32.xlu0 %v326, 48
    %v1427 = vpop.permute.xlu0 %1426
    %v1430 = vsel %vm332, %v1349, 0
    %1432 = vmatprep.subr.mxu0 0.0
    %1433 = vmatpush1.msra.mxu0 0.0
    %1434 = vmatprep.subr.mxu0 0.0
    %1435 = vmatpush1.msra.mxu0 0.0
    %1436 = vmatprep.subr.mxu0 0.0
    %1437 = vmatpush1.msra.mxu0 0.0
    %1438 = vmatprep.subr.mxu0 0.0
    %1439 = vmatpush1.msra.mxu0 0.0
    %1440 = vmatprep.subr.mxu0 0.0
    %1441 = vmatpush1.msra.mxu0 0.0
    %1442 = vmatprep.subr.mxu0 0.0
    %1443 = vmatpush1.msra.mxu0 0.0
    %1444 = vmatprep.subr.mxu0 0.0
    %1445 = vmatpush1.msra.mxu0 0.0
    %1446 = vmatprep.subr.mxu0 0.0
    %1447 = vmatpush1.msra.mxu0 0.0
    %1448 = vmatprep.subr.mxu0 0.0
    %1449 = vmatpush1.msra.mxu0 0.0
    %1450 = vmatprep.subr.mxu0 0.0
    %1451 = vmatpush1.msra.mxu0 0.0
    %1452 = vmatprep.subr.mxu0 0.0
    %1453 = vmatpush1.msra.mxu0 0.0
    %1454 = vmatprep.subr.mxu0 0.0
    %1455 = vmatpush1.msra.mxu0 0.0
    %1456 = vmatprep.subr.mxu0 0.0
    %1457 = vmatpush1.msra.mxu0 0.0
    %1458 = vmatprep.subr.mxu0 0.0
    %1459 = vmatpush1.msra.mxu0 0.0
    %1460 = vmatprep.subr.mxu0 0.0
    %1461 = vmatpush1.msra.mxu0 0.0
    %1462 = vmatprep.subr.mxu0 0.0
    %1463 = vmatpush1.msra.mxu0 %v1427
    %1464 = vmatprep.subr.mxu0 0.0
    %1465 = vmatpush2.msra.mxu0 0.0
    %1466 = vmatprep.subr.mxu0 0.0
    %1467 = vmatpush2.msra.mxu0 0.0
    %1468 = vmatprep.subr.mxu0 0.0
    %1469 = vmatpush2.msra.mxu0 0.0
    %1470 = vmatprep.subr.mxu0 0.0
    %1471 = vmatpush2.msra.mxu0 0.0
    %1472 = vmatprep.subr.mxu0 0.0
    %1473 = vmatpush2.msra.mxu0 0.0
    %1474 = vmatprep.subr.mxu0 0.0
    %1475 = vmatpush2.msra.mxu0 0.0
    %1476 = vmatprep.subr.mxu0 0.0
    %1477 = vmatpush2.msra.mxu0 0.0
    %1478 = vmatprep.subr.mxu0 0.0
    %1479 = vmatpush2.msra.mxu0 0.0
    %1480 = vmatprep.subr.mxu0 0.0
    %1481 = vmatpush2.msra.mxu0 0.0
    %1482 = vmatprep.subr.mxu0 0.0
    %1483 = vmatpush2.msra.mxu0 0.0
    %1484 = vmatprep.subr.mxu0 0.0
    %1485 = vmatpush2.msra.mxu0 0.0
    %1486 = vmatprep.subr.mxu0 0.0
    %1487 = vmatpush2.msra.mxu0 0.0
    %1488 = vmatprep.subr.mxu0 0.0
    %1489 = vmatpush2.msra.mxu0 0.0
    %1490 = vmatprep.subr.mxu0 0.0
    %1491 = vmatpush2.msra.mxu0 0.0
    %1492 = vmatprep.subr.mxu0 0.0
    %1493 = vmatpush2.msra.mxu0 0.0
    %1494 = vmatprep.subr.mxu0 0.0
    %1495 = vmatpush2.msra.mxu0 0.0
    %1496 = vmatprep.mubr.f32.mxu0 0.0
    %1497 = vmatmul.mubr.f32.gmra.mxu0 %v1430
    %v1498 = vpop.f32.mrf.mxu0
    %v1499 = vadd.f32 0.0, %v1498
    %v1500 = vpop.f32.mrf.mxu0
    %1501 = vdwg.mxu0
    %v1503 = vsel %vm332, %v1423, 0
    %v1506 = vsel %vm332, %v1499, 0
    %1508 = vmatprep.subr.mxu0 0.0
    %1509 = vmatpush1.msra.mxu0 0.0
    %1510 = vmatprep.subr.mxu0 0.0
    %1511 = vmatpush1.msra.mxu0 0.0
    %1512 = vmatprep.subr.mxu0 0.0
    %1513 = vmatpush1.msra.mxu0 0.0
    %1514 = vmatprep.subr.mxu0 0.0
    %1515 = vmatpush1.msra.mxu0 0.0
    %1516 = vmatprep.subr.mxu0 0.0
    %1517 = vmatpush1.msra.mxu0 0.0
    %1518 = vmatprep.subr.mxu0 0.0
    %1519 = vmatpush1.msra.mxu0 0.0
    %1520 = vmatprep.subr.mxu0 0.0
    %1521 = vmatpush1.msra.mxu0 0.0
    %1522 = vmatprep.subr.mxu0 0.0
    %1523 = vmatpush1.msra.mxu0 0.0
    %1524 = vmatprep.subr.mxu0 0.0
    %1525 = vmatpush1.msra.mxu0 0.0
    %1526 = vmatprep.subr.mxu0 0.0
    %1527 = vmatpush1.msra.mxu0 0.0
    %1528 = vmatprep.subr.mxu0 0.0
    %1529 = vmatpush1.msra.mxu0 0.0
    %1530 = vmatprep.subr.mxu0 0.0
    %1531 = vmatpush1.msra.mxu0 0.0
    %1532 = vmatprep.subr.mxu0 0.0
    %1533 = vmatpush1.msra.mxu0 0.0
    %1534 = vmatprep.subr.mxu0 0.0
    %1535 = vmatpush1.msra.mxu0 0.0
    %1536 = vmatprep.subr.mxu0 0.0
    %1537 = vmatpush1.msra.mxu0 0.0
    %1538 = vmatprep.subr.mxu0 0.0
    %1539 = vmatpush1.msra.mxu0 %v238
    %1540 = vmatprep.subr.mxu0 0.0
    %1541 = vmatpush2.msra.mxu0 0.0
    %1542 = vmatprep.subr.mxu0 0.0
    %1543 = vmatpush2.msra.mxu0 0.0
    %1544 = vmatprep.subr.mxu0 0.0
    %1545 = vmatpush2.msra.mxu0 0.0
    %1546 = vmatprep.subr.mxu0 0.0
    %1547 = vmatpush2.msra.mxu0 0.0
    %1548 = vmatprep.subr.mxu0 0.0
    %1549 = vmatpush2.msra.mxu0 0.0
    %1550 = vmatprep.subr.mxu0 0.0
    %1551 = vmatpush2.msra.mxu0 0.0
    %1552 = vmatprep.subr.mxu0 0.0
    %1553 = vmatpush2.msra.mxu0 0.0
    %1554 = vmatprep.subr.mxu0 0.0
    %1555 = vmatpush2.msra.mxu0 0.0
    %1556 = vmatprep.subr.mxu0 0.0
    %1557 = vmatpush2.msra.mxu0 0.0
    %1558 = vmatprep.subr.mxu0 0.0
    %1559 = vmatpush2.msra.mxu0 0.0
    %1560 = vmatprep.subr.mxu0 0.0
    %1561 = vmatpush2.msra.mxu0 0.0
    %1562 = vmatprep.subr.mxu0 0.0
    %1563 = vmatpush2.msra.mxu0 0.0
    %1564 = vmatprep.subr.mxu0 0.0
    %1565 = vmatpush2.msra.mxu0 0.0
    %1566 = vmatprep.subr.mxu0 0.0
    %1567 = vmatpush2.msra.mxu0 0.0
    %1568 = vmatprep.subr.mxu0 0.0
    %1569 = vmatpush2.msra.mxu0 0.0
    %1570 = vmatprep.subr.mxu0 0.0
    %1571 = vmatpush2.msra.mxu0 0.0
    %1572 = vmatprep.mubr.f32.mxu0 0.0
    %1573 = vmatmul.mubr.f32.gmra.mxu0 %v1503
    %v1574 = vpop.f32.mrf.mxu0
    %v1575 = vadd.f32 0.0, %v1574
    %v1576 = vpop.f32.mrf.mxu0
    %1577 = vmatprep.mubr.f32.mxu0 0.0
    %1578 = vmatmul.mubr.f32.gmra.mxu0 %v1506
    %v1579 = vpop.f32.mrf.mxu0
    %v1580 = vadd.f32 0.0, %v1579
    %v1581 = vpop.f32.mrf.mxu0
    %1582 = vdwg.mxu0
    %v1583 = vadd.f32 %v1160, %v1575
    %v1584 = vadd.f32 %v1165, %v1580
    %1585 = vrot.lane.b32.xlu0 %v321, 104
    %v1586 = vpop.permute.xlu0 %1585
    %1587 = vrot.lane.b32.xlu0 %v321, 72
    %v1588 = vpop.permute.xlu0 %1587
    %v1589 = vsel %vm332, %v1586, 0
    %v1591 = vsel %vm332, %v1588, 0
    %1593 = vmatprep.subr.mxu0 0.0
    %1594 = vmatpush1.xpose.msra.mxu0 0.0
    %1595 = vmatprep.subr.mxu0 0.0
    %1596 = vmatpush1.xpose.msra.mxu0 0.0
    %1597 = vmatprep.subr.mxu0 0.0
    %1598 = vmatpush1.xpose.msra.mxu0 0.0
    %1599 = vmatprep.subr.mxu0 0.0
    %1600 = vmatpush1.xpose.msra.mxu0 0.0
    %1601 = vmatprep.subr.mxu0 0.0
    %1602 = vmatpush1.xpose.msra.mxu0 0.0
    %1603 = vmatprep.subr.mxu0 0.0
    %1604 = vmatpush1.xpose.msra.mxu0 0.0
    %1605 = vmatprep.subr.mxu0 0.0
    %1606 = vmatpush1.xpose.msra.mxu0 0.0
    %1607 = vmatprep.subr.mxu0 0.0
    %1608 = vmatpush1.xpose.msra.mxu0 0.0
    %1609 = vmatprep.subr.mxu0 0.0
    %1610 = vmatpush1.xpose.msra.mxu0 0.0
    %1611 = vmatprep.subr.mxu0 0.0
    %1612 = vmatpush1.xpose.msra.mxu0 0.0
    %1613 = vmatprep.subr.mxu0 0.0
    %1614 = vmatpush1.xpose.msra.mxu0 0.0
    %1615 = vmatprep.subr.mxu0 0.0
    %1616 = vmatpush1.xpose.msra.mxu0 0.0
    %1617 = vmatprep.subr.mxu0 0.0
    %1618 = vmatpush1.xpose.msra.mxu0 0.0
    %1619 = vmatprep.subr.mxu0 0.0
    %1620 = vmatpush1.xpose.msra.mxu0 0.0
    %1621 = vmatprep.subr.mxu0 0.0
    %1622 = vmatpush1.xpose.msra.mxu0 0.0
    %1623 = vmatprep.subr.mxu0 0.0
    %1624 = vmatpush1.xpose.msra.mxu0 %v1591
    %1625 = vmatprep.subr.mxu0 0.0
    %1626 = vmatpush2.xpose.msra.mxu0 0.0
    %1627 = vmatprep.subr.mxu0 0.0
    %1628 = vmatpush2.xpose.msra.mxu0 0.0
    %1629 = vmatprep.subr.mxu0 0.0
    %1630 = vmatpush2.xpose.msra.mxu0 0.0
    %1631 = vmatprep.subr.mxu0 0.0
    %1632 = vmatpush2.xpose.msra.mxu0 0.0
    %1633 = vmatprep.subr.mxu0 0.0
    %1634 = vmatpush2.xpose.msra.mxu0 0.0
    %1635 = vmatprep.subr.mxu0 0.0
    %1636 = vmatpush2.xpose.msra.mxu0 0.0
    %1637 = vmatprep.subr.mxu0 0.0
    %1638 = vmatpush2.xpose.msra.mxu0 0.0
    %1639 = vmatprep.subr.mxu0 0.0
    %1640 = vmatpush2.xpose.msra.mxu0 0.0
    %1641 = vmatprep.subr.mxu0 0.0
    %1642 = vmatpush2.xpose.msra.mxu0 0.0
    %1643 = vmatprep.subr.mxu0 0.0
    %1644 = vmatpush2.xpose.msra.mxu0 0.0
    %1645 = vmatprep.subr.mxu0 0.0
    %1646 = vmatpush2.xpose.msra.mxu0 0.0
    %1647 = vmatprep.subr.mxu0 0.0
    %1648 = vmatpush2.xpose.msra.mxu0 0.0
    %1649 = vmatprep.subr.mxu0 0.0
    %1650 = vmatpush2.xpose.msra.mxu0 0.0
    %1651 = vmatprep.subr.mxu0 0.0
    %1652 = vmatpush2.xpose.msra.mxu0 0.0
    %1653 = vmatprep.subr.mxu0 0.0
    %1654 = vmatpush2.xpose.msra.mxu0 0.0
    %1655 = vmatprep.subr.mxu0 0.0
    %1656 = vmatpush2.xpose.msra.mxu0 0.0
    %1657 = vmatprep.mubr.f32.mxu0 0.0
    %1658 = vmatmul.mubr.f32.gmra.mxu0 %v1589
    %v1659 = vpop.f32.mrf.mxu0
    %v1660 = vadd.f32 0.0, %v1659
    %v1661 = vpop.f32.mrf.mxu0
    %1662 = vdwg.mxu0
    %1663 = vrot.lane.b32.xlu0 %v326, 104
    %v1664 = vpop.permute.xlu0 %1663
    %1665 = vrot.lane.b32.xlu0 %v326, 72
    %v1666 = vpop.permute.xlu0 %1665
    %v1667 = vsel %vm332, %v1664, 0
    %v1669 = vsel %vm332, %v1666, 0
    %1671 = vmatprep.subr.mxu0 0.0
    %1672 = vmatpush1.xpose.msra.mxu0 0.0
    %1673 = vmatprep.subr.mxu0 0.0
    %1674 = vmatpush1.xpose.msra.mxu0 0.0
    %1675 = vmatprep.subr.mxu0 0.0
    %1676 = vmatpush1.xpose.msra.mxu0 0.0
    %1677 = vmatprep.subr.mxu0 0.0
    %1678 = vmatpush1.xpose.msra.mxu0 0.0
    %1679 = vmatprep.subr.mxu0 0.0
    %1680 = vmatpush1.xpose.msra.mxu0 0.0
    %1681 = vmatprep.subr.mxu0 0.0
    %1682 = vmatpush1.xpose.msra.mxu0 0.0
    %1683 = vmatprep.subr.mxu0 0.0
    %1684 = vmatpush1.xpose.msra.mxu0 0.0
    %1685 = vmatprep.subr.mxu0 0.0
    %1686 = vmatpush1.xpose.msra.mxu0 0.0
    %1687 = vmatprep.subr.mxu0 0.0
    %1688 = vmatpush1.xpose.msra.mxu0 0.0
    %1689 = vmatprep.subr.mxu0 0.0
    %1690 = vmatpush1.xpose.msra.mxu0 0.0
    %1691 = vmatprep.subr.mxu0 0.0
    %1692 = vmatpush1.xpose.msra.mxu0 0.0
    %1693 = vmatprep.subr.mxu0 0.0
    %1694 = vmatpush1.xpose.msra.mxu0 0.0
    %1695 = vmatprep.subr.mxu0 0.0
    %1696 = vmatpush1.xpose.msra.mxu0 0.0
    %1697 = vmatprep.subr.mxu0 0.0
    %1698 = vmatpush1.xpose.msra.mxu0 0.0
    %1699 = vmatprep.subr.mxu0 0.0
    %1700 = vmatpush1.xpose.msra.mxu0 0.0
    %1701 = vmatprep.subr.mxu0 0.0
    %1702 = vmatpush1.xpose.msra.mxu0 %v1669
    %1703 = vmatprep.subr.mxu0 0.0
    %1704 = vmatpush2.xpose.msra.mxu0 0.0
    %1705 = vmatprep.subr.mxu0 0.0
    %1706 = vmatpush2.xpose.msra.mxu0 0.0
    %1707 = vmatprep.subr.mxu0 0.0
    %1708 = vmatpush2.xpose.msra.mxu0 0.0
    %1709 = vmatprep.subr.mxu0 0.0
    %1710 = vmatpush2.xpose.msra.mxu0 0.0
    %1711 = vmatprep.subr.mxu0 0.0
    %1712 = vmatpush2.xpose.msra.mxu0 0.0
    %1713 = vmatprep.subr.mxu0 0.0
    %1714 = vmatpush2.xpose.msra.mxu0 0.0
    %1715 = vmatprep.subr.mxu0 0.0
    %1716 = vmatpush2.xpose.msra.mxu0 0.0
    %1717 = vmatprep.subr.mxu0 0.0
    %1718 = vmatpush2.xpose.msra.mxu0 0.0
    %1719 = vmatprep.subr.mxu0 0.0
    %1720 = vmatpush2.xpose.msra.mxu0 0.0
    %1721 = vmatprep.subr.mxu0 0.0
    %1722 = vmatpush2.xpose.msra.mxu0 0.0
    %1723 = vmatprep.subr.mxu0 0.0
    %1724 = vmatpush2.xpose.msra.mxu0 0.0
    %1725 = vmatprep.subr.mxu0 0.0
    %1726 = vmatpush2.xpose.msra.mxu0 0.0
    %1727 = vmatprep.subr.mxu0 0.0
    %1728 = vmatpush2.xpose.msra.mxu0 0.0
    %1729 = vmatprep.subr.mxu0 0.0
    %1730 = vmatpush2.xpose.msra.mxu0 0.0
    %1731 = vmatprep.subr.mxu0 0.0
    %1732 = vmatpush2.xpose.msra.mxu0 0.0
    %1733 = vmatprep.subr.mxu0 0.0
    %1734 = vmatpush2.xpose.msra.mxu0 0.0
    %1735 = vmatprep.mubr.f32.mxu0 0.0
    %1736 = vmatmul.mubr.f32.gmra.mxu0 %v1667
    %v1737 = vpop.f32.mrf.mxu0
    %v1738 = vadd.f32 0.0, %v1737
    %v1739 = vpop.f32.mrf.mxu0
    %1740 = vdwg.mxu0
    %v1741 = vmul.f32 %v1660, 0.35355338
    %v1742 = vmul.f32 %v1738, 0.35355338
    %v1743 = vadd.f32 %v1741, %v489
    %v1744 = vadd.f32 %v1742, %v493
    %v1745 = vsel %vm332, %v1743, -inf
    %1746 = vmax.xlane.f32.xlu0 %v1745
    %v1747 = vpop.xlane.xlu0 %1746
    %v1748 = vsel %vm332, %v1744, -inf
    %1749 = vmax.xlane.f32.xlu0 %v1748
    %v1750 = vpop.xlane.xlu0 %1749
    %v1751 = vsub.f32 %v1743, %v1747
    %v1752 = vsub.f32 %v1744, %v1750
    %v1753 = vmul.f32 %v1751, 1.442695
    %v1754 = vpow.pop %v1753
    %v1755 = vmul.f32 %v1752, 1.442695
    %v1756 = vpow.pop %v1755
    %v1757 = vsel %vm332, %v1754, 0.0
    %1758 = vadd.xlane.f32.xlu0 %v1757
    %v1759 = vpop.xlane.xlu0 %1758
    %v1760 = vsel %vm332, %v1756, 0.0
    %1761 = vadd.xlane.f32.xlu0 %v1760
    %v1762 = vpop.xlane.xlu0 %1761
    %v1763 = vrcp.pop %v1759
    %v1764 = vrcp.pop %v1762
    %v1765 = vmul.f32 %v1754, %v1763
    %v1766 = vmul.f32 %v1756, %v1764
    %1767 = vrot.lane.b32.xlu0 %v321, 40
    %v1768 = vpop.permute.xlu0 %1767
    %v1771 = vsel %vm332, %v1765, 0
    %1773 = vmatprep.subr.mxu0 0.0
    %1774 = vmatpush1.msra.mxu0 0.0
    %1775 = vmatprep.subr.mxu0 0.0
    %1776 = vmatpush1.msra.mxu0 0.0
    %1777 = vmatprep.subr.mxu0 0.0
    %1778 = vmatpush1.msra.mxu0 0.0
    %1779 = vmatprep.subr.mxu0 0.0
    %1780 = vmatpush1.msra.mxu0 0.0
    %1781 = vmatprep.subr.mxu0 0.0
    %1782 = vmatpush1.msra.mxu0 0.0
    %1783 = vmatprep.subr.mxu0 0.0
    %1784 = vmatpush1.msra.mxu0 0.0
    %1785 = vmatprep.subr.mxu0 0.0
    %1786 = vmatpush1.msra.mxu0 0.0
    %1787 = vmatprep.subr.mxu0 0.0
    %1788 = vmatpush1.msra.mxu0 0.0
    %1789 = vmatprep.subr.mxu0 0.0
    %1790 = vmatpush1.msra.mxu0 0.0
    %1791 = vmatprep.subr.mxu0 0.0
    %1792 = vmatpush1.msra.mxu0 0.0
    %1793 = vmatprep.subr.mxu0 0.0
    %1794 = vmatpush1.msra.mxu0 0.0
    %1795 = vmatprep.subr.mxu0 0.0
    %1796 = vmatpush1.msra.mxu0 0.0
    %1797 = vmatprep.subr.mxu0 0.0
    %1798 = vmatpush1.msra.mxu0 0.0
    %1799 = vmatprep.subr.mxu0 0.0
    %1800 = vmatpush1.msra.mxu0 0.0
    %1801 = vmatprep.subr.mxu0 0.0
    %1802 = vmatpush1.msra.mxu0 0.0
    %1803 = vmatprep.subr.mxu0 0.0
    %1804 = vmatpush1.msra.mxu0 %v1768
    %1805 = vmatprep.subr.mxu0 0.0
    %1806 = vmatpush2.msra.mxu0 0.0
    %1807 = vmatprep.subr.mxu0 0.0
    %1808 = vmatpush2.msra.mxu0 0.0
    %1809 = vmatprep.subr.mxu0 0.0
    %1810 = vmatpush2.msra.mxu0 0.0
    %1811 = vmatprep.subr.mxu0 0.0
    %1812 = vmatpush2.msra.mxu0 0.0
    %1813 = vmatprep.subr.mxu0 0.0
    %1814 = vmatpush2.msra.mxu0 0.0
    %1815 = vmatprep.subr.mxu0 0.0
    %1816 = vmatpush2.msra.mxu0 0.0
    %1817 = vmatprep.subr.mxu0 0.0
    %1818 = vmatpush2.msra.mxu0 0.0
    %1819 = vmatprep.subr.mxu0 0.0
    %1820 = vmatpush2.msra.mxu0 0.0
    %1821 = vmatprep.subr.mxu0 0.0
    %1822 = vmatpush2.msra.mxu0 0.0
    %1823 = vmatprep.subr.mxu0 0.0
    %1824 = vmatpush2.msra.mxu0 0.0
    %1825 = vmatprep.subr.mxu0 0.0
    %1826 = vmatpush2.msra.mxu0 0.0
    %1827 = vmatprep.subr.mxu0 0.0
    %1828 = vmatpush2.msra.mxu0 0.0
    %1829 = vmatprep.subr.mxu0 0.0
    %1830 = vmatpush2.msra.mxu0 0.0
    %1831 = vmatprep.subr.mxu0 0.0
    %1832 = vmatpush2.msra.mxu0 0.0
    %1833 = vmatprep.subr.mxu0 0.0
    %1834 = vmatpush2.msra.mxu0 0.0
    %1835 = vmatprep.subr.mxu0 0.0
    %1836 = vmatpush2.msra.mxu0 0.0
    %1837 = vmatprep.mubr.f32.mxu0 0.0
    %1838 = vmatmul.mubr.f32.gmra.mxu0 %v1771
    %v1839 = vpop.f32.mrf.mxu0
    %v1840 = vadd.f32 0.0, %v1839
    %v1841 = vpop.f32.mrf.mxu0
    %1842 = vdwg.mxu0
    %1843 = vrot.lane.b32.xlu0 %v326, 40
    %v1844 = vpop.permute.xlu0 %1843
    %v1847 = vsel %vm332, %v1766, 0
    %1849 = vmatprep.subr.mxu0 0.0
    %1850 = vmatpush1.msra.mxu0 0.0
    %1851 = vmatprep.subr.mxu0 0.0
    %1852 = vmatpush1.msra.mxu0 0.0
    %1853 = vmatprep.subr.mxu0 0.0
    %1854 = vmatpush1.msra.mxu0 0.0
    %1855 = vmatprep.subr.mxu0 0.0
    %1856 = vmatpush1.msra.mxu0 0.0
    %1857 = vmatprep.subr.mxu0 0.0
    %1858 = vmatpush1.msra.mxu0 0.0
    %1859 = vmatprep.subr.mxu0 0.0
    %1860 = vmatpush1.msra.mxu0 0.0
    %1861 = vmatprep.subr.mxu0 0.0
    %1862 = vmatpush1.msra.mxu0 0.0
    %1863 = vmatprep.subr.mxu0 0.0
    %1864 = vmatpush1.msra.mxu0 0.0
    %1865 = vmatprep.subr.mxu0 0.0
    %1866 = vmatpush1.msra.mxu0 0.0
    %1867 = vmatprep.subr.mxu0 0.0
    %1868 = vmatpush1.msra.mxu0 0.0
    %1869 = vmatprep.subr.mxu0 0.0
    %1870 = vmatpush1.msra.mxu0 0.0
    %1871 = vmatprep.subr.mxu0 0.0
    %1872 = vmatpush1.msra.mxu0 0.0
    %1873 = vmatprep.subr.mxu0 0.0
    %1874 = vmatpush1.msra.mxu0 0.0
    %1875 = vmatprep.subr.mxu0 0.0
    %1876 = vmatpush1.msra.mxu0 0.0
    %1877 = vmatprep.subr.mxu0 0.0
    %1878 = vmatpush1.msra.mxu0 0.0
    %1879 = vmatprep.subr.mxu0 0.0
    %1880 = vmatpush1.msra.mxu0 %v1844
    %1881 = vmatprep.subr.mxu0 0.0
    %1882 = vmatpush2.msra.mxu0 0.0
    %1883 = vmatprep.subr.mxu0 0.0
    %1884 = vmatpush2.msra.mxu0 0.0
    %1885 = vmatprep.subr.mxu0 0.0
    %1886 = vmatpush2.msra.mxu0 0.0
    %1887 = vmatprep.subr.mxu0 0.0
    %1888 = vmatpush2.msra.mxu0 0.0
    %1889 = vmatprep.subr.mxu0 0.0
    %1890 = vmatpush2.msra.mxu0 0.0
    %1891 = vmatprep.subr.mxu0 0.0
    %1892 = vmatpush2.msra.mxu0 0.0
    %1893 = vmatprep.subr.mxu0 0.0
    %1894 = vmatpush2.msra.mxu0 0.0
    %1895 = vmatprep.subr.mxu0 0.0
    %1896 = vmatpush2.msra.mxu0 0.0
    %1897 = vmatprep.subr.mxu0 0.0
    %1898 = vmatpush2.msra.mxu0 0.0
    %1899 = vmatprep.subr.mxu0 0.0
    %1900 = vmatpush2.msra.mxu0 0.0
    %1901 = vmatprep.subr.mxu0 0.0
    %1902 = vmatpush2.msra.mxu0 0.0
    %1903 = vmatprep.subr.mxu0 0.0
    %1904 = vmatpush2.msra.mxu0 0.0
    %1905 = vmatprep.subr.mxu0 0.0
    %1906 = vmatpush2.msra.mxu0 0.0
    %1907 = vmatprep.subr.mxu0 0.0
    %1908 = vmatpush2.msra.mxu0 0.0
    %1909 = vmatprep.subr.mxu0 0.0
    %1910 = vmatpush2.msra.mxu0 0.0
    %1911 = vmatprep.subr.mxu0 0.0
    %1912 = vmatpush2.msra.mxu0 0.0
    %1913 = vmatprep.mubr.f32.mxu0 0.0
    %1914 = vmatmul.mubr.f32.gmra.mxu0 %v1847
    %v1915 = vpop.f32.mrf.mxu0
    %v1916 = vadd.f32 0.0, %v1915
    %v1917 = vpop.f32.mrf.mxu0
    %1918 = vdwg.mxu0
    %v1920 = vsel %vm332, %v1840, 0
    %v1923 = vsel %vm332, %v1916, 0
    %1925 = vmatprep.subr.mxu0 0.0
    %1926 = vmatpush1.msra.mxu0 0.0
    %1927 = vmatprep.subr.mxu0 0.0
    %1928 = vmatpush1.msra.mxu0 0.0
    %1929 = vmatprep.subr.mxu0 0.0
    %1930 = vmatpush1.msra.mxu0 0.0
    %1931 = vmatprep.subr.mxu0 0.0
    %1932 = vmatpush1.msra.mxu0 0.0
    %1933 = vmatprep.subr.mxu0 0.0
    %1934 = vmatpush1.msra.mxu0 0.0
    %1935 = vmatprep.subr.mxu0 0.0
    %1936 = vmatpush1.msra.mxu0 0.0
    %1937 = vmatprep.subr.mxu0 0.0
    %1938 = vmatpush1.msra.mxu0 0.0
    %1939 = vmatprep.subr.mxu0 0.0
    %1940 = vmatpush1.msra.mxu0 0.0
    %1941 = vmatprep.subr.mxu0 0.0
    %1942 = vmatpush1.msra.mxu0 0.0
    %1943 = vmatprep.subr.mxu0 0.0
    %1944 = vmatpush1.msra.mxu0 0.0
    %1945 = vmatprep.subr.mxu0 0.0
    %1946 = vmatpush1.msra.mxu0 0.0
    %1947 = vmatprep.subr.mxu0 0.0
    %1948 = vmatpush1.msra.mxu0 0.0
    %1949 = vmatprep.subr.mxu0 0.0
    %1950 = vmatpush1.msra.mxu0 0.0
    %1951 = vmatprep.subr.mxu0 0.0
    %1952 = vmatpush1.msra.mxu0 0.0
    %1953 = vmatprep.subr.mxu0 0.0
    %1954 = vmatpush1.msra.mxu0 0.0
    %1955 = vmatprep.subr.mxu0 0.0
    %1956 = vmatpush1.msra.mxu0 %v239
    %1957 = vmatprep.subr.mxu0 0.0
    %1958 = vmatpush2.msra.mxu0 0.0
    %1959 = vmatprep.subr.mxu0 0.0
    %1960 = vmatpush2.msra.mxu0 0.0
    %1961 = vmatprep.subr.mxu0 0.0
    %1962 = vmatpush2.msra.mxu0 0.0
    %1963 = vmatprep.subr.mxu0 0.0
    %1964 = vmatpush2.msra.mxu0 0.0
    %1965 = vmatprep.subr.mxu0 0.0
    %1966 = vmatpush2.msra.mxu0 0.0
    %1967 = vmatprep.subr.mxu0 0.0
    %1968 = vmatpush2.msra.mxu0 0.0
    %1969 = vmatprep.subr.mxu0 0.0
    %1970 = vmatpush2.msra.mxu0 0.0
    %1971 = vmatprep.subr.mxu0 0.0
    %1972 = vmatpush2.msra.mxu0 0.0
    %1973 = vmatprep.subr.mxu0 0.0
    %1974 = vmatpush2.msra.mxu0 0.0
    %1975 = vmatprep.subr.mxu0 0.0
    %1976 = vmatpush2.msra.mxu0 0.0
    %1977 = vmatprep.subr.mxu0 0.0
    %1978 = vmatpush2.msra.mxu0 0.0
    %1979 = vmatprep.subr.mxu0 0.0
    %1980 = vmatpush2.msra.mxu0 0.0
    %1981 = vmatprep.subr.mxu0 0.0
    %1982 = vmatpush2.msra.mxu0 0.0
    %1983 = vmatprep.subr.mxu0 0.0
    %1984 = vmatpush2.msra.mxu0 0.0
    %1985 = vmatprep.subr.mxu0 0.0
    %1986 = vmatpush2.msra.mxu0 0.0
    %1987 = vmatprep.subr.mxu0 0.0
    %1988 = vmatpush2.msra.mxu0 0.0
    %1989 = vmatprep.mubr.f32.mxu0 0.0
    %1990 = vmatmul.mubr.f32.gmra.mxu0 %v1920
    %v1991 = vpop.f32.mrf.mxu0
    %v1992 = vadd.f32 0.0, %v1991
    %v1993 = vpop.f32.mrf.mxu0
    %1994 = vmatprep.mubr.f32.mxu0 0.0
    %1995 = vmatmul.mubr.f32.gmra.mxu0 %v1923
    %v1996 = vpop.f32.mrf.mxu0
    %v1997 = vadd.f32 0.0, %v1996
    %v1998 = vpop.f32.mrf.mxu0
    %1999 = vdwg.mxu0
    %v2000 = vadd.f32 %v1583, %v1992
    %v2001 = vadd.f32 %v1584, %v1997
    %v2003 = vlaneseq
    %v2004 = vshrl.u32 %v2003, 7
    %v2005 = vsub.s32 0, %v2004
    %v2006 = vrot.slane %v240, %v2005
    %v2008 = vadd.f32 %v2000, %v2006
    %v2009 = vadd.f32 %v2001, %v2006
    %v2010 = vadd.f32 %v229, %v2008
    %v2011 = vadd.f32 %v230, %v2009
    %v2012 = vld [vmem:[%s7] sm:$0x1]
    %v2013 = vld [vmem:[%s8] sm:$0x1]
    %v2014 = vsel %vm247, %v2010, 0.0
    %2015 = vadd.xlane.f32.xlu0 %v2014
    %v2016 = vpop.xlane.xlu0 %2015
    %v2017 = vsel %vm247, %v2011, 0.0
    %2018 = vadd.xlane.f32.xlu0 %v2017
    %v2019 = vpop.xlane.xlu0 %2018
    %v2020 = vrcp.pop 32.0
    %v2021 = vmul.f32 %v2016, %v2020
    %v2022 = vmul.f32 %v2019, %v2020
    %v2023 = vmul.f32 %v2010, %v2010
    %v2024 = vmul.f32 %v2011, %v2011
    %v2025 = vsel %vm247, %v2023, 0.0
    %2026 = vadd.xlane.f32.xlu0 %v2025
    %v2027 = vpop.xlane.xlu0 %2026
    %v2028 = vsel %vm247, %v2024, 0.0
    %2029 = vadd.xlane.f32.xlu0 %v2028
    %v2030 = vpop.xlane.xlu0 %2029
    %v2031 = vmul.f32 %v2027, %v2020
    %v2032 = vmul.f32 %v2030, %v2020
    %v2033 = vmul.f32 %v2021, %v2021
    %v2034 = vmul.f32 %v2022, %v2022
    %v2035 = vsub.f32 %v2031, %v2033
    %v2036 = vsub.f32 %v2032, %v2034
    %v2037 = vsub.f32 %v2010, %v2021
    %v2038 = vsub.f32 %v2011, %v2022
    %v2039 = vadd.f32 %v2035, 1e-05
    %v2040 = vadd.f32 %v2036, 1e-05
    %v2041 = vrsqrt.pop %v2039
    %v2042 = vrsqrt.pop %v2040
    %v2043 = vmul.f32 %v2037, %v2041
    %v2044 = vmul.f32 %v2038, %v2042
    %v2046 = vlaneseq
    %v2047 = vshrl.u32 %v2046, 7
    %v2048 = vsub.s32 0, %v2047
    %v2049 = vrot.slane %v2012, %v2048
    %v2051 = vmul.f32 %v2043, %v2049
    %v2052 = vmul.f32 %v2044, %v2049
    %v2054 = vlaneseq
    %v2055 = vshrl.u32 %v2054, 7
    %v2056 = vsub.s32 0, %v2055
    %v2057 = vrot.slane %v2013, %v2056
    %v2059 = vadd.f32 %v2051, %v2057
    %v2060 = vadd.f32 %v2052, %v2057
    %v2061 = vld [vmem:[#allocation11] sm:$0xff]
    %v2062 = vld [vmem:[#allocation11 + $0x8] sm:$0xff]
    %v2063 = vld [vmem:[#allocation11 + $0x10] sm:$0xff]
    %v2064 = vld [vmem:[#allocation11 + $0x18] sm:$0xff]
    %v2065 = vld [vmem:[%s10] sm:$0x1]
    %v2067 = vlaneseq
    %v2068 = vshrl.u32 %v2067, 7
    %v2069 = vsub.s32 0, %v2068
    %v2070 = vrot.slane %v2065, %v2069
    %v2073 = vsel %vm247, %v2059, 0
    %v2076 = vsel %vm247, %v2060, 0
    %2078 = vmatprep.subr.mxu0 0.0
    %2079 = vmatpush1.msra.mxu0 0.0
    %2080 = vmatprep.subr.mxu0 0.0
    %2081 = vmatpush1.msra.mxu0 0.0
    %2082 = vmatprep.subr.mxu0 0.0
    %2083 = vmatpush1.msra.mxu0 0.0
    %2084 = vmatprep.subr.mxu0 0.0
    %2085 = vmatpush1.msra.mxu0 0.0
    %2086 = vmatprep.subr.mxu0 0.0
    %2087 = vmatpush1.msra.mxu0 0.0
    %2088 = vmatprep.subr.mxu0 0.0
    %2089 = vmatpush1.msra.mxu0 0.0
    %2090 = vmatprep.subr.mxu0 0.0
    %2091 = vmatpush1.msra.mxu0 0.0
    %2092 = vmatprep.subr.mxu0 0.0
    %2093 = vmatpush1.msra.mxu0 0.0
    %2094 = vmatprep.subr.mxu0 0.0
    %2095 = vmatpush1.msra.mxu0 0.0
    %2096 = vmatprep.subr.mxu0 0.0
    %2097 = vmatpush1.msra.mxu0 0.0
    %2098 = vmatprep.subr.mxu0 0.0
    %2099 = vmatpush1.msra.mxu0 0.0
    %2100 = vmatprep.subr.mxu0 0.0
    %2101 = vmatpush1.msra.mxu0 0.0
    %2102 = vmatprep.subr.mxu0 0.0
    %2103 = vmatpush1.msra.mxu0 %v2064
    %2104 = vmatprep.subr.mxu0 0.0
    %2105 = vmatpush1.msra.mxu0 %v2063
    %2106 = vmatprep.subr.mxu0 0.0
    %2107 = vmatpush1.msra.mxu0 %v2062
    %2108 = vmatprep.subr.mxu0 0.0
    %2109 = vmatpush1.msra.mxu0 %v2061
    %2110 = vmatprep.subr.mxu0 0.0
    %2111 = vmatpush2.msra.mxu0 0.0
    %2112 = vmatprep.subr.mxu0 0.0
    %2113 = vmatpush2.msra.mxu0 0.0
    %2114 = vmatprep.subr.mxu0 0.0
    %2115 = vmatpush2.msra.mxu0 0.0
    %2116 = vmatprep.subr.mxu0 0.0
    %2117 = vmatpush2.msra.mxu0 0.0
    %2118 = vmatprep.subr.mxu0 0.0
    %2119 = vmatpush2.msra.mxu0 0.0
    %2120 = vmatprep.subr.mxu0 0.0
    %2121 = vmatpush2.msra.mxu0 0.0
    %2122 = vmatprep.subr.mxu0 0.0
    %2123 = vmatpush2.msra.mxu0 0.0
    %2124 = vmatprep.subr.mxu0 0.0
    %2125 = vmatpush2.msra.mxu0 0.0
    %2126 = vmatprep.subr.mxu0 0.0
    %2127 = vmatpush2.msra.mxu0 0.0
    %2128 = vmatprep.subr.mxu0 0.0
    %2129 = vmatpush2.msra.mxu0 0.0
    %2130 = vmatprep.subr.mxu0 0.0
    %2131 = vmatpush2.msra.mxu0 0.0
    %2132 = vmatprep.subr.mxu0 0.0
    %2133 = vmatpush2.msra.mxu0 0.0
    %2134 = vmatprep.subr.mxu0 0.0
    %2135 = vmatpush2.msra.mxu0 0.0
    %2136 = vmatprep.subr.mxu0 0.0
    %2137 = vmatpush2.msra.mxu0 0.0
    %2138 = vmatprep.subr.mxu0 0.0
    %2139 = vmatpush2.msra.mxu0 0.0
    %2140 = vmatprep.subr.mxu0 0.0
    %2141 = vmatpush2.msra.mxu0 0.0
    %2142 = vmatprep.mubr.f32.mxu0 0.0
    %2143 = vmatmul.mubr.f32.gmra.mxu0 %v2073
    %v2144 = vpop.f32.mrf.mxu0
    %v2145 = vadd.f32 %v2070, %v2144
    %v2146 = vpop.f32.mrf.mxu0
    %2147 = vmatprep.mubr.f32.mxu0 0.0
    %2148 = vmatmul.mubr.f32.gmra.mxu0 %v2076
    %v2149 = vpop.f32.mrf.mxu0
    %v2150 = vadd.f32 %v2070, %v2149
    %v2151 = vpop.f32.mrf.mxu0
    %2152 = vdwg.mxu0
    %v2153 = vmax.f32 %v2145, 0.0
    %v2154 = vmax.f32 %v2150, 0.0
    %v2155 = vld [vmem:[#allocation13] sm:$0xff]
    %v2156 = vld [vmem:[#allocation13 + $0x8] sm:$0xff]
    %v2157 = vld [vmem:[#allocation13 + $0x10] sm:$0xff]
    %v2158 = vld [vmem:[#allocation13 + $0x18] sm:$0xff]
    %v2159 = vld [vmem:[%s12] sm:$0x1]
    %v2161 = vlaneseq
    %v2162 = vshrl.u32 %v2161, 7
    %v2163 = vsub.s32 0, %v2162
    %v2164 = vrot.slane %v2159, %v2163
    %v2167 = vsel %vm247, %v2153, 0
    %v2170 = vsel %vm247, %v2154, 0
    %2172 = vmatprep.subr.mxu0 0.0
    %2173 = vmatpush1.msra.mxu0 0.0
    %2174 = vmatprep.subr.mxu0 0.0
    %2175 = vmatpush1.msra.mxu0 0.0
    %2176 = vmatprep.subr.mxu0 0.0
    %2177 = vmatpush1.msra.mxu0 0.0
    %2178 = vmatprep.subr.mxu0 0.0
    %2179 = vmatpush1.msra.mxu0 0.0
    %2180 = vmatprep.subr.mxu0 0.0
    %2181 = vmatpush1.msra.mxu0 0.0
    %2182 = vmatprep.subr.mxu0 0.0
    %2183 = vmatpush1.msra.mxu0 0.0
    %2184 = vmatprep.subr.mxu0 0.0
    %2185 = vmatpush1.msra.mxu0 0.0
    %2186 = vmatprep.subr.mxu0 0.0
    %2187 = vmatpush1.msra.mxu0 0.0
    %2188 = vmatprep.subr.mxu0 0.0
    %2189 = vmatpush1.msra.mxu0 0.0
    %2190 = vmatprep.subr.mxu0 0.0
    %2191 = vmatpush1.msra.mxu0 0.0
    %2192 = vmatprep.subr.mxu0 0.0
    %2193 = vmatpush1.msra.mxu0 0.0
    %2194 = vmatprep.subr.mxu0 0.0
    %2195 = vmatpush1.msra.mxu0 0.0
    %2196 = vmatprep.subr.mxu0 0.0
    %2197 = vmatpush1.msra.mxu0 %v2158
    %2198 = vmatprep.subr.mxu0 0.0
    %2199 = vmatpush1.msra.mxu0 %v2157
    %2200 = vmatprep.subr.mxu0 0.0
    %2201 = vmatpush1.msra.mxu0 %v2156
    %2202 = vmatprep.subr.mxu0 0.0
    %2203 = vmatpush1.msra.mxu0 %v2155
    %2204 = vmatprep.subr.mxu0 0.0
    %2205 = vmatpush2.msra.mxu0 0.0
    %2206 = vmatprep.subr.mxu0 0.0
    %2207 = vmatpush2.msra.mxu0 0.0
    %2208 = vmatprep.subr.mxu0 0.0
    %2209 = vmatpush2.msra.mxu0 0.0
    %2210 = vmatprep.subr.mxu0 0.0
    %2211 = vmatpush2.msra.mxu0 0.0
    %2212 = vmatprep.subr.mxu0 0.0
    %2213 = vmatpush2.msra.mxu0 0.0
    %2214 = vmatprep.subr.mxu0 0.0
    %2215 = vmatpush2.msra.mxu0 0.0
    %2216 = vmatprep.subr.mxu0 0.0
    %2217 = vmatpush2.msra.mxu0 0.0
    %2218 = vmatprep.subr.mxu0 0.0
    %2219 = vmatpush2.msra.mxu0 0.0
    %2220 = vmatprep.subr.mxu0 0.0
    %2221 = vmatpush2.msra.mxu0 0.0
    %2222 = vmatprep.subr.mxu0 0.0
    %2223 = vmatpush2.msra.mxu0 0.0
    %2224 = vmatprep.subr.mxu0 0.0
    %2225 = vmatpush2.msra.mxu0 0.0
    %2226 = vmatprep.subr.mxu0 0.0
    %2227 = vmatpush2.msra.mxu0 0.0
    %2228 = vmatprep.subr.mxu0 0.0
    %2229 = vmatpush2.msra.mxu0 0.0
    %2230 = vmatprep.subr.mxu0 0.0
    %2231 = vmatpush2.msra.mxu0 0.0
    %2232 = vmatprep.subr.mxu0 0.0
    %2233 = vmatpush2.msra.mxu0 0.0
    %2234 = vmatprep.subr.mxu0 0.0
    %2235 = vmatpush2.msra.mxu0 0.0
    %2236 = vmatprep.mubr.f32.mxu0 0.0
    %2237 = vmatmul.mubr.f32.gmra.mxu0 %v2167
    %v2238 = vpop.f32.mrf.mxu0
    %v2239 = vadd.f32 %v2164, %v2238
    %v2240 = vpop.f32.mrf.mxu0
    %2241 = vmatprep.mubr.f32.mxu0 0.0
    %2242 = vmatmul.mubr.f32.gmra.mxu0 %v2170
    %v2243 = vpop.f32.mrf.mxu0
    %v2244 = vadd.f32 %v2164, %v2243
    %v2245 = vpop.f32.mrf.mxu0
    %2246 = vdwg.mxu0
    %v2247 = vadd.f32 %v2059, %v2239
    %v2248 = vadd.f32 %v2060, %v2244
    %v2249 = vld [vmem:[%s13] sm:$0x1]
    %v2250 = vld [vmem:[%s14] sm:$0x1]
    %v2251 = vsel %vm247, %v2247, 0.0
    %2252 = vadd.xlane.f32.xlu0 %v2251
    %v2253 = vpop.xlane.xlu0 %2252
    %v2254 = vsel %vm247, %v2248, 0.0
    %2255 = vadd.xlane.f32.xlu0 %v2254
    %v2256 = vpop.xlane.xlu0 %2255
    %v2257 = vmul.f32 %v2253, %v2020
    %v2258 = vmul.f32 %v2256, %v2020
    %v2259 = vmul.f32 %v2247, %v2247
    %v2260 = vmul.f32 %v2248, %v2248
    %v2261 = vsel %vm247, %v2259, 0.0
    %2262 = vadd.xlane.f32.xlu0 %v2261
    %v2263 = vpop.xlane.xlu0 %2262
    %v2264 = vsel %vm247, %v2260, 0.0
    %2265 = vadd.xlane.f32.xlu0 %v2264
    %v2266 = vpop.xlane.xlu0 %2265
    %v2267 = vmul.f32 %v2263, %v2020
    %v2268 = vmul.f32 %v2266, %v2020
    %v2269 = vmul.f32 %v2257, %v2257
    %v2270 = vmul.f32 %v2258, %v2258
    %v2271 = vsub.f32 %v2267, %v2269
    %v2272 = vsub.f32 %v2268, %v2270
    %v2273 = vsub.f32 %v2247, %v2257
    %v2274 = vsub.f32 %v2248, %v2258
    %v2275 = vadd.f32 %v2271, 1e-05
    %v2276 = vadd.f32 %v2272, 1e-05
    %v2277 = vrsqrt.pop %v2275
    %v2278 = vrsqrt.pop %v2276
    %v2279 = vmul.f32 %v2273, %v2277
    %v2280 = vmul.f32 %v2274, %v2278
    %v2282 = vlaneseq
    %v2283 = vshrl.u32 %v2282, 7
    %v2284 = vsub.s32 0, %v2283
    %v2285 = vrot.slane %v2249, %v2284
    %v2287 = vmul.f32 %v2279, %v2285
    %v2288 = vmul.f32 %v2280, %v2285
    %v2290 = vlaneseq
    %v2291 = vshrl.u32 %v2290, 7
    %v2292 = vsub.s32 0, %v2291
    %v2293 = vrot.slane %v2250, %v2292
    %v2295 = vadd.f32 %v2287, %v2293
    %v2296 = vadd.f32 %v2288, %v2293
    %s2297 = scalar_lea.vmem [#allocation8], 32
    %v2298 = vld [vmem:[%s2297] sm:$0xff]
    %v2299 = vld [vmem:[%s2297 + $0x8] sm:$0xff]
    %v2300 = vld [vmem:[%s2297 + $0x10] sm:$0xff]
    %v2301 = vld [vmem:[%s2297 + $0x18] sm:$0xff]
    %s2302 = scalar_lea.vmem %s4, 1
    %v2303 = vld [vmem:[%s2302] sm:$0x1]
    %s2304 = scalar_lea.vmem [#allocation10], 32
    %v2305 = vld [vmem:[%s2304] sm:$0xff]
    %v2306 = vld [vmem:[%s2304 + $0x8] sm:$0xff]
    %v2307 = vld [vmem:[%s2304 + $0x10] sm:$0xff]
    %v2308 = vld [vmem:[%s2304 + $0x18] sm:$0xff]
    %s2309 = scalar_lea.vmem %s6, 1
    %v2310 = vld [vmem:[%s2309] sm:$0x1]
    %v2312 = vlaneseq
    %v2313 = vshrl.u32 %v2312, 7
    %v2314 = vsub.s32 0, %v2313
    %v2315 = vrot.slane %v2303, %v2314
    %v2318 = vsel %vm247, %v2295, 0
    %v2321 = vsel %vm247, %v2296, 0
    %2323 = vmatprep.subr.mxu0 0.0
    %2324 = vmatpush1.msra.mxu0 0.0
    %2325 = vmatprep.subr.mxu0 0.0
    %2326 = vmatpush1.msra.mxu0 0.0
    %2327 = vmatprep.subr.mxu0 0.0
    %2328 = vmatpush1.msra.mxu0 0.0
    %2329 = vmatprep.subr.mxu0 0.0
    %2330 = vmatpush1.msra.mxu0 0.0
    %2331 = vmatprep.subr.mxu0 0.0
    %2332 = vmatpush1.msra.mxu0 0.0
    %2333 = vmatprep.subr.mxu0 0.0
    %2334 = vmatpush1.msra.mxu0 0.0
    %2335 = vmatprep.subr.mxu0 0.0
    %2336 = vmatpush1.msra.mxu0 0.0
    %2337 = vmatprep.subr.mxu0 0.0
    %2338 = vmatpush1.msra.mxu0 0.0
    %2339 = vmatprep.subr.mxu0 0.0
    %2340 = vmatpush1.msra.mxu0 0.0
    %2341 = vmatprep.subr.mxu0 0.0
    %2342 = vmatpush1.msra.mxu0 0.0
    %2343 = vmatprep.subr.mxu0 0.0
    %2344 = vmatpush1.msra.mxu0 0.0
    %2345 = vmatprep.subr.mxu0 0.0
    %2346 = vmatpush1.msra.mxu0 0.0
    %2347 = vmatprep.subr.mxu0 0.0
    %2348 = vmatpush1.msra.mxu0 %v2301
    %2349 = vmatprep.subr.mxu0 0.0
    %2350 = vmatpush1.msra.mxu0 %v2300
    %2351 = vmatprep.subr.mxu0 0.0
    %2352 = vmatpush1.msra.mxu0 %v2299
    %2353 = vmatprep.subr.mxu0 0.0
    %2354 = vmatpush1.msra.mxu0 %v2298
    %2355 = vmatprep.subr.mxu0 0.0
    %2356 = vmatpush2.msra.mxu0 0.0
    %2357 = vmatprep.subr.mxu0 0.0
    %2358 = vmatpush2.msra.mxu0 0.0
    %2359 = vmatprep.subr.mxu0 0.0
    %2360 = vmatpush2.msra.mxu0 0.0
    %2361 = vmatprep.subr.mxu0 0.0
    %2362 = vmatpush2.msra.mxu0 0.0
    %2363 = vmatprep.subr.mxu0 0.0
    %2364 = vmatpush2.msra.mxu0 0.0
    %2365 = vmatprep.subr.mxu0 0.0
    %2366 = vmatpush2.msra.mxu0 0.0
    %2367 = vmatprep.subr.mxu0 0.0
    %2368 = vmatpush2.msra.mxu0 0.0
    %2369 = vmatprep.subr.mxu0 0.0
    %2370 = vmatpush2.msra.mxu0 0.0
    %2371 = vmatprep.subr.mxu0 0.0
    %2372 = vmatpush2.msra.mxu0 0.0
    %2373 = vmatprep.subr.mxu0 0.0
    %2374 = vmatpush2.msra.mxu0 0.0
    %2375 = vmatprep.subr.mxu0 0.0
    %2376 = vmatpush2.msra.mxu0 0.0
    %2377 = vmatprep.subr.mxu0 0.0
    %2378 = vmatpush2.msra.mxu0 0.0
    %2379 = vmatprep.subr.mxu0 0.0
    %2380 = vmatpush2.msra.mxu0 0.0
    %2381 = vmatprep.subr.mxu0 0.0
    %2382 = vmatpush2.msra.mxu0 0.0
    %2383 = vmatprep.subr.mxu0 0.0
    %2384 = vmatpush2.msra.mxu0 0.0
    %2385 = vmatprep.subr.mxu0 0.0
    %2386 = vmatpush2.msra.mxu0 0.0
    %2387 = vmatprep.mubr.f32.mxu0 0.0
    %2388 = vmatmul.mubr.f32.gmra.mxu0 %v2318
    %v2389 = vpop.f32.mrf.mxu0
    %v2390 = vadd.f32 %v2315, %v2389
    %v2391 = vpop.f32.mrf.mxu0
    %2392 = vmatprep.mubr.f32.mxu0 0.0
    %2393 = vmatmul.mubr.f32.gmra.mxu0 %v2321
    %v2394 = vpop.f32.mrf.mxu0
    %v2395 = vadd.f32 %v2315, %v2394
    %v2396 = vpop.f32.mrf.mxu0
    %2397 = vdwg.mxu0
    %2399 = vrot.lane.b32.xlu0 %v2390, 96
    %v2400 = vpop.permute.xlu0 %2399
    %v2401 = vsel %vm332, %v2390, 0
    %v2403 = vsel %vm332, %v2400, 0
    %2405 = vmatprep.subr.mxu0 0.0
    %2406 = vmatpush1.xpose.msra.mxu0 0.0
    %2407 = vmatprep.subr.mxu0 0.0
    %2408 = vmatpush1.xpose.msra.mxu0 0.0
    %2409 = vmatprep.subr.mxu0 0.0
    %2410 = vmatpush1.xpose.msra.mxu0 0.0
    %2411 = vmatprep.subr.mxu0 0.0
    %2412 = vmatpush1.xpose.msra.mxu0 0.0
    %2413 = vmatprep.subr.mxu0 0.0
    %2414 = vmatpush1.xpose.msra.mxu0 0.0
    %2415 = vmatprep.subr.mxu0 0.0
    %2416 = vmatpush1.xpose.msra.mxu0 0.0
    %2417 = vmatprep.subr.mxu0 0.0
    %2418 = vmatpush1.xpose.msra.mxu0 0.0
    %2419 = vmatprep.subr.mxu0 0.0
    %2420 = vmatpush1.xpose.msra.mxu0 0.0
    %2421 = vmatprep.subr.mxu0 0.0
    %2422 = vmatpush1.xpose.msra.mxu0 0.0
    %2423 = vmatprep.subr.mxu0 0.0
    %2424 = vmatpush1.xpose.msra.mxu0 0.0
    %2425 = vmatprep.subr.mxu0 0.0
    %2426 = vmatpush1.xpose.msra.mxu0 0.0
    %2427 = vmatprep.subr.mxu0 0.0
    %2428 = vmatpush1.xpose.msra.mxu0 0.0
    %2429 = vmatprep.subr.mxu0 0.0
    %2430 = vmatpush1.xpose.msra.mxu0 0.0
    %2431 = vmatprep.subr.mxu0 0.0
    %2432 = vmatpush1.xpose.msra.mxu0 0.0
    %2433 = vmatprep.subr.mxu0 0.0
    %2434 = vmatpush1.xpose.msra.mxu0 0.0
    %2435 = vmatprep.subr.mxu0 0.0
    %2436 = vmatpush1.xpose.msra.mxu0 %v2403
    %2437 = vmatprep.subr.mxu0 0.0
    %2438 = vmatpush2.xpose.msra.mxu0 0.0
    %2439 = vmatprep.subr.mxu0 0.0
    %2440 = vmatpush2.xpose.msra.mxu0 0.0
    %2441 = vmatprep.subr.mxu0 0.0
    %2442 = vmatpush2.xpose.msra.mxu0 0.0
    %2443 = vmatprep.subr.mxu0 0.0
    %2444 = vmatpush2.xpose.msra.mxu0 0.0
    %2445 = vmatprep.subr.mxu0 0.0
    %2446 = vmatpush2.xpose.msra.mxu0 0.0
    %2447 = vmatprep.subr.mxu0 0.0
    %2448 = vmatpush2.xpose.msra.mxu0 0.0
    %2449 = vmatprep.subr.mxu0 0.0
    %2450 = vmatpush2.xpose.msra.mxu0 0.0
    %2451 = vmatprep.subr.mxu0 0.0
    %2452 = vmatpush2.xpose.msra.mxu0 0.0
    %2453 = vmatprep.subr.mxu0 0.0
    %2454 = vmatpush2.xpose.msra.mxu0 0.0
    %2455 = vmatprep.subr.mxu0 0.0
    %2456 = vmatpush2.xpose.msra.mxu0 0.0
    %2457 = vmatprep.subr.mxu0 0.0
    %2458 = vmatpush2.xpose.msra.mxu0 0.0
    %2459 = vmatprep.subr.mxu0 0.0
    %2460 = vmatpush2.xpose.msra.mxu0 0.0
    %2461 = vmatprep.subr.mxu0 0.0
    %2462 = vmatpush2.xpose.msra.mxu0 0.0
    %2463 = vmatprep.subr.mxu0 0.0
    %2464 = vmatpush2.xpose.msra.mxu0 0.0
    %2465 = vmatprep.subr.mxu0 0.0
    %2466 = vmatpush2.xpose.msra.mxu0 0.0
    %2467 = vmatprep.subr.mxu0 0.0
    %2468 = vmatpush2.xpose.msra.mxu0 0.0
    %2469 = vmatprep.mubr.f32.mxu0 0.0
    %2470 = vmatmul.mubr.f32.gmra.mxu0 %v2401
    %v2471 = vpop.f32.mrf.mxu0
    %v2472 = vadd.f32 0.0, %v2471
    %v2473 = vpop.f32.mrf.mxu0
    %2474 = vdwg.mxu0
    %2476 = vrot.lane.b32.xlu0 %v2395, 96
    %v2477 = vpop.permute.xlu0 %2476
    %v2478 = vsel %vm332, %v2395, 0
    %v2480 = vsel %vm332, %v2477, 0
    %2482 = vmatprep.subr.mxu0 0.0
    %2483 = vmatpush1.xpose.msra.mxu0 0.0
    %2484 = vmatprep.subr.mxu0 0.0
    %2485 = vmatpush1.xpose.msra.mxu0 0.0
    %2486 = vmatprep.subr.mxu0 0.0
    %2487 = vmatpush1.xpose.msra.mxu0 0.0
    %2488 = vmatprep.subr.mxu0 0.0
    %2489 = vmatpush1.xpose.msra.mxu0 0.0
    %2490 = vmatprep.subr.mxu0 0.0
    %2491 = vmatpush1.xpose.msra.mxu0 0.0
    %2492 = vmatprep.subr.mxu0 0.0
    %2493 = vmatpush1.xpose.msra.mxu0 0.0
    %2494 = vmatprep.subr.mxu0 0.0
    %2495 = vmatpush1.xpose.msra.mxu0 0.0
    %2496 = vmatprep.subr.mxu0 0.0
    %2497 = vmatpush1.xpose.msra.mxu0 0.0
    %2498 = vmatprep.subr.mxu0 0.0
    %2499 = vmatpush1.xpose.msra.mxu0 0.0
    %2500 = vmatprep.subr.mxu0 0.0
    %2501 = vmatpush1.xpose.msra.mxu0 0.0
    %2502 = vmatprep.subr.mxu0 0.0
    %2503 = vmatpush1.xpose.msra.mxu0 0.0
    %2504 = vmatprep.subr.mxu0 0.0
    %2505 = vmatpush1.xpose.msra.mxu0 0.0
    %2506 = vmatprep.subr.mxu0 0.0
    %2507 = vmatpush1.xpose.msra.mxu0 0.0
    %2508 = vmatprep.subr.mxu0 0.0
    %2509 = vmatpush1.xpose.msra.mxu0 0.0
    %2510 = vmatprep.subr.mxu0 0.0
    %2511 = vmatpush1.xpose.msra.mxu0 0.0
    %2512 = vmatprep.subr.mxu0 0.0
    %2513 = vmatpush1.xpose.msra.mxu0 %v2480
    %2514 = vmatprep.subr.mxu0 0.0
    %2515 = vmatpush2.xpose.msra.mxu0 0.0
    %2516 = vmatprep.subr.mxu0 0.0
    %2517 = vmatpush2.xpose.msra.mxu0 0.0
    %2518 = vmatprep.subr.mxu0 0.0
    %2519 = vmatpush2.xpose.msra.mxu0 0.0
    %2520 = vmatprep.subr.mxu0 0.0
    %2521 = vmatpush2.xpose.msra.mxu0 0.0
    %2522 = vmatprep.subr.mxu0 0.0
    %2523 = vmatpush2.xpose.msra.mxu0 0.0
    %2524 = vmatprep.subr.mxu0 0.0
    %2525 = vmatpush2.xpose.msra.mxu0 0.0
    %2526 = vmatprep.subr.mxu0 0.0
    %2527 = vmatpush2.xpose.msra.mxu0 0.0
    %2528 = vmatprep.subr.mxu0 0.0
    %2529 = vmatpush2.xpose.msra.mxu0 0.0
    %2530 = vmatprep.subr.mxu0 0.0
    %2531 = vmatpush2.xpose.msra.mxu0 0.0
    %2532 = vmatprep.subr.mxu0 0.0
    %2533 = vmatpush2.xpose.msra.mxu0 0.0
    %2534 = vmatprep.subr.mxu0 0.0
    %2535 = vmatpush2.xpose.msra.mxu0 0.0
    %2536 = vmatprep.subr.mxu0 0.0
    %2537 = vmatpush2.xpose.msra.mxu0 0.0
    %2538 = vmatprep.subr.mxu0 0.0
    %2539 = vmatpush2.xpose.msra.mxu0 0.0
    %2540 = vmatprep.subr.mxu0 0.0
    %2541 = vmatpush2.xpose.msra.mxu0 0.0
    %2542 = vmatprep.subr.mxu0 0.0
    %2543 = vmatpush2.xpose.msra.mxu0 0.0
    %2544 = vmatprep.subr.mxu0 0.0
    %2545 = vmatpush2.xpose.msra.mxu0 0.0
    %2546 = vmatprep.mubr.f32.mxu0 0.0
    %2547 = vmatmul.mubr.f32.gmra.mxu0 %v2478
    %v2548 = vpop.f32.mrf.mxu0
    %v2549 = vadd.f32 0.0, %v2548
    %v2550 = vpop.f32.mrf.mxu0
    %2551 = vdwg.mxu0
    %v2552 = vmul.f32 %v2472, 0.35355338
    %v2553 = vmul.f32 %v2549, 0.35355338
    %v2554 = vadd.f32 %v2552, %v489
    %v2555 = vadd.f32 %v2553, %v493
    %v2556 = vsel %vm332, %v2554, -inf
    %2557 = vmax.xlane.f32.xlu0 %v2556
    %v2558 = vpop.xlane.xlu0 %2557
    %v2559 = vsel %vm332, %v2555, -inf
    %2560 = vmax.xlane.f32.xlu0 %v2559
    %v2561 = vpop.xlane.xlu0 %2560
    %v2562 = vsub.f32 %v2554, %v2558
    %v2563 = vsub.f32 %v2555, %v2561
    %v2564 = vmul.f32 %v2562, 1.442695
    %v2565 = vpow.pop %v2564
    %v2566 = vmul.f32 %v2563, 1.442695
    %v2567 = vpow.pop %v2566
    %v2568 = vsel %vm332, %v2565, 0.0
    %2569 = vadd.xlane.f32.xlu0 %v2568
    %v2570 = vpop.xlane.xlu0 %2569
    %v2571 = vsel %vm332, %v2567, 0.0
    %2572 = vadd.xlane.f32.xlu0 %v2571
    %v2573 = vpop.xlane.xlu0 %2572
    %v2574 = vrcp.pop %v2570
    %v2575 = vrcp.pop %v2573
    %v2576 = vmul.f32 %v2565, %v2574
    %v2577 = vmul.f32 %v2567, %v2575
    %2578 = vrot.lane.b32.xlu0 %v2390, 64
    %v2579 = vpop.permute.xlu0 %2578
    %v2582 = vsel %vm332, %v2576, 0
    %2584 = vmatprep.subr.mxu0 0.0
    %2585 = vmatpush1.msra.mxu0 0.0
    %2586 = vmatprep.subr.mxu0 0.0
    %2587 = vmatpush1.msra.mxu0 0.0
    %2588 = vmatprep.subr.mxu0 0.0
    %2589 = vmatpush1.msra.mxu0 0.0
    %2590 = vmatprep.subr.mxu0 0.0
    %2591 = vmatpush1.msra.mxu0 0.0
    %2592 = vmatprep.subr.mxu0 0.0
    %2593 = vmatpush1.msra.mxu0 0.0
    %2594 = vmatprep.subr.mxu0 0.0
    %2595 = vmatpush1.msra.mxu0 0.0
    %2596 = vmatprep.subr.mxu0 0.0
    %2597 = vmatpush1.msra.mxu0 0.0
    %2598 = vmatprep.subr.mxu0 0.0
    %2599 = vmatpush1.msra.mxu0 0.0
    %2600 = vmatprep.subr.mxu0 0.0
    %2601 = vmatpush1.msra.mxu0 0.0
    %2602 = vmatprep.subr.mxu0 0.0
    %2603 = vmatpush1.msra.mxu0 0.0
    %2604 = vmatprep.subr.mxu0 0.0
    %2605 = vmatpush1.msra.mxu0 0.0
    %2606 = vmatprep.subr.mxu0 0.0
    %2607 = vmatpush1.msra.mxu0 0.0
    %2608 = vmatprep.subr.mxu0 0.0
    %2609 = vmatpush1.msra.mxu0 0.0
    %2610 = vmatprep.subr.mxu0 0.0
    %2611 = vmatpush1.msra.mxu0 0.0
    %2612 = vmatprep.subr.mxu0 0.0
    %2613 = vmatpush1.msra.mxu0 0.0
    %2614 = vmatprep.subr.mxu0 0.0
    %2615 = vmatpush1.msra.mxu0 %v2579
    %2616 = vmatprep.subr.mxu0 0.0
    %2617 = vmatpush2.msra.mxu0 0.0
    %2618 = vmatprep.subr.mxu0 0.0
    %2619 = vmatpush2.msra.mxu0 0.0
    %2620 = vmatprep.subr.mxu0 0.0
    %2621 = vmatpush2.msra.mxu0 0.0
    %2622 = vmatprep.subr.mxu0 0.0
    %2623 = vmatpush2.msra.mxu0 0.0
    %2624 = vmatprep.subr.mxu0 0.0
    %2625 = vmatpush2.msra.mxu0 0.0
    %2626 = vmatprep.subr.mxu0 0.0
    %2627 = vmatpush2.msra.mxu0 0.0
    %2628 = vmatprep.subr.mxu0 0.0
    %2629 = vmatpush2.msra.mxu0 0.0
    %2630 = vmatprep.subr.mxu0 0.0
    %2631 = vmatpush2.msra.mxu0 0.0
    %2632 = vmatprep.subr.mxu0 0.0
    %2633 = vmatpush2.msra.mxu0 0.0
    %2634 = vmatprep.subr.mxu0 0.0
    %2635 = vmatpush2.msra.mxu0 0.0
    %2636 = vmatprep.subr.mxu0 0.0
    %2637 = vmatpush2.msra.mxu0 0.0
    %2638 = vmatprep.subr.mxu0 0.0
    %2639 = vmatpush2.msra.mxu0 0.0
    %2640 = vmatprep.subr.mxu0 0.0
    %2641 = vmatpush2.msra.mxu0 0.0
    %2642 = vmatprep.subr.mxu0 0.0
    %2643 = vmatpush2.msra.mxu0 0.0
    %2644 = vmatprep.subr.mxu0 0.0
    %2645 = vmatpush2.msra.mxu0 0.0
    %2646 = vmatprep.subr.mxu0 0.0
    %2647 = vmatpush2.msra.mxu0 0.0
    %2648 = vmatprep.mubr.f32.mxu0 0.0
    %2649 = vmatmul.mubr.f32.gmra.mxu0 %v2582
    %v2650 = vpop.f32.mrf.mxu0
    %v2651 = vadd.f32 0.0, %v2650
    %v2652 = vpop.f32.mrf.mxu0
    %2653 = vdwg.mxu0
    %2654 = vrot.lane.b32.xlu0 %v2395, 64
    %v2655 = vpop.permute.xlu0 %2654
    %v2658 = vsel %vm332, %v2577, 0
    %2660 = vmatprep.subr.mxu0 0.0
    %2661 = vmatpush1.msra.mxu0 0.0
    %2662 = vmatprep.subr.mxu0 0.0
    %2663 = vmatpush1.msra.mxu0 0.0
    %2664 = vmatprep.subr.mxu0 0.0
    %2665 = vmatpush1.msra.mxu0 0.0
    %2666 = vmatprep.subr.mxu0 0.0
    %2667 = vmatpush1.msra.mxu0 0.0
    %2668 = vmatprep.subr.mxu0 0.0
    %2669 = vmatpush1.msra.mxu0 0.0
    %2670 = vmatprep.subr.mxu0 0.0
    %2671 = vmatpush1.msra.mxu0 0.0
    %2672 = vmatprep.subr.mxu0 0.0
    %2673 = vmatpush1.msra.mxu0 0.0
    %2674 = vmatprep.subr.mxu0 0.0
    %2675 = vmatpush1.msra.mxu0 0.0
    %2676 = vmatprep.subr.mxu0 0.0
    %2677 = vmatpush1.msra.mxu0 0.0
    %2678 = vmatprep.subr.mxu0 0.0
    %2679 = vmatpush1.msra.mxu0 0.0
    %2680 = vmatprep.subr.mxu0 0.0
    %2681 = vmatpush1.msra.mxu0 0.0
    %2682 = vmatprep.subr.mxu0 0.0
    %2683 = vmatpush1.msra.mxu0 0.0
    %2684 = vmatprep.subr.mxu0 0.0
    %2685 = vmatpush1.msra.mxu0 0.0
    %2686 = vmatprep.subr.mxu0 0.0
    %2687 = vmatpush1.msra.mxu0 0.0
    %2688 = vmatprep.subr.mxu0 0.0
    %2689 = vmatpush1.msra.mxu0 0.0
    %2690 = vmatprep.subr.mxu0 0.0
    %2691 = vmatpush1.msra.mxu0 %v2655
    %2692 = vmatprep.subr.mxu0 0.0
    %2693 = vmatpush2.msra.mxu0 0.0
    %2694 = vmatprep.subr.mxu0 0.0
    %2695 = vmatpush2.msra.mxu0 0.0
    %2696 = vmatprep.subr.mxu0 0.0
    %2697 = vmatpush2.msra.mxu0 0.0
    %2698 = vmatprep.subr.mxu0 0.0
    %2699 = vmatpush2.msra.mxu0 0.0
    %2700 = vmatprep.subr.mxu0 0.0
    %2701 = vmatpush2.msra.mxu0 0.0
    %2702 = vmatprep.subr.mxu0 0.0
    %2703 = vmatpush2.msra.mxu0 0.0
    %2704 = vmatprep.subr.mxu0 0.0
    %2705 = vmatpush2.msra.mxu0 0.0
    %2706 = vmatprep.subr.mxu0 0.0
    %2707 = vmatpush2.msra.mxu0 0.0
    %2708 = vmatprep.subr.mxu0 0.0
    %2709 = vmatpush2.msra.mxu0 0.0
    %2710 = vmatprep.subr.mxu0 0.0
    %2711 = vmatpush2.msra.mxu0 0.0
    %2712 = vmatprep.subr.mxu0 0.0
    %2713 = vmatpush2.msra.mxu0 0.0
    %2714 = vmatprep.subr.mxu0 0.0
    %2715 = vmatpush2.msra.mxu0 0.0
    %2716 = vmatprep.subr.mxu0 0.0
    %2717 = vmatpush2.msra.mxu0 0.0
    %2718 = vmatprep.subr.mxu0 0.0
    %2719 = vmatpush2.msra.mxu0 0.0
    %2720 = vmatprep.subr.mxu0 0.0
    %2721 = vmatpush2.msra.mxu0 0.0
    %2722 = vmatprep.subr.mxu0 0.0
    %2723 = vmatpush2.msra.mxu0 0.0
    %2724 = vmatprep.mubr.f32.mxu0 0.0
    %2725 = vmatmul.mubr.f32.gmra.mxu0 %v2658
    %v2726 = vpop.f32.mrf.mxu0
    %v2727 = vadd.f32 0.0, %v2726
    %v2728 = vpop.f32.mrf.mxu0
    %2729 = vdwg.mxu0
    %2730 = vrot.lane.b32.xlu0 %v2390, 120
    %v2731 = vpop.permute.xlu0 %2730
    %2732 = vrot.lane.b32.xlu0 %v2390, 88
    %v2733 = vpop.permute.xlu0 %2732
    %v2734 = vsel %vm332, %v2731, 0
    %v2736 = vsel %vm332, %v2733, 0
    %2738 = vmatprep.subr.mxu0 0.0
    %2739 = vmatpush1.xpose.msra.mxu0 0.0
    %2740 = vmatprep.subr.mxu0 0.0
    %2741 = vmatpush1.xpose.msra.mxu0 0.0
    %2742 = vmatprep.subr.mxu0 0.0
    %2743 = vmatpush1.xpose.msra.mxu0 0.0
    %2744 = vmatprep.subr.mxu0 0.0
    %2745 = vmatpush1.xpose.msra.mxu0 0.0
    %2746 = vmatprep.subr.mxu0 0.0
    %2747 = vmatpush1.xpose.msra.mxu0 0.0
    %2748 = vmatprep.subr.mxu0 0.0
    %2749 = vmatpush1.xpose.msra.mxu0 0.0
    %2750 = vmatprep.subr.mxu0 0.0
    %2751 = vmatpush1.xpose.msra.mxu0 0.0
    %2752 = vmatprep.subr.mxu0 0.0
    %2753 = vmatpush1.xpose.msra.mxu0 0.0
    %2754 = vmatprep.subr.mxu0 0.0
    %2755 = vmatpush1.xpose.msra.mxu0 0.0
    %2756 = vmatprep.subr.mxu0 0.0
    %2757 = vmatpush1.xpose.msra.mxu0 0.0
    %2758 = vmatprep.subr.mxu0 0.0
    %2759 = vmatpush1.xpose.msra.mxu0 0.0
    %2760 = vmatprep.subr.mxu0 0.0
    %2761 = vmatpush1.xpose.msra.mxu0 0.0
    %2762 = vmatprep.subr.mxu0 0.0
    %2763 = vmatpush1.xpose.msra.mxu0 0.0
    %2764 = vmatprep.subr.mxu0 0.0
    %2765 = vmatpush1.xpose.msra.mxu0 0.0
    %2766 = vmatprep.subr.mxu0 0.0
    %2767 = vmatpush1.xpose.msra.mxu0 0.0
    %2768 = vmatprep.subr.mxu0 0.0
    %2769 = vmatpush1.xpose.msra.mxu0 %v2736
    %2770 = vmatprep.subr.mxu0 0.0
    %2771 = vmatpush2.xpose.msra.mxu0 0.0
    %2772 = vmatprep.subr.mxu0 0.0
    %2773 = vmatpush2.xpose.msra.mxu0 0.0
    %2774 = vmatprep.subr.mxu0 0.0
    %2775 = vmatpush2.xpose.msra.mxu0 0.0
    %2776 = vmatprep.subr.mxu0 0.0
    %2777 = vmatpush2.xpose.msra.mxu0 0.0
    %2778 = vmatprep.subr.mxu0 0.0
    %2779 = vmatpush2.xpose.msra.mxu0 0.0
    %2780 = vmatprep.subr.mxu0 0.0
    %2781 = vmatpush2.xpose.msra.mxu0 0.0
    %2782 = vmatprep.subr.mxu0 0.0
    %2783 = vmatpush2.xpose.msra.mxu0 0.0
    %2784 = vmatprep.subr.mxu0 0.0
    %2785 = vmatpush2.xpose.msra.mxu0 0.0
    %2786 = vmatprep.subr.mxu0 0.0
    %2787 = vmatpush2.xpose.msra.mxu0 0.0
    %2788 = vmatprep.subr.mxu0 0.0
    %2789 = vmatpush2.xpose.msra.mxu0 0.0
    %2790 = vmatprep.subr.mxu0 0.0
    %2791 = vmatpush2.xpose.msra.mxu0 0.0
    %2792 = vmatprep.subr.mxu0 0.0
    %2793 = vmatpush2.xpose.msra.mxu0 0.0
    %2794 = vmatprep.subr.mxu0 0.0
    %2795 = vmatpush2.xpose.msra.mxu0 0.0
    %2796 = vmatprep.subr.mxu0 0.0
    %2797 = vmatpush2.xpose.msra.mxu0 0.0
    %2798 = vmatprep.subr.mxu0 0.0
    %2799 = vmatpush2.xpose.msra.mxu0 0.0
    %2800 = vmatprep.subr.mxu0 0.0
    %2801 = vmatpush2.xpose.msra.mxu0 0.0
    %2802 = vmatprep.mubr.f32.mxu0 0.0
    %2803 = vmatmul.mubr.f32.gmra.mxu0 %v2734
    %v2804 = vpop.f32.mrf.mxu0
    %v2805 = vadd.f32 0.0, %v2804
    %v2806 = vpop.f32.mrf.mxu0
    %2807 = vdwg.mxu0
    %2808 = vrot.lane.b32.xlu0 %v2395, 120
    %v2809 = vpop.permute.xlu0 %2808
    %2810 = vrot.lane.b32.xlu0 %v2395, 88
    %v2811 = vpop.permute.xlu0 %2810
    %v2812 = vsel %vm332, %v2809, 0
    %v2814 = vsel %vm332, %v2811, 0
    %2816 = vmatprep.subr.mxu0 0.0
    %2817 = vmatpush1.xpose.msra.mxu0 0.0
    %2818 = vmatprep.subr.mxu0 0.0
    %2819 = vmatpush1.xpose.msra.mxu0 0.0
    %2820 = vmatprep.subr.mxu0 0.0
    %2821 = vmatpush1.xpose.msra.mxu0 0.0
    %2822 = vmatprep.subr.mxu0 0.0
    %2823 = vmatpush1.xpose.msra.mxu0 0.0
    %2824 = vmatprep.subr.mxu0 0.0
    %2825 = vmatpush1.xpose.msra.mxu0 0.0
    %2826 = vmatprep.subr.mxu0 0.0
    %2827 = vmatpush1.xpose.msra.mxu0 0.0
    %2828 = vmatprep.subr.mxu0 0.0
    %2829 = vmatpush1.xpose.msra.mxu0 0.0
    %2830 = vmatprep.subr.mxu0 0.0
    %2831 = vmatpush1.xpose.msra.mxu0 0.0
    %2832 = vmatprep.subr.mxu0 0.0
    %2833 = vmatpush1.xpose.msra.mxu0 0.0
    %2834 = vmatprep.subr.mxu0 0.0
    %2835 = vmatpush1.xpose.msra.mxu0 0.0
    %2836 = vmatprep.subr.mxu0 0.0
    %2837 = vmatpush1.xpose.msra.mxu0 0.0
    %2838 = vmatprep.subr.mxu0 0.0
    %2839 = vmatpush1.xpose.msra.mxu0 0.0
    %2840 = vmatprep.subr.mxu0 0.0
    %2841 = vmatpush1.xpose.msra.mxu0 0.0
    %2842 = vmatprep.subr.mxu0 0.0
    %2843 = vmatpush1.xpose.msra.mxu0 0.0
    %2844 = vmatprep.subr.mxu0 0.0
    %2845 = vmatpush1.xpose.msra.mxu0 0.0
    %2846 = vmatprep.subr.mxu0 0.0
    %2847 = vmatpush1.xpose.msra.mxu0 %v2814
    %2848 = vmatprep.subr.mxu0 0.0
    %2849 = vmatpush2.xpose.msra.mxu0 0.0
    %2850 = vmatprep.subr.mxu0 0.0
    %2851 = vmatpush2.xpose.msra.mxu0 0.0
    %2852 = vmatprep.subr.mxu0 0.0
    %2853 = vmatpush2.xpose.msra.mxu0 0.0
    %2854 = vmatprep.subr.mxu0 0.0
    %2855 = vmatpush2.xpose.msra.mxu0 0.0
    %2856 = vmatprep.subr.mxu0 0.0
    %2857 = vmatpush2.xpose.msra.mxu0 0.0
    %2858 = vmatprep.subr.mxu0 0.0
    %2859 = vmatpush2.xpose.msra.mxu0 0.0
    %2860 = vmatprep.subr.mxu0 0.0
    %2861 = vmatpush2.xpose.msra.mxu0 0.0
    %2862 = vmatprep.subr.mxu0 0.0
    %2863 = vmatpush2.xpose.msra.mxu0 0.0
    %2864 = vmatprep.subr.mxu0 0.0
    %2865 = vmatpush2.xpose.msra.mxu0 0.0
    %2866 = vmatprep.subr.mxu0 0.0
    %2867 = vmatpush2.xpose.msra.mxu0 0.0
    %2868 = vmatprep.subr.mxu0 0.0
    %2869 = vmatpush2.xpose.msra.mxu0 0.0
    %2870 = vmatprep.subr.mxu0 0.0
    %2871 = vmatpush2.xpose.msra.mxu0 0.0
    %2872 = vmatprep.subr.mxu0 0.0
    %2873 = vmatpush2.xpose.msra.mxu0 0.0
    %2874 = vmatprep.subr.mxu0 0.0
    %2875 = vmatpush2.xpose.msra.mxu0 0.0
    %2876 = vmatprep.subr.mxu0 0.0
    %2877 = vmatpush2.xpose.msra.mxu0 0.0
    %2878 = vmatprep.subr.mxu0 0.0
    %2879 = vmatpush2.xpose.msra.mxu0 0.0
    %2880 = vmatprep.mubr.f32.mxu0 0.0
    %2881 = vmatmul.mubr.f32.gmra.mxu0 %v2812
    %v2882 = vpop.f32.mrf.mxu0
    %v2883 = vadd.f32 0.0, %v2882
    %v2884 = vpop.f32.mrf.mxu0
    %2885 = vdwg.mxu0
    %v2886 = vmul.f32 %v2805, 0.35355338
    %v2887 = vmul.f32 %v2883, 0.35355338
    %v2888 = vadd.f32 %v2886, %v489
    %v2889 = vadd.f32 %v2887, %v493
    %v2890 = vsel %vm332, %v2888, -inf
    %2891 = vmax.xlane.f32.xlu0 %v2890
    %v2892 = vpop.xlane.xlu0 %2891
    %v2893 = vsel %vm332, %v2889, -inf
    %2894 = vmax.xlane.f32.xlu0 %v2893
    %v2895 = vpop.xlane.xlu0 %2894
    %v2896 = vsub.f32 %v2888, %v2892
    %v2897 = vsub.f32 %v2889, %v2895
    %v2898 = vmul.f32 %v2896, 1.442695
    %v2899 = vpow.pop %v2898
    %v2900 = vmul.f32 %v2897, 1.442695
    %v2901 = vpow.pop %v2900
    %v2902 = vsel %vm332, %v2899, 0.0
    %2903 = vadd.xlane.f32.xlu0 %v2902
    %v2904 = vpop.xlane.xlu0 %2903
    %v2905 = vsel %vm332, %v2901, 0.0
    %2906 = vadd.xlane.f32.xlu0 %v2905
    %v2907 = vpop.xlane.xlu0 %2906
    %v2908 = vrcp.pop %v2904
    %v2909 = vrcp.pop %v2907
    %v2910 = vmul.f32 %v2899, %v2908
    %v2911 = vmul.f32 %v2901, %v2909
    %2912 = vrot.lane.b32.xlu0 %v2390, 56
    %v2913 = vpop.permute.xlu0 %2912
    %v2916 = vsel %vm332, %v2910, 0
    %2918 = vmatprep.subr.mxu0 0.0
    %2919 = vmatpush1.msra.mxu0 0.0
    %2920 = vmatprep.subr.mxu0 0.0
    %2921 = vmatpush1.msra.mxu0 0.0
    %2922 = vmatprep.subr.mxu0 0.0
    %2923 = vmatpush1.msra.mxu0 0.0
    %2924 = vmatprep.subr.mxu0 0.0
    %2925 = vmatpush1.msra.mxu0 0.0
    %2926 = vmatprep.subr.mxu0 0.0
    %2927 = vmatpush1.msra.mxu0 0.0
    %2928 = vmatprep.subr.mxu0 0.0
    %2929 = vmatpush1.msra.mxu0 0.0
    %2930 = vmatprep.subr.mxu0 0.0
    %2931 = vmatpush1.msra.mxu0 0.0
    %2932 = vmatprep.subr.mxu0 0.0
    %2933 = vmatpush1.msra.mxu0 0.0
    %2934 = vmatprep.subr.mxu0 0.0
    %2935 = vmatpush1.msra.mxu0 0.0
    %2936 = vmatprep.subr.mxu0 0.0
    %2937 = vmatpush1.msra.mxu0 0.0
    %2938 = vmatprep.subr.mxu0 0.0
    %2939 = vmatpush1.msra.mxu0 0.0
    %2940 = vmatprep.subr.mxu0 0.0
    %2941 = vmatpush1.msra.mxu0 0.0
    %2942 = vmatprep.subr.mxu0 0.0
    %2943 = vmatpush1.msra.mxu0 0.0
    %2944 = vmatprep.subr.mxu0 0.0
    %2945 = vmatpush1.msra.mxu0 0.0
    %2946 = vmatprep.subr.mxu0 0.0
    %2947 = vmatpush1.msra.mxu0 0.0
    %2948 = vmatprep.subr.mxu0 0.0
    %2949 = vmatpush1.msra.mxu0 %v2913
    %2950 = vmatprep.subr.mxu0 0.0
    %2951 = vmatpush2.msra.mxu0 0.0
    %2952 = vmatprep.subr.mxu0 0.0
    %2953 = vmatpush2.msra.mxu0 0.0
    %2954 = vmatprep.subr.mxu0 0.0
    %2955 = vmatpush2.msra.mxu0 0.0
    %2956 = vmatprep.subr.mxu0 0.0
    %2957 = vmatpush2.msra.mxu0 0.0
    %2958 = vmatprep.subr.mxu0 0.0
    %2959 = vmatpush2.msra.mxu0 0.0
    %2960 = vmatprep.subr.mxu0 0.0
    %2961 = vmatpush2.msra.mxu0 0.0
    %2962 = vmatprep.subr.mxu0 0.0
    %2963 = vmatpush2.msra.mxu0 0.0
    %2964 = vmatprep.subr.mxu0 0.0
    %2965 = vmatpush2.msra.mxu0 0.0
    %2966 = vmatprep.subr.mxu0 0.0
    %2967 = vmatpush2.msra.mxu0 0.0
    %2968 = vmatprep.subr.mxu0 0.0
    %2969 = vmatpush2.msra.mxu0 0.0
    %2970 = vmatprep.subr.mxu0 0.0
    %2971 = vmatpush2.msra.mxu0 0.0
    %2972 = vmatprep.subr.mxu0 0.0
    %2973 = vmatpush2.msra.mxu0 0.0
    %2974 = vmatprep.subr.mxu0 0.0
    %2975 = vmatpush2.msra.mxu0 0.0
    %2976 = vmatprep.subr.mxu0 0.0
    %2977 = vmatpush2.msra.mxu0 0.0
    %2978 = vmatprep.subr.mxu0 0.0
    %2979 = vmatpush2.msra.mxu0 0.0
    %2980 = vmatprep.subr.mxu0 0.0
    %2981 = vmatpush2.msra.mxu0 0.0
    %2982 = vmatprep.mubr.f32.mxu0 0.0
    %2983 = vmatmul.mubr.f32.gmra.mxu0 %v2916
    %v2984 = vpop.f32.mrf.mxu0
    %v2985 = vadd.f32 0.0, %v2984
    %v2986 = vpop.f32.mrf.mxu0
    %2987 = vdwg.mxu0
    %2988 = vrot.lane.b32.xlu0 %v2395, 56
    %v2989 = vpop.permute.xlu0 %2988
    %v2992 = vsel %vm332, %v2911, 0
    %2994 = vmatprep.subr.mxu0 0.0
    %2995 = vmatpush1.msra.mxu0 0.0
    %2996 = vmatprep.subr.mxu0 0.0
    %2997 = vmatpush1.msra.mxu0 0.0
    %2998 = vmatprep.subr.mxu0 0.0
    %2999 = vmatpush1.msra.mxu0 0.0
    %3000 = vmatprep.subr.mxu0 0.0
    %3001 = vmatpush1.msra.mxu0 0.0
    %3002 = vmatprep.subr.mxu0 0.0
    %3003 = vmatpush1.msra.mxu0 0.0
    %3004 = vmatprep.subr.mxu0 0.0
    %3005 = vmatpush1.msra.mxu0 0.0
    %3006 = vmatprep.subr.mxu0 0.0
    %3007 = vmatpush1.msra.mxu0 0.0
    %3008 = vmatprep.subr.mxu0 0.0
    %3009 = vmatpush1.msra.mxu0 0.0
    %3010 = vmatprep.subr.mxu0 0.0
    %3011 = vmatpush1.msra.mxu0 0.0
    %3012 = vmatprep.subr.mxu0 0.0
    %3013 = vmatpush1.msra.mxu0 0.0
    %3014 = vmatprep.subr.mxu0 0.0
    %3015 = vmatpush1.msra.mxu0 0.0
    %3016 = vmatprep.subr.mxu0 0.0
    %3017 = vmatpush1.msra.mxu0 0.0
    %3018 = vmatprep.subr.mxu0 0.0
    %3019 = vmatpush1.msra.mxu0 0.0
    %3020 = vmatprep.subr.mxu0 0.0
    %3021 = vmatpush1.msra.mxu0 0.0
    %3022 = vmatprep.subr.mxu0 0.0
    %3023 = vmatpush1.msra.mxu0 0.0
    %3024 = vmatprep.subr.mxu0 0.0
    %3025 = vmatpush1.msra.mxu0 %v2989
    %3026 = vmatprep.subr.mxu0 0.0
    %3027 = vmatpush2.msra.mxu0 0.0
    %3028 = vmatprep.subr.mxu0 0.0
    %3029 = vmatpush2.msra.mxu0 0.0
    %3030 = vmatprep.subr.mxu0 0.0
    %3031 = vmatpush2.msra.mxu0 0.0
    %3032 = vmatprep.subr.mxu0 0.0
    %3033 = vmatpush2.msra.mxu0 0.0
    %3034 = vmatprep.subr.mxu0 0.0
    %3035 = vmatpush2.msra.mxu0 0.0
    %3036 = vmatprep.subr.mxu0 0.0
    %3037 = vmatpush2.msra.mxu0 0.0
    %3038 = vmatprep.subr.mxu0 0.0
    %3039 = vmatpush2.msra.mxu0 0.0
    %3040 = vmatprep.subr.mxu0 0.0
    %3041 = vmatpush2.msra.mxu0 0.0
    %3042 = vmatprep.subr.mxu0 0.0
    %3043 = vmatpush2.msra.mxu0 0.0
    %3044 = vmatprep.subr.mxu0 0.0
    %3045 = vmatpush2.msra.mxu0 0.0
    %3046 = vmatprep.subr.mxu0 0.0
    %3047 = vmatpush2.msra.mxu0 0.0
    %3048 = vmatprep.subr.mxu0 0.0
    %3049 = vmatpush2.msra.mxu0 0.0
    %3050 = vmatprep.subr.mxu0 0.0
    %3051 = vmatpush2.msra.mxu0 0.0
    %3052 = vmatprep.subr.mxu0 0.0
    %3053 = vmatpush2.msra.mxu0 0.0
    %3054 = vmatprep.subr.mxu0 0.0
    %3055 = vmatpush2.msra.mxu0 0.0
    %3056 = vmatprep.subr.mxu0 0.0
    %3057 = vmatpush2.msra.mxu0 0.0
    %3058 = vmatprep.mubr.f32.mxu0 0.0
    %3059 = vmatmul.mubr.f32.gmra.mxu0 %v2992
    %v3060 = vpop.f32.mrf.mxu0
    %v3061 = vadd.f32 0.0, %v3060
    %v3062 = vpop.f32.mrf.mxu0
    %3063 = vdwg.mxu0
    %v3065 = vsel %vm332, %v2985, 0
    %v3068 = vsel %vm332, %v3061, 0
    %3070 = vmatprep.subr.mxu0 0.0
    %3071 = vmatpush1.msra.mxu0 0.0
    %3072 = vmatprep.subr.mxu0 0.0
    %3073 = vmatpush1.msra.mxu0 0.0
    %3074 = vmatprep.subr.mxu0 0.0
    %3075 = vmatpush1.msra.mxu0 0.0
    %3076 = vmatprep.subr.mxu0 0.0
    %3077 = vmatpush1.msra.mxu0 0.0
    %3078 = vmatprep.subr.mxu0 0.0
    %3079 = vmatpush1.msra.mxu0 0.0
    %3080 = vmatprep.subr.mxu0 0.0
    %3081 = vmatpush1.msra.mxu0 0.0
    %3082 = vmatprep.subr.mxu0 0.0
    %3083 = vmatpush1.msra.mxu0 0.0
    %3084 = vmatprep.subr.mxu0 0.0
    %3085 = vmatpush1.msra.mxu0 0.0
    %3086 = vmatprep.subr.mxu0 0.0
    %3087 = vmatpush1.msra.mxu0 0.0
    %3088 = vmatprep.subr.mxu0 0.0
    %3089 = vmatpush1.msra.mxu0 0.0
    %3090 = vmatprep.subr.mxu0 0.0
    %3091 = vmatpush1.msra.mxu0 0.0
    %3092 = vmatprep.subr.mxu0 0.0
    %3093 = vmatpush1.msra.mxu0 0.0
    %3094 = vmatprep.subr.mxu0 0.0
    %3095 = vmatpush1.msra.mxu0 0.0
    %3096 = vmatprep.subr.mxu0 0.0
    %3097 = vmatpush1.msra.mxu0 0.0
    %3098 = vmatprep.subr.mxu0 0.0
    %3099 = vmatpush1.msra.mxu0 0.0
    %3100 = vmatprep.subr.mxu0 0.0
    %3101 = vmatpush1.msra.mxu0 %v2306
    %3102 = vmatprep.subr.mxu0 0.0
    %3103 = vmatpush2.msra.mxu0 0.0
    %3104 = vmatprep.subr.mxu0 0.0
    %3105 = vmatpush2.msra.mxu0 0.0
    %3106 = vmatprep.subr.mxu0 0.0
    %3107 = vmatpush2.msra.mxu0 0.0
    %3108 = vmatprep.subr.mxu0 0.0
    %3109 = vmatpush2.msra.mxu0 0.0
    %3110 = vmatprep.subr.mxu0 0.0
    %3111 = vmatpush2.msra.mxu0 0.0
    %3112 = vmatprep.subr.mxu0 0.0
    %3113 = vmatpush2.msra.mxu0 0.0
    %3114 = vmatprep.subr.mxu0 0.0
    %3115 = vmatpush2.msra.mxu0 0.0
    %3116 = vmatprep.subr.mxu0 0.0
    %3117 = vmatpush2.msra.mxu0 0.0
    %3118 = vmatprep.subr.mxu0 0.0
    %3119 = vmatpush2.msra.mxu0 0.0
    %3120 = vmatprep.subr.mxu0 0.0
    %3121 = vmatpush2.msra.mxu0 0.0
    %3122 = vmatprep.subr.mxu0 0.0
    %3123 = vmatpush2.msra.mxu0 0.0
    %3124 = vmatprep.subr.mxu0 0.0
    %3125 = vmatpush2.msra.mxu0 0.0
    %3126 = vmatprep.subr.mxu0 0.0
    %3127 = vmatpush2.msra.mxu0 0.0
    %3128 = vmatprep.subr.mxu0 0.0
    %3129 = vmatpush2.msra.mxu0 0.0
    %3130 = vmatprep.subr.mxu0 0.0
    %3131 = vmatpush2.msra.mxu0 0.0
    %3132 = vmatprep.subr.mxu0 0.0
    %3133 = vmatpush2.msra.mxu0 0.0
    %3134 = vmatprep.mubr.f32.mxu0 0.0
    %3135 = vmatmul.mubr.f32.gmra.mxu0 %v3065
    %v3136 = vpop.f32.mrf.mxu0
    %v3137 = vadd.f32 0.0, %v3136
    %v3138 = vpop.f32.mrf.mxu0
    %3139 = vmatprep.mubr.f32.mxu0 0.0
    %3140 = vmatmul.mubr.f32.gmra.mxu0 %v3068
    %v3141 = vpop.f32.mrf.mxu0
    %v3142 = vadd.f32 0.0, %v3141
    %v3143 = vpop.f32.mrf.mxu0
    %3144 = vdwg.mxu0
    %v3146 = vsel %vm332, %v2651, 0
    %v3149 = vsel %vm332, %v2727, 0
    %3151 = vmatprep.subr.mxu0 0.0
    %3152 = vmatpush1.msra.mxu0 0.0
    %3153 = vmatprep.subr.mxu0 0.0
    %3154 = vmatpush1.msra.mxu0 0.0
    %3155 = vmatprep.subr.mxu0 0.0
    %3156 = vmatpush1.msra.mxu0 0.0
    %3157 = vmatprep.subr.mxu0 0.0
    %3158 = vmatpush1.msra.mxu0 0.0
    %3159 = vmatprep.subr.mxu0 0.0
    %3160 = vmatpush1.msra.mxu0 0.0
    %3161 = vmatprep.subr.mxu0 0.0
    %3162 = vmatpush1.msra.mxu0 0.0
    %3163 = vmatprep.subr.mxu0 0.0
    %3164 = vmatpush1.msra.mxu0 0.0
    %3165 = vmatprep.subr.mxu0 0.0
    %3166 = vmatpush1.msra.mxu0 0.0
    %3167 = vmatprep.subr.mxu0 0.0
    %3168 = vmatpush1.msra.mxu0 0.0
    %3169 = vmatprep.subr.mxu0 0.0
    %3170 = vmatpush1.msra.mxu0 0.0
    %3171 = vmatprep.subr.mxu0 0.0
    %3172 = vmatpush1.msra.mxu0 0.0
    %3173 = vmatprep.subr.mxu0 0.0
    %3174 = vmatpush1.msra.mxu0 0.0
    %3175 = vmatprep.subr.mxu0 0.0
    %3176 = vmatpush1.msra.mxu0 0.0
    %3177 = vmatprep.subr.mxu0 0.0
    %3178 = vmatpush1.msra.mxu0 0.0
    %3179 = vmatprep.subr.mxu0 0.0
    %3180 = vmatpush1.msra.mxu0 0.0
    %3181 = vmatprep.subr.mxu0 0.0
    %3182 = vmatpush1.msra.mxu0 %v2305
    %3183 = vmatprep.subr.mxu0 0.0
    %3184 = vmatpush2.msra.mxu0 0.0
    %3185 = vmatprep.subr.mxu0 0.0
    %3186 = vmatpush2.msra.mxu0 0.0
    %3187 = vmatprep.subr.mxu0 0.0
    %3188 = vmatpush2.msra.mxu0 0.0
    %3189 = vmatprep.subr.mxu0 0.0
    %3190 = vmatpush2.msra.mxu0 0.0
    %3191 = vmatprep.subr.mxu0 0.0
    %3192 = vmatpush2.msra.mxu0 0.0
    %3193 = vmatprep.subr.mxu0 0.0
    %3194 = vmatpush2.msra.mxu0 0.0
    %3195 = vmatprep.subr.mxu0 0.0
    %3196 = vmatpush2.msra.mxu0 0.0
    %3197 = vmatprep.subr.mxu0 0.0
    %3198 = vmatpush2.msra.mxu0 0.0
    %3199 = vmatprep.subr.mxu0 0.0
    %3200 = vmatpush2.msra.mxu0 0.0
    %3201 = vmatprep.subr.mxu0 0.0
    %3202 = vmatpush2.msra.mxu0 0.0
    %3203 = vmatprep.subr.mxu0 0.0
    %3204 = vmatpush2.msra.mxu0 0.0
    %3205 = vmatprep.subr.mxu0 0.0
    %3206 = vmatpush2.msra.mxu0 0.0
    %3207 = vmatprep.subr.mxu0 0.0
    %3208 = vmatpush2.msra.mxu0 0.0
    %3209 = vmatprep.subr.mxu0 0.0
    %3210 = vmatpush2.msra.mxu0 0.0
    %3211 = vmatprep.subr.mxu0 0.0
    %3212 = vmatpush2.msra.mxu0 0.0
    %3213 = vmatprep.subr.mxu0 0.0
    %3214 = vmatpush2.msra.mxu0 0.0
    %3215 = vmatprep.mubr.f32.mxu0 0.0
    %3216 = vmatmul.mubr.f32.gmra.mxu0 %v3146
    %v3217 = vpop.f32.mrf.mxu0
    %v3218 = vadd.f32 %v3137, %v3217
    %v3219 = vpop.f32.mrf.mxu0
    %3220 = vmatprep.mubr.f32.mxu0 0.0
    %3221 = vmatmul.mubr.f32.gmra.mxu0 %v3149
    %v3222 = vpop.f32.mrf.mxu0
    %v3223 = vadd.f32 %v3142, %v3222
    %v3224 = vpop.f32.mrf.mxu0
    %3225 = vdwg.mxu0
    %3226 = vrot.lane.b32.xlu0 %v2390, 112
    %v3227 = vpop.permute.xlu0 %3226
    %3228 = vrot.lane.b32.xlu0 %v2390, 80
    %v3229 = vpop.permute.xlu0 %3228
    %v3230 = vsel %vm332, %v3227, 0
    %v3232 = vsel %vm332, %v3229, 0
    %3234 = vmatprep.subr.mxu0 0.0
    %3235 = vmatpush1.xpose.msra.mxu0 0.0
    %3236 = vmatprep.subr.mxu0 0.0
    %3237 = vmatpush1.xpose.msra.mxu0 0.0
    %3238 = vmatprep.subr.mxu0 0.0
    %3239 = vmatpush1.xpose.msra.mxu0 0.0
    %3240 = vmatprep.subr.mxu0 0.0
    %3241 = vmatpush1.xpose.msra.mxu0 0.0
    %3242 = vmatprep.subr.mxu0 0.0
    %3243 = vmatpush1.xpose.msra.mxu0 0.0
    %3244 = vmatprep.subr.mxu0 0.0
    %3245 = vmatpush1.xpose.msra.mxu0 0.0
    %3246 = vmatprep.subr.mxu0 0.0
    %3247 = vmatpush1.xpose.msra.mxu0 0.0
    %3248 = vmatprep.subr.mxu0 0.0
    %3249 = vmatpush1.xpose.msra.mxu0 0.0
    %3250 = vmatprep.subr.mxu0 0.0
    %3251 = vmatpush1.xpose.msra.mxu0 0.0
    %3252 = vmatprep.subr.mxu0 0.0
    %3253 = vmatpush1.xpose.msra.mxu0 0.0
    %3254 = vmatprep.subr.mxu0 0.0
    %3255 = vmatpush1.xpose.msra.mxu0 0.0
    %3256 = vmatprep.subr.mxu0 0.0
    %3257 = vmatpush1.xpose.msra.mxu0 0.0
    %3258 = vmatprep.subr.mxu0 0.0
    %3259 = vmatpush1.xpose.msra.mxu0 0.0
    %3260 = vmatprep.subr.mxu0 0.0
    %3261 = vmatpush1.xpose.msra.mxu0 0.0
    %3262 = vmatprep.subr.mxu0 0.0
    %3263 = vmatpush1.xpose.msra.mxu0 0.0
    %3264 = vmatprep.subr.mxu0 0.0
    %3265 = vmatpush1.xpose.msra.mxu0 %v3232
    %3266 = vmatprep.subr.mxu0 0.0
    %3267 = vmatpush2.xpose.msra.mxu0 0.0
    %3268 = vmatprep.subr.mxu0 0.0
    %3269 = vmatpush2.xpose.msra.mxu0 0.0
    %3270 = vmatprep.subr.mxu0 0.0
    %3271 = vmatpush2.xpose.msra.mxu0 0.0
    %3272 = vmatprep.subr.mxu0 0.0
    %3273 = vmatpush2.xpose.msra.mxu0 0.0
    %3274 = vmatprep.subr.mxu0 0.0
    %3275 = vmatpush2.xpose.msra.mxu0 0.0
    %3276 = vmatprep.subr.mxu0 0.0
    %3277 = vmatpush2.xpose.msra.mxu0 0.0
    %3278 = vmatprep.subr.mxu0 0.0
    %3279 = vmatpush2.xpose.msra.mxu0 0.0
    %3280 = vmatprep.subr.mxu0 0.0
    %3281 = vmatpush2.xpose.msra.mxu0 0.0
    %3282 = vmatprep.subr.mxu0 0.0
    %3283 = vmatpush2.xpose.msra.mxu0 0.0
    %3284 = vmatprep.subr.mxu0 0.0
    %3285 = vmatpush2.xpose.msra.mxu0 0.0
    %3286 = vmatprep.subr.mxu0 0.0
    %3287 = vmatpush2.xpose.msra.mxu0 0.0
    %3288 = vmatprep.subr.mxu0 0.0
    %3289 = vmatpush2.xpose.msra.mxu0 0.0
    %3290 = vmatprep.subr.mxu0 0.0
    %3291 = vmatpush2.xpose.msra.mxu0 0.0
    %3292 = vmatprep.subr.mxu0 0.0
    %3293 = vmatpush2.xpose.msra.mxu0 0.0
    %3294 = vmatprep.subr.mxu0 0.0
    %3295 = vmatpush2.xpose.msra.mxu0 0.0
    %3296 = vmatprep.subr.mxu0 0.0
    %3297 = vmatpush2.xpose.msra.mxu0 0.0
    %3298 = vmatprep.mubr.f32.mxu0 0.0
    %3299 = vmatmul.mubr.f32.gmra.mxu0 %v3230
    %v3300 = vpop.f32.mrf.mxu0
    %v3301 = vadd.f32 0.0, %v3300
    %v3302 = vpop.f32.mrf.mxu0
    %3303 = vdwg.mxu0
    %3304 = vrot.lane.b32.xlu0 %v2395, 112
    %v3305 = vpop.permute.xlu0 %3304
    %3306 = vrot.lane.b32.xlu0 %v2395, 80
    %v3307 = vpop.permute.xlu0 %3306
    %v3308 = vsel %vm332, %v3305, 0
    %v3310 = vsel %vm332, %v3307, 0
    %3312 = vmatprep.subr.mxu0 0.0
    %3313 = vmatpush1.xpose.msra.mxu0 0.0
    %3314 = vmatprep.subr.mxu0 0.0
    %3315 = vmatpush1.xpose.msra.mxu0 0.0
    %3316 = vmatprep.subr.mxu0 0.0
    %3317 = vmatpush1.xpose.msra.mxu0 0.0
    %3318 = vmatprep.subr.mxu0 0.0
    %3319 = vmatpush1.xpose.msra.mxu0 0.0
    %3320 = vmatprep.subr.mxu0 0.0
    %3321 = vmatpush1.xpose.msra.mxu0 0.0
    %3322 = vmatprep.subr.mxu0 0.0
    %3323 = vmatpush1.xpose.msra.mxu0 0.0
    %3324 = vmatprep.subr.mxu0 0.0
    %3325 = vmatpush1.xpose.msra.mxu0 0.0
    %3326 = vmatprep.subr.mxu0 0.0
    %3327 = vmatpush1.xpose.msra.mxu0 0.0
    %3328 = vmatprep.subr.mxu0 0.0
    %3329 = vmatpush1.xpose.msra.mxu0 0.0
    %3330 = vmatprep.subr.mxu0 0.0
    %3331 = vmatpush1.xpose.msra.mxu0 0.0
    %3332 = vmatprep.subr.mxu0 0.0
    %3333 = vmatpush1.xpose.msra.mxu0 0.0
    %3334 = vmatprep.subr.mxu0 0.0
    %3335 = vmatpush1.xpose.msra.mxu0 0.0
    %3336 = vmatprep.subr.mxu0 0.0
    %3337 = vmatpush1.xpose.msra.mxu0 0.0
    %3338 = vmatprep.subr.mxu0 0.0
    %3339 = vmatpush1.xpose.msra.mxu0 0.0
    %3340 = vmatprep.subr.mxu0 0.0
    %3341 = vmatpush1.xpose.msra.mxu0 0.0
    %3342 = vmatprep.subr.mxu0 0.0
    %3343 = vmatpush1.xpose.msra.mxu0 %v3310
    %3344 = vmatprep.subr.mxu0 0.0
    %3345 = vmatpush2.xpose.msra.mxu0 0.0
    %3346 = vmatprep.subr.mxu0 0.0
    %3347 = vmatpush2.xpose.msra.mxu0 0.0
    %3348 = vmatprep.subr.mxu0 0.0
    %3349 = vmatpush2.xpose.msra.mxu0 0.0
    %3350 = vmatprep.subr.mxu0 0.0
    %3351 = vmatpush2.xpose.msra.mxu0 0.0
    %3352 = vmatprep.subr.mxu0 0.0
    %3353 = vmatpush2.xpose.msra.mxu0 0.0
    %3354 = vmatprep.subr.mxu0 0.0
    %3355 = vmatpush2.xpose.msra.mxu0 0.0
    %3356 = vmatprep.subr.mxu0 0.0
    %3357 = vmatpush2.xpose.msra.mxu0 0.0
    %3358 = vmatprep.subr.mxu0 0.0
    %3359 = vmatpush2.xpose.msra.mxu0 0.0
    %3360 = vmatprep.subr.mxu0 0.0
    %3361 = vmatpush2.xpose.msra.mxu0 0.0
    %3362 = vmatprep.subr.mxu0 0.0
    %3363 = vmatpush2.xpose.msra.mxu0 0.0
    %3364 = vmatprep.subr.mxu0 0.0
    %3365 = vmatpush2.xpose.msra.mxu0 0.0
    %3366 = vmatprep.subr.mxu0 0.0
    %3367 = vmatpush2.xpose.msra.mxu0 0.0
    %3368 = vmatprep.subr.mxu0 0.0
    %3369 = vmatpush2.xpose.msra.mxu0 0.0
    %3370 = vmatprep.subr.mxu0 0.0
    %3371 = vmatpush2.xpose.msra.mxu0 0.0
    %3372 = vmatprep.subr.mxu0 0.0
    %3373 = vmatpush2.xpose.msra.mxu0 0.0
    %3374 = vmatprep.subr.mxu0 0.0
    %3375 = vmatpush2.xpose.msra.mxu0 0.0
    %3376 = vmatprep.mubr.f32.mxu0 0.0
    %3377 = vmatmul.mubr.f32.gmra.mxu0 %v3308
    %v3378 = vpop.f32.mrf.mxu0
    %v3379 = vadd.f32 0.0, %v3378
    %v3380 = vpop.f32.mrf.mxu0
    %3381 = vdwg.mxu0
    %v3382 = vmul.f32 %v3301, 0.35355338
    %v3383 = vmul.f32 %v3379, 0.35355338
    %v3384 = vadd.f32 %v3382, %v489
    %v3385 = vadd.f32 %v3383, %v493
    %v3386 = vsel %vm332, %v3384, -inf
    %3387 = vmax.xlane.f32.xlu0 %v3386
    %v3388 = vpop.xlane.xlu0 %3387
    %v3389 = vsel %vm332, %v3385, -inf
    %3390 = vmax.xlane.f32.xlu0 %v3389
    %v3391 = vpop.xlane.xlu0 %3390
    %v3392 = vsub.f32 %v3384, %v3388
    %v3393 = vsub.f32 %v3385, %v3391
    %v3394 = vmul.f32 %v3392, 1.442695
    %v3395 = vpow.pop %v3394
    %v3396 = vmul.f32 %v3393, 1.442695
    %v3397 = vpow.pop %v3396
    %v3398 = vsel %vm332, %v3395, 0.0
    %3399 = vadd.xlane.f32.xlu0 %v3398
    %v3400 = vpop.xlane.xlu0 %3399
    %v3401 = vsel %vm332, %v3397, 0.0
    %3402 = vadd.xlane.f32.xlu0 %v3401
    %v3403 = vpop.xlane.xlu0 %3402
    %v3404 = vrcp.pop %v3400
    %v3405 = vrcp.pop %v3403
    %v3406 = vmul.f32 %v3395, %v3404
    %v3407 = vmul.f32 %v3397, %v3405
    %3408 = vrot.lane.b32.xlu0 %v2390, 48
    %v3409 = vpop.permute.xlu0 %3408
    %v3412 = vsel %vm332, %v3406, 0
    %3414 = vmatprep.subr.mxu0 0.0
    %3415 = vmatpush1.msra.mxu0 0.0
    %3416 = vmatprep.subr.mxu0 0.0
    %3417 = vmatpush1.msra.mxu0 0.0
    %3418 = vmatprep.subr.mxu0 0.0
    %3419 = vmatpush1.msra.mxu0 0.0
    %3420 = vmatprep.subr.mxu0 0.0
    %3421 = vmatpush1.msra.mxu0 0.0
    %3422 = vmatprep.subr.mxu0 0.0
    %3423 = vmatpush1.msra.mxu0 0.0
    %3424 = vmatprep.subr.mxu0 0.0
    %3425 = vmatpush1.msra.mxu0 0.0
    %3426 = vmatprep.subr.mxu0 0.0
    %3427 = vmatpush1.msra.mxu0 0.0
    %3428 = vmatprep.subr.mxu0 0.0
    %3429 = vmatpush1.msra.mxu0 0.0
    %3430 = vmatprep.subr.mxu0 0.0
    %3431 = vmatpush1.msra.mxu0 0.0
    %3432 = vmatprep.subr.mxu0 0.0
    %3433 = vmatpush1.msra.mxu0 0.0
    %3434 = vmatprep.subr.mxu0 0.0
    %3435 = vmatpush1.msra.mxu0 0.0
    %3436 = vmatprep.subr.mxu0 0.0
    %3437 = vmatpush1.msra.mxu0 0.0
    %3438 = vmatprep.subr.mxu0 0.0
    %3439 = vmatpush1.msra.mxu0 0.0
    %3440 = vmatprep.subr.mxu0 0.0
    %3441 = vmatpush1.msra.mxu0 0.0
    %3442 = vmatprep.subr.mxu0 0.0
    %3443 = vmatpush1.msra.mxu0 0.0
    %3444 = vmatprep.subr.mxu0 0.0
    %3445 = vmatpush1.msra.mxu0 %v3409
    %3446 = vmatprep.subr.mxu0 0.0
    %3447 = vmatpush2.msra.mxu0 0.0
    %3448 = vmatprep.subr.mxu0 0.0
    %3449 = vmatpush2.msra.mxu0 0.0
    %3450 = vmatprep.subr.mxu0 0.0
    %3451 = vmatpush2.msra.mxu0 0.0
    %3452 = vmatprep.subr.mxu0 0.0
    %3453 = vmatpush2.msra.mxu0 0.0
    %3454 = vmatprep.subr.mxu0 0.0
    %3455 = vmatpush2.msra.mxu0 0.0
    %3456 = vmatprep.subr.mxu0 0.0
    %3457 = vmatpush2.msra.mxu0 0.0
    %3458 = vmatprep.subr.mxu0 0.0
    %3459 = vmatpush2.msra.mxu0 0.0
    %3460 = vmatprep.subr.mxu0 0.0
    %3461 = vmatpush2.msra.mxu0 0.0
    %3462 = vmatprep.subr.mxu0 0.0
    %3463 = vmatpush2.msra.mxu0 0.0
    %3464 = vmatprep.subr.mxu0 0.0
    %3465 = vmatpush2.msra.mxu0 0.0
    %3466 = vmatprep.subr.mxu0 0.0
    %3467 = vmatpush2.msra.mxu0 0.0
    %3468 = vmatprep.subr.mxu0 0.0
    %3469 = vmatpush2.msra.mxu0 0.0
    %3470 = vmatprep.subr.mxu0 0.0
    %3471 = vmatpush2.msra.mxu0 0.0
    %3472 = vmatprep.subr.mxu0 0.0
    %3473 = vmatpush2.msra.mxu0 0.0
    %3474 = vmatprep.subr.mxu0 0.0
    %3475 = vmatpush2.msra.mxu0 0.0
    %3476 = vmatprep.subr.mxu0 0.0
    %3477 = vmatpush2.msra.mxu0 0.0
    %3478 = vmatprep.mubr.f32.mxu0 0.0
    %3479 = vmatmul.mubr.f32.gmra.mxu0 %v3412
    %v3480 = vpop.f32.mrf.mxu0
    %v3481 = vadd.f32 0.0, %v3480
    %v3482 = vpop.f32.mrf.mxu0
    %3483 = vdwg.mxu0
    %3484 = vrot.lane.b32.xlu0 %v2395, 48
    %v3485 = vpop.permute.xlu0 %3484
    %v3488 = vsel %vm332, %v3407, 0
    %3490 = vmatprep.subr.mxu0 0.0
    %3491 = vmatpush1.msra.mxu0 0.0
    %3492 = vmatprep.subr.mxu0 0.0
    %3493 = vmatpush1.msra.mxu0 0.0
    %3494 = vmatprep.subr.mxu0 0.0
    %3495 = vmatpush1.msra.mxu0 0.0
    %3496 = vmatprep.subr.mxu0 0.0
    %3497 = vmatpush1.msra.mxu0 0.0
    %3498 = vmatprep.subr.mxu0 0.0
    %3499 = vmatpush1.msra.mxu0 0.0
    %3500 = vmatprep.subr.mxu0 0.0
    %3501 = vmatpush1.msra.mxu0 0.0
    %3502 = vmatprep.subr.mxu0 0.0
    %3503 = vmatpush1.msra.mxu0 0.0
    %3504 = vmatprep.subr.mxu0 0.0
    %3505 = vmatpush1.msra.mxu0 0.0
    %3506 = vmatprep.subr.mxu0 0.0
    %3507 = vmatpush1.msra.mxu0 0.0
    %3508 = vmatprep.subr.mxu0 0.0
    %3509 = vmatpush1.msra.mxu0 0.0
    %3510 = vmatprep.subr.mxu0 0.0
    %3511 = vmatpush1.msra.mxu0 0.0
    %3512 = vmatprep.subr.mxu0 0.0
    %3513 = vmatpush1.msra.mxu0 0.0
    %3514 = vmatprep.subr.mxu0 0.0
    %3515 = vmatpush1.msra.mxu0 0.0
    %3516 = vmatprep.subr.mxu0 0.0
    %3517 = vmatpush1.msra.mxu0 0.0
    %3518 = vmatprep.subr.mxu0 0.0
    %3519 = vmatpush1.msra.mxu0 0.0
    %3520 = vmatprep.subr.mxu0 0.0
    %3521 = vmatpush1.msra.mxu0 %v3485
    %3522 = vmatprep.subr.mxu0 0.0
    %3523 = vmatpush2.msra.mxu0 0.0
    %3524 = vmatprep.subr.mxu0 0.0
    %3525 = vmatpush2.msra.mxu0 0.0
    %3526 = vmatprep.subr.mxu0 0.0
    %3527 = vmatpush2.msra.mxu0 0.0
    %3528 = vmatprep.subr.mxu0 0.0
    %3529 = vmatpush2.msra.mxu0 0.0
    %3530 = vmatprep.subr.mxu0 0.0
    %3531 = vmatpush2.msra.mxu0 0.0
    %3532 = vmatprep.subr.mxu0 0.0
    %3533 = vmatpush2.msra.mxu0 0.0
    %3534 = vmatprep.subr.mxu0 0.0
    %3535 = vmatpush2.msra.mxu0 0.0
    %3536 = vmatprep.subr.mxu0 0.0
    %3537 = vmatpush2.msra.mxu0 0.0
    %3538 = vmatprep.subr.mxu0 0.0
    %3539 = vmatpush2.msra.mxu0 0.0
    %3540 = vmatprep.subr.mxu0 0.0
    %3541 = vmatpush2.msra.mxu0 0.0
    %3542 = vmatprep.subr.mxu0 0.0
    %3543 = vmatpush2.msra.mxu0 0.0
    %3544 = vmatprep.subr.mxu0 0.0
    %3545 = vmatpush2.msra.mxu0 0.0
    %3546 = vmatprep.subr.mxu0 0.0
    %3547 = vmatpush2.msra.mxu0 0.0
    %3548 = vmatprep.subr.mxu0 0.0
    %3549 = vmatpush2.msra.mxu0 0.0
    %3550 = vmatprep.subr.mxu0 0.0
    %3551 = vmatpush2.msra.mxu0 0.0
    %3552 = vmatprep.subr.mxu0 0.0
    %3553 = vmatpush2.msra.mxu0 0.0
    %3554 = vmatprep.mubr.f32.mxu0 0.0
    %3555 = vmatmul.mubr.f32.gmra.mxu0 %v3488
    %v3556 = vpop.f32.mrf.mxu0
    %v3557 = vadd.f32 0.0, %v3556
    %v3558 = vpop.f32.mrf.mxu0
    %3559 = vdwg.mxu0
    %v3561 = vsel %vm332, %v3481, 0
    %v3564 = vsel %vm332, %v3557, 0
    %3566 = vmatprep.subr.mxu0 0.0
    %3567 = vmatpush1.msra.mxu0 0.0
    %3568 = vmatprep.subr.mxu0 0.0
    %3569 = vmatpush1.msra.mxu0 0.0
    %3570 = vmatprep.subr.mxu0 0.0
    %3571 = vmatpush1.msra.mxu0 0.0
    %3572 = vmatprep.subr.mxu0 0.0
    %3573 = vmatpush1.msra.mxu0 0.0
    %3574 = vmatprep.subr.mxu0 0.0
    %3575 = vmatpush1.msra.mxu0 0.0
    %3576 = vmatprep.subr.mxu0 0.0
    %3577 = vmatpush1.msra.mxu0 0.0
    %3578 = vmatprep.subr.mxu0 0.0
    %3579 = vmatpush1.msra.mxu0 0.0
    %3580 = vmatprep.subr.mxu0 0.0
    %3581 = vmatpush1.msra.mxu0 0.0
    %3582 = vmatprep.subr.mxu0 0.0
    %3583 = vmatpush1.msra.mxu0 0.0
    %3584 = vmatprep.subr.mxu0 0.0
    %3585 = vmatpush1.msra.mxu0 0.0
    %3586 = vmatprep.subr.mxu0 0.0
    %3587 = vmatpush1.msra.mxu0 0.0
    %3588 = vmatprep.subr.mxu0 0.0
    %3589 = vmatpush1.msra.mxu0 0.0
    %3590 = vmatprep.subr.mxu0 0.0
    %3591 = vmatpush1.msra.mxu0 0.0
    %3592 = vmatprep.subr.mxu0 0.0
    %3593 = vmatpush1.msra.mxu0 0.0
    %3594 = vmatprep.subr.mxu0 0.0
    %3595 = vmatpush1.msra.mxu0 0.0
    %3596 = vmatprep.subr.mxu0 0.0
    %3597 = vmatpush1.msra.mxu0 %v2307
    %3598 = vmatprep.subr.mxu0 0.0
    %3599 = vmatpush2.msra.mxu0 0.0
    %3600 = vmatprep.subr.mxu0 0.0
    %3601 = vmatpush2.msra.mxu0 0.0
    %3602 = vmatprep.subr.mxu0 0.0
    %3603 = vmatpush2.msra.mxu0 0.0
    %3604 = vmatprep.subr.mxu0 0.0
    %3605 = vmatpush2.msra.mxu0 0.0
    %3606 = vmatprep.subr.mxu0 0.0
    %3607 = vmatpush2.msra.mxu0 0.0
    %3608 = vmatprep.subr.mxu0 0.0
    %3609 = vmatpush2.msra.mxu0 0.0
    %3610 = vmatprep.subr.mxu0 0.0
    %3611 = vmatpush2.msra.mxu0 0.0
    %3612 = vmatprep.subr.mxu0 0.0
    %3613 = vmatpush2.msra.mxu0 0.0
    %3614 = vmatprep.subr.mxu0 0.0
    %3615 = vmatpush2.msra.mxu0 0.0
    %3616 = vmatprep.subr.mxu0 0.0
    %3617 = vmatpush2.msra.mxu0 0.0
    %3618 = vmatprep.subr.mxu0 0.0
    %3619 = vmatpush2.msra.mxu0 0.0
    %3620 = vmatprep.subr.mxu0 0.0
    %3621 = vmatpush2.msra.mxu0 0.0
    %3622 = vmatprep.subr.mxu0 0.0
    %3623 = vmatpush2.msra.mxu0 0.0
    %3624 = vmatprep.subr.mxu0 0.0
    %3625 = vmatpush2.msra.mxu0 0.0
    %3626 = vmatprep.subr.mxu0 0.0
    %3627 = vmatpush2.msra.mxu0 0.0
    %3628 = vmatprep.subr.mxu0 0.0
    %3629 = vmatpush2.msra.mxu0 0.0
    %3630 = vmatprep.mubr.f32.mxu0 0.0
    %3631 = vmatmul.mubr.f32.gmra.mxu0 %v3561
    %v3632 = vpop.f32.mrf.mxu0
    %v3633 = vadd.f32 0.0, %v3632
    %v3634 = vpop.f32.mrf.mxu0
    %3635 = vmatprep.mubr.f32.mxu0 0.0
    %3636 = vmatmul.mubr.f32.gmra.mxu0 %v3564
    %v3637 = vpop.f32.mrf.mxu0
    %v3638 = vadd.f32 0.0, %v3637
    %v3639 = vpop.f32.mrf.mxu0
    %3640 = vdwg.mxu0
    %v3641 = vadd.f32 %v3218, %v3633
    %v3642 = vadd.f32 %v3223, %v3638
    %3643 = vrot.lane.b32.xlu0 %v2390, 104
    %v3644 = vpop.permute.xlu0 %3643
    %3645 = vrot.lane.b32.xlu0 %v2390, 72
    %v3646 = vpop.permute.xlu0 %3645
    %v3647 = vsel %vm332, %v3644, 0
    %v3649 = vsel %vm332, %v3646, 0
    %3651 = vmatprep.subr.mxu0 0.0
    %3652 = vmatpush1.xpose.msra.mxu0 0.0
    %3653 = vmatprep.subr.mxu0 0.0
    %3654 = vmatpush1.xpose.msra.mxu0 0.0
    %3655 = vmatprep.subr.mxu0 0.0
    %3656 = vmatpush1.xpose.msra.mxu0 0.0
    %3657 = vmatprep.subr.mxu0 0.0
    %3658 = vmatpush1.xpose.msra.mxu0 0.0
    %3659 = vmatprep.subr.mxu0 0.0
    %3660 = vmatpush1.xpose.msra.mxu0 0.0
    %3661 = vmatprep.subr.mxu0 0.0
    %3662 = vmatpush1.xpose.msra.mxu0 0.0
    %3663 = vmatprep.subr.mxu0 0.0
    %3664 = vmatpush1.xpose.msra.mxu0 0.0
    %3665 = vmatprep.subr.mxu0 0.0
    %3666 = vmatpush1.xpose.msra.mxu0 0.0
    %3667 = vmatprep.subr.mxu0 0.0
    %3668 = vmatpush1.xpose.msra.mxu0 0.0
    %3669 = vmatprep.subr.mxu0 0.0
    %3670 = vmatpush1.xpose.msra.mxu0 0.0
    %3671 = vmatprep.subr.mxu0 0.0
    %3672 = vmatpush1.xpose.msra.mxu0 0.0
    %3673 = vmatprep.subr.mxu0 0.0
    %3674 = vmatpush1.xpose.msra.mxu0 0.0
    %3675 = vmatprep.subr.mxu0 0.0
    %3676 = vmatpush1.xpose.msra.mxu0 0.0
    %3677 = vmatprep.subr.mxu0 0.0
    %3678 = vmatpush1.xpose.msra.mxu0 0.0
    %3679 = vmatprep.subr.mxu0 0.0
    %3680 = vmatpush1.xpose.msra.mxu0 0.0
    %3681 = vmatprep.subr.mxu0 0.0
    %3682 = vmatpush1.xpose.msra.mxu0 %v3649
    %3683 = vmatprep.subr.mxu0 0.0
    %3684 = vmatpush2.xpose.msra.mxu0 0.0
    %3685 = vmatprep.subr.mxu0 0.0
    %3686 = vmatpush2.xpose.msra.mxu0 0.0
    %3687 = vmatprep.subr.mxu0 0.0
    %3688 = vmatpush2.xpose.msra.mxu0 0.0
    %3689 = vmatprep.subr.mxu0 0.0
    %3690 = vmatpush2.xpose.msra.mxu0 0.0
    %3691 = vmatprep.subr.mxu0 0.0
    %3692 = vmatpush2.xpose.msra.mxu0 0.0
    %3693 = vmatprep.subr.mxu0 0.0
    %3694 = vmatpush2.xpose.msra.mxu0 0.0
    %3695 = vmatprep.subr.mxu0 0.0
    %3696 = vmatpush2.xpose.msra.mxu0 0.0
    %3697 = vmatprep.subr.mxu0 0.0
    %3698 = vmatpush2.xpose.msra.mxu0 0.0
    %3699 = vmatprep.subr.mxu0 0.0
    %3700 = vmatpush2.xpose.msra.mxu0 0.0
    %3701 = vmatprep.subr.mxu0 0.0
    %3702 = vmatpush2.xpose.msra.mxu0 0.0
    %3703 = vmatprep.subr.mxu0 0.0
    %3704 = vmatpush2.xpose.msra.mxu0 0.0
    %3705 = vmatprep.subr.mxu0 0.0
    %3706 = vmatpush2.xpose.msra.mxu0 0.0
    %3707 = vmatprep.subr.mxu0 0.0
    %3708 = vmatpush2.xpose.msra.mxu0 0.0
    %3709 = vmatprep.subr.mxu0 0.0
    %3710 = vmatpush2.xpose.msra.mxu0 0.0
    %3711 = vmatprep.subr.mxu0 0.0
    %3712 = vmatpush2.xpose.msra.mxu0 0.0
    %3713 = vmatprep.subr.mxu0 0.0
    %3714 = vmatpush2.xpose.msra.mxu0 0.0
    %3715 = vmatprep.mubr.f32.mxu0 0.0
    %3716 = vmatmul.mubr.f32.gmra.mxu0 %v3647
    %v3717 = vpop.f32.mrf.mxu0
    %v3718 = vadd.f32 0.0, %v3717
    %v3719 = vpop.f32.mrf.mxu0
    %3720 = vdwg.mxu0
    %3721 = vrot.lane.b32.xlu0 %v2395, 104
    %v3722 = vpop.permute.xlu0 %3721
    %3723 = vrot.lane.b32.xlu0 %v2395, 72
    %v3724 = vpop.permute.xlu0 %3723
    %v3725 = vsel %vm332, %v3722, 0
    %v3727 = vsel %vm332, %v3724, 0
    %3729 = vmatprep.subr.mxu0 0.0
    %3730 = vmatpush1.xpose.msra.mxu0 0.0
    %3731 = vmatprep.subr.mxu0 0.0
    %3732 = vmatpush1.xpose.msra.mxu0 0.0
    %3733 = vmatprep.subr.mxu0 0.0
    %3734 = vmatpush1.xpose.msra.mxu0 0.0
    %3735 = vmatprep.subr.mxu0 0.0
    %3736 = vmatpush1.xpose.msra.mxu0 0.0
    %3737 = vmatprep.subr.mxu0 0.0
    %3738 = vmatpush1.xpose.msra.mxu0 0.0
    %3739 = vmatprep.subr.mxu0 0.0
    %3740 = vmatpush1.xpose.msra.mxu0 0.0
    %3741 = vmatprep.subr.mxu0 0.0
    %3742 = vmatpush1.xpose.msra.mxu0 0.0
    %3743 = vmatprep.subr.mxu0 0.0
    %3744 = vmatpush1.xpose.msra.mxu0 0.0
    %3745 = vmatprep.subr.mxu0 0.0
    %3746 = vmatpush1.xpose.msra.mxu0 0.0
    %3747 = vmatprep.subr.mxu0 0.0
    %3748 = vmatpush1.xpose.msra.mxu0 0.0
    %3749 = vmatprep.subr.mxu0 0.0
    %3750 = vmatpush1.xpose.msra.mxu0 0.0
    %3751 = vmatprep.subr.mxu0 0.0
    %3752 = vmatpush1.xpose.msra.mxu0 0.0
    %3753 = vmatprep.subr.mxu0 0.0
    %3754 = vmatpush1.xpose.msra.mxu0 0.0
    %3755 = vmatprep.subr.mxu0 0.0
    %3756 = vmatpush1.xpose.msra.mxu0 0.0
    %3757 = vmatprep.subr.mxu0 0.0
    %3758 = vmatpush1.xpose.msra.mxu0 0.0
    %3759 = vmatprep.subr.mxu0 0.0
    %3760 = vmatpush1.xpose.msra.mxu0 %v3727
    %3761 = vmatprep.subr.mxu0 0.0
    %3762 = vmatpush2.xpose.msra.mxu0 0.0
    %3763 = vmatprep.subr.mxu0 0.0
    %3764 = vmatpush2.xpose.msra.mxu0 0.0
    %3765 = vmatprep.subr.mxu0 0.0
    %3766 = vmatpush2.xpose.msra.mxu0 0.0
    %3767 = vmatprep.subr.mxu0 0.0
    %3768 = vmatpush2.xpose.msra.mxu0 0.0
    %3769 = vmatprep.subr.mxu0 0.0
    %3770 = vmatpush2.xpose.msra.mxu0 0.0
    %3771 = vmatprep.subr.mxu0 0.0
    %3772 = vmatpush2.xpose.msra.mxu0 0.0
    %3773 = vmatprep.subr.mxu0 0.0
    %3774 = vmatpush2.xpose.msra.mxu0 0.0
    %3775 = vmatprep.subr.mxu0 0.0
    %3776 = vmatpush2.xpose.msra.mxu0 0.0
    %3777 = vmatprep.subr.mxu0 0.0
    %3778 = vmatpush2.xpose.msra.mxu0 0.0
    %3779 = vmatprep.subr.mxu0 0.0
    %3780 = vmatpush2.xpose.msra.mxu0 0.0
    %3781 = vmatprep.subr.mxu0 0.0
    %3782 = vmatpush2.xpose.msra.mxu0 0.0
    %3783 = vmatprep.subr.mxu0 0.0
    %3784 = vmatpush2.xpose.msra.mxu0 0.0
    %3785 = vmatprep.subr.mxu0 0.0
    %3786 = vmatpush2.xpose.msra.mxu0 0.0
    %3787 = vmatprep.subr.mxu0 0.0
    %3788 = vmatpush2.xpose.msra.mxu0 0.0
    %3789 = vmatprep.subr.mxu0 0.0
    %3790 = vmatpush2.xpose.msra.mxu0 0.0
    %3791 = vmatprep.subr.mxu0 0.0
    %3792 = vmatpush2.xpose.msra.mxu0 0.0
    %3793 = vmatprep.mubr.f32.mxu0 0.0
    %3794 = vmatmul.mubr.f32.gmra.mxu0 %v3725
    %v3795 = vpop.f32.mrf.mxu0
    %v3796 = vadd.f32 0.0, %v3795
    %v3797 = vpop.f32.mrf.mxu0
    %3798 = vdwg.mxu0
    %v3799 = vmul.f32 %v3718, 0.35355338
    %v3800 = vmul.f32 %v3796, 0.35355338
    %v3801 = vadd.f32 %v3799, %v489
    %v3802 = vadd.f32 %v3800, %v493
    %v3803 = vsel %vm332, %v3801, -inf
    %3804 = vmax.xlane.f32.xlu0 %v3803
    %v3805 = vpop.xlane.xlu0 %3804
    %v3806 = vsel %vm332, %v3802, -inf
    %3807 = vmax.xlane.f32.xlu0 %v3806
    %v3808 = vpop.xlane.xlu0 %3807
    %v3809 = vsub.f32 %v3801, %v3805
    %v3810 = vsub.f32 %v3802, %v3808
    %v3811 = vmul.f32 %v3809, 1.442695
    %v3812 = vpow.pop %v3811
    %v3813 = vmul.f32 %v3810, 1.442695
    %v3814 = vpow.pop %v3813
    %v3815 = vsel %vm332, %v3812, 0.0
    %3816 = vadd.xlane.f32.xlu0 %v3815
    %v3817 = vpop.xlane.xlu0 %3816
    %v3818 = vsel %vm332, %v3814, 0.0
    %3819 = vadd.xlane.f32.xlu0 %v3818
    %v3820 = vpop.xlane.xlu0 %3819
    %v3821 = vrcp.pop %v3817
    %v3822 = vrcp.pop %v3820
    %v3823 = vmul.f32 %v3812, %v3821
    %v3824 = vmul.f32 %v3814, %v3822
    %3825 = vrot.lane.b32.xlu0 %v2390, 40
    %v3826 = vpop.permute.xlu0 %3825
    %v3829 = vsel %vm332, %v3823, 0
    %3831 = vmatprep.subr.mxu0 0.0
    %3832 = vmatpush1.msra.mxu0 0.0
    %3833 = vmatprep.subr.mxu0 0.0
    %3834 = vmatpush1.msra.mxu0 0.0
    %3835 = vmatprep.subr.mxu0 0.0
    %3836 = vmatpush1.msra.mxu0 0.0
    %3837 = vmatprep.subr.mxu0 0.0
    %3838 = vmatpush1.msra.mxu0 0.0
    %3839 = vmatprep.subr.mxu0 0.0
    %3840 = vmatpush1.msra.mxu0 0.0
    %3841 = vmatprep.subr.mxu0 0.0
    %3842 = vmatpush1.msra.mxu0 0.0
    %3843 = vmatprep.subr.mxu0 0.0
    %3844 = vmatpush1.msra.mxu0 0.0
    %3845 = vmatprep.subr.mxu0 0.0
    %3846 = vmatpush1.msra.mxu0 0.0
    %3847 = vmatprep.subr.mxu0 0.0
    %3848 = vmatpush1.msra.mxu0 0.0
    %3849 = vmatprep.subr.mxu0 0.0
    %3850 = vmatpush1.msra.mxu0 0.0
    %3851 = vmatprep.subr.mxu0 0.0
    %3852 = vmatpush1.msra.mxu0 0.0
    %3853 = vmatprep.subr.mxu0 0.0
    %3854 = vmatpush1.msra.mxu0 0.0
    %3855 = vmatprep.subr.mxu0 0.0
    %3856 = vmatpush1.msra.mxu0 0.0
    %3857 = vmatprep.subr.mxu0 0.0
    %3858 = vmatpush1.msra.mxu0 0.0
    %3859 = vmatprep.subr.mxu0 0.0
    %3860 = vmatpush1.msra.mxu0 0.0
    %3861 = vmatprep.subr.mxu0 0.0
    %3862 = vmatpush1.msra.mxu0 %v3826
    %3863 = vmatprep.subr.mxu0 0.0
    %3864 = vmatpush2.msra.mxu0 0.0
    %3865 = vmatprep.subr.mxu0 0.0
    %3866 = vmatpush2.msra.mxu0 0.0
    %3867 = vmatprep.subr.mxu0 0.0
    %3868 = vmatpush2.msra.mxu0 0.0
    %3869 = vmatprep.subr.mxu0 0.0
    %3870 = vmatpush2.msra.mxu0 0.0
    %3871 = vmatprep.subr.mxu0 0.0
    %3872 = vmatpush2.msra.mxu0 0.0
    %3873 = vmatprep.subr.mxu0 0.0
    %3874 = vmatpush2.msra.mxu0 0.0
    %3875 = vmatprep.subr.mxu0 0.0
    %3876 = vmatpush2.msra.mxu0 0.0
    %3877 = vmatprep.subr.mxu0 0.0
    %3878 = vmatpush2.msra.mxu0 0.0
    %3879 = vmatprep.subr.mxu0 0.0
    %3880 = vmatpush2.msra.mxu0 0.0
    %3881 = vmatprep.subr.mxu0 0.0
    %3882 = vmatpush2.msra.mxu0 0.0
    %3883 = vmatprep.subr.mxu0 0.0
    %3884 = vmatpush2.msra.mxu0 0.0
    %3885 = vmatprep.subr.mxu0 0.0
    %3886 = vmatpush2.msra.mxu0 0.0
    %3887 = vmatprep.subr.mxu0 0.0
    %3888 = vmatpush2.msra.mxu0 0.0
    %3889 = vmatprep.subr.mxu0 0.0
    %3890 = vmatpush2.msra.mxu0 0.0
    %3891 = vmatprep.subr.mxu0 0.0
    %3892 = vmatpush2.msra.mxu0 0.0
    %3893 = vmatprep.subr.mxu0 0.0
    %3894 = vmatpush2.msra.mxu0 0.0
    %3895 = vmatprep.mubr.f32.mxu0 0.0
    %3896 = vmatmul.mubr.f32.gmra.mxu0 %v3829
    %v3897 = vpop.f32.mrf.mxu0
    %v3898 = vadd.f32 0.0, %v3897
    %v3899 = vpop.f32.mrf.mxu0
    %3900 = vdwg.mxu0
    %3901 = vrot.lane.b32.xlu0 %v2395, 40
    %v3902 = vpop.permute.xlu0 %3901
    %v3905 = vsel %vm332, %v3824, 0
    %3907 = vmatprep.subr.mxu0 0.0
    %3908 = vmatpush1.msra.mxu0 0.0
    %3909 = vmatprep.subr.mxu0 0.0
    %3910 = vmatpush1.msra.mxu0 0.0
    %3911 = vmatprep.subr.mxu0 0.0
    %3912 = vmatpush1.msra.mxu0 0.0
    %3913 = vmatprep.subr.mxu0 0.0
    %3914 = vmatpush1.msra.mxu0 0.0
    %3915 = vmatprep.subr.mxu0 0.0
    %3916 = vmatpush1.msra.mxu0 0.0
    %3917 = vmatprep.subr.mxu0 0.0
    %3918 = vmatpush1.msra.mxu0 0.0
    %3919 = vmatprep.subr.mxu0 0.0
    %3920 = vmatpush1.msra.mxu0 0.0
    %3921 = vmatprep.subr.mxu0 0.0
    %3922 = vmatpush1.msra.mxu0 0.0
    %3923 = vmatprep.subr.mxu0 0.0
    %3924 = vmatpush1.msra.mxu0 0.0
    %3925 = vmatprep.subr.mxu0 0.0
    %3926 = vmatpush1.msra.mxu0 0.0
    %3927 = vmatprep.subr.mxu0 0.0
    %3928 = vmatpush1.msra.mxu0 0.0
    %3929 = vmatprep.subr.mxu0 0.0
    %3930 = vmatpush1.msra.mxu0 0.0
    %3931 = vmatprep.subr.mxu0 0.0
    %3932 = vmatpush1.msra.mxu0 0.0
    %3933 = vmatprep.subr.mxu0 0.0
    %3934 = vmatpush1.msra.mxu0 0.0
    %3935 = vmatprep.subr.mxu0 0.0
    %3936 = vmatpush1.msra.mxu0 0.0
    %3937 = vmatprep.subr.mxu0 0.0
    %3938 = vmatpush1.msra.mxu0 %v3902
    %3939 = vmatprep.subr.mxu0 0.0
    %3940 = vmatpush2.msra.mxu0 0.0
    %3941 = vmatprep.subr.mxu0 0.0
    %3942 = vmatpush2.msra.mxu0 0.0
    %3943 = vmatprep.subr.mxu0 0.0
    %3944 = vmatpush2.msra.mxu0 0.0
    %3945 = vmatprep.subr.mxu0 0.0
    %3946 = vmatpush2.msra.mxu0 0.0
    %3947 = vmatprep.subr.mxu0 0.0
    %3948 = vmatpush2.msra.mxu0 0.0
    %3949 = vmatprep.subr.mxu0 0.0
    %3950 = vmatpush2.msra.mxu0 0.0
    %3951 = vmatprep.subr.mxu0 0.0
    %3952 = vmatpush2.msra.mxu0 0.0
    %3953 = vmatprep.subr.mxu0 0.0
    %3954 = vmatpush2.msra.mxu0 0.0
    %3955 = vmatprep.subr.mxu0 0.0
    %3956 = vmatpush2.msra.mxu0 0.0
    %3957 = vmatprep.subr.mxu0 0.0
    %3958 = vmatpush2.msra.mxu0 0.0
    %3959 = vmatprep.subr.mxu0 0.0
    %3960 = vmatpush2.msra.mxu0 0.0
    %3961 = vmatprep.subr.mxu0 0.0
    %3962 = vmatpush2.msra.mxu0 0.0
    %3963 = vmatprep.subr.mxu0 0.0
    %3964 = vmatpush2.msra.mxu0 0.0
    %3965 = vmatprep.subr.mxu0 0.0
    %3966 = vmatpush2.msra.mxu0 0.0
    %3967 = vmatprep.subr.mxu0 0.0
    %3968 = vmatpush2.msra.mxu0 0.0
    %3969 = vmatprep.subr.mxu0 0.0
    %3970 = vmatpush2.msra.mxu0 0.0
    %3971 = vmatprep.mubr.f32.mxu0 0.0
    %3972 = vmatmul.mubr.f32.gmra.mxu0 %v3905
    %v3973 = vpop.f32.mrf.mxu0
    %v3974 = vadd.f32 0.0, %v3973
    %v3975 = vpop.f32.mrf.mxu0
    %3976 = vdwg.mxu0
    %v3978 = vsel %vm332, %v3898, 0
    %v3981 = vsel %vm332, %v3974, 0
    %3983 = vmatprep.subr.mxu0 0.0
    %3984 = vmatpush1.msra.mxu0 0.0
    %3985 = vmatprep.subr.mxu0 0.0
    %3986 = vmatpush1.msra.mxu0 0.0
    %3987 = vmatprep.subr.mxu0 0.0
    %3988 = vmatpush1.msra.mxu0 0.0
    %3989 = vmatprep.subr.mxu0 0.0
    %3990 = vmatpush1.msra.mxu0 0.0
    %3991 = vmatprep.subr.mxu0 0.0
    %3992 = vmatpush1.msra.mxu0 0.0
    %3993 = vmatprep.subr.mxu0 0.0
    %3994 = vmatpush1.msra.mxu0 0.0
    %3995 = vmatprep.subr.mxu0 0.0
    %3996 = vmatpush1.msra.mxu0 0.0
    %3997 = vmatprep.subr.mxu0 0.0
    %3998 = vmatpush1.msra.mxu0 0.0
    %3999 = vmatprep.subr.mxu0 0.0
    %4000 = vmatpush1.msra.mxu0 0.0
    %4001 = vmatprep.subr.mxu0 0.0
    %4002 = vmatpush1.msra.mxu0 0.0
    %4003 = vmatprep.subr.mxu0 0.0
    %4004 = vmatpush1.msra.mxu0 0.0
    %4005 = vmatprep.subr.mxu0 0.0
    %4006 = vmatpush1.msra.mxu0 0.0
    %4007 = vmatprep.subr.mxu0 0.0
    %4008 = vmatpush1.msra.mxu0 0.0
    %4009 = vmatprep.subr.mxu0 0.0
    %4010 = vmatpush1.msra.mxu0 0.0
    %4011 = vmatprep.subr.mxu0 0.0
    %4012 = vmatpush1.msra.mxu0 0.0
    %4013 = vmatprep.subr.mxu0 0.0
    %4014 = vmatpush1.msra.mxu0 %v2308
    %4015 = vmatprep.subr.mxu0 0.0
    %4016 = vmatpush2.msra.mxu0 0.0
    %4017 = vmatprep.subr.mxu0 0.0
    %4018 = vmatpush2.msra.mxu0 0.0
    %4019 = vmatprep.subr.mxu0 0.0
    %4020 = vmatpush2.msra.mxu0 0.0
    %4021 = vmatprep.subr.mxu0 0.0
    %4022 = vmatpush2.msra.mxu0 0.0
    %4023 = vmatprep.subr.mxu0 0.0
    %4024 = vmatpush2.msra.mxu0 0.0
    %4025 = vmatprep.subr.mxu0 0.0
    %4026 = vmatpush2.msra.mxu0 0.0
    %4027 = vmatprep.subr.mxu0 0.0
    %4028 = vmatpush2.msra.mxu0 0.0
    %4029 = vmatprep.subr.mxu0 0.0
    %4030 = vmatpush2.msra.mxu0 0.0
    %4031 = vmatprep.subr.mxu0 0.0
    %4032 = vmatpush2.msra.mxu0 0.0
    %4033 = vmatprep.subr.mxu0 0.0
    %4034 = vmatpush2.msra.mxu0 0.0
    %4035 = vmatprep.subr.mxu0 0.0
    %4036 = vmatpush2.msra.mxu0 0.0
    %4037 = vmatprep.subr.mxu0 0.0
    %4038 = vmatpush2.msra.mxu0 0.0
    %4039 = vmatprep.subr.mxu0 0.0
    %4040 = vmatpush2.msra.mxu0 0.0
    %4041 = vmatprep.subr.mxu0 0.0
    %4042 = vmatpush2.msra.mxu0 0.0
    %4043 = vmatprep.subr.mxu0 0.0
    %4044 = vmatpush2.msra.mxu0 0.0
    %4045 = vmatprep.subr.mxu0 0.0
    %4046 = vmatpush2.msra.mxu0 0.0
    %4047 = vmatprep.mubr.f32.mxu0 0.0
    %4048 = vmatmul.mubr.f32.gmra.mxu0 %v3978
    %v4049 = vpop.f32.mrf.mxu0
    %v4050 = vadd.f32 0.0, %v4049
    %v4051 = vpop.f32.mrf.mxu0
    %4052 = vmatprep.mubr.f32.mxu0 0.0
    %4053 = vmatmul.mubr.f32.gmra.mxu0 %v3981
    %v4054 = vpop.f32.mrf.mxu0
    %v4055 = vadd.f32 0.0, %v4054
    %v4056 = vpop.f32.mrf.mxu0
    %4057 = vdwg.mxu0
    %v4058 = vadd.f32 %v3641, %v4050
    %v4059 = vadd.f32 %v3642, %v4055
    %v4061 = vlaneseq
    %v4062 = vshrl.u32 %v4061, 7
    %v4063 = vsub.s32 0, %v4062
    %v4064 = vrot.slane %v2310, %v4063
    %v4066 = vadd.f32 %v4058, %v4064
    %v4067 = vadd.f32 %v4059, %v4064
    %v4068 = vadd.f32 %v2295, %v4066
    %v4069 = vadd.f32 %v2296, %v4067
    %s4070 = scalar_lea.vmem %s7, 1
    %v4071 = vld [vmem:[%s4070] sm:$0x1]
    %s4072 = scalar_lea.vmem %s8, 1
    %v4073 = vld [vmem:[%s4072] sm:$0x1]
    %v4074 = vsel %vm247, %v4068, 0.0
    %4075 = vadd.xlane.f32.xlu0 %v4074
    %v4076 = vpop.xlane.xlu0 %4075
    %v4077 = vsel %vm247, %v4069, 0.0
    %4078 = vadd.xlane.f32.xlu0 %v4077
    %v4079 = vpop.xlane.xlu0 %4078
    %v4080 = vmul.f32 %v4076, %v2020
    %v4081 = vmul.f32 %v4079, %v2020
    %v4082 = vmul.f32 %v4068, %v4068
    %v4083 = vmul.f32 %v4069, %v4069
    %v4084 = vsel %vm247, %v4082, 0.0
    %4085 = vadd.xlane.f32.xlu0 %v4084
    %v4086 = vpop.xlane.xlu0 %4085
    %v4087 = vsel %vm247, %v4083, 0.0
    %4088 = vadd.xlane.f32.xlu0 %v4087
    %v4089 = vpop.xlane.xlu0 %4088
    %v4090 = vmul.f32 %v4086, %v2020
    %v4091 = vmul.f32 %v4089, %v2020
    %v4092 = vmul.f32 %v4080, %v4080
    %v4093 = vmul.f32 %v4081, %v4081
    %v4094 = vsub.f32 %v4090, %v4092
    %v4095 = vsub.f32 %v4091, %v4093
    %v4096 = vsub.f32 %v4068, %v4080
    %v4097 = vsub.f32 %v4069, %v4081
    %v4098 = vadd.f32 %v4094, 1e-05
    %v4099 = vadd.f32 %v4095, 1e-05
    %v4100 = vrsqrt.pop %v4098
    %v4101 = vrsqrt.pop %v4099
    %v4102 = vmul.f32 %v4096, %v4100
    %v4103 = vmul.f32 %v4097, %v4101
    %v4105 = vlaneseq
    %v4106 = vshrl.u32 %v4105, 7
    %v4107 = vsub.s32 0, %v4106
    %v4108 = vrot.slane %v4071, %v4107
    %v4110 = vmul.f32 %v4102, %v4108
    %v4111 = vmul.f32 %v4103, %v4108
    %v4113 = vlaneseq
    %v4114 = vshrl.u32 %v4113, 7
    %v4115 = vsub.s32 0, %v4114
    %v4116 = vrot.slane %v4073, %v4115
    %v4118 = vadd.f32 %v4110, %v4116
    %v4119 = vadd.f32 %v4111, %v4116
    %s4120 = scalar_lea.vmem [#allocation11], 32
    %v4121 = vld [vmem:[%s4120] sm:$0xff]
    %v4122 = vld [vmem:[%s4120 + $0x8] sm:$0xff]
    %v4123 = vld [vmem:[%s4120 + $0x10] sm:$0xff]
    %v4124 = vld [vmem:[%s4120 + $0x18] sm:$0xff]
    %s4125 = scalar_lea.vmem %s10, 1
    %v4126 = vld [vmem:[%s4125] sm:$0x1]
    %v4128 = vlaneseq
    %v4129 = vshrl.u32 %v4128, 7
    %v4130 = vsub.s32 0, %v4129
    %v4131 = vrot.slane %v4126, %v4130
    %v4134 = vsel %vm247, %v4118, 0
    %v4137 = vsel %vm247, %v4119, 0
    %4139 = vmatprep.subr.mxu0 0.0
    %4140 = vmatpush1.msra.mxu0 0.0
    %4141 = vmatprep.subr.mxu0 0.0
    %4142 = vmatpush1.msra.mxu0 0.0
    %4143 = vmatprep.subr.mxu0 0.0
    %4144 = vmatpush1.msra.mxu0 0.0
    %4145 = vmatprep.subr.mxu0 0.0
    %4146 = vmatpush1.msra.mxu0 0.0
    %4147 = vmatprep.subr.mxu0 0.0
    %4148 = vmatpush1.msra.mxu0 0.0
    %4149 = vmatprep.subr.mxu0 0.0
    %4150 = vmatpush1.msra.mxu0 0.0
    %4151 = vmatprep.subr.mxu0 0.0
    %4152 = vmatpush1.msra.mxu0 0.0
    %4153 = vmatprep.subr.mxu0 0.0
    %4154 = vmatpush1.msra.mxu0 0.0
    %4155 = vmatprep.subr.mxu0 0.0
    %4156 = vmatpush1.msra.mxu0 0.0
    %4157 = vmatprep.subr.mxu0 0.0
    %4158 = vmatpush1.msra.mxu0 0.0
    %4159 = vmatprep.subr.mxu0 0.0
    %4160 = vmatpush1.msra.mxu0 0.0
    %4161 = vmatprep.subr.mxu0 0.0
    %4162 = vmatpush1.msra.mxu0 0.0
    %4163 = vmatprep.subr.mxu0 0.0
    %4164 = vmatpush1.msra.mxu0 %v4124
    %4165 = vmatprep.subr.mxu0 0.0
    %4166 = vmatpush1.msra.mxu0 %v4123
    %4167 = vmatprep.subr.mxu0 0.0
    %4168 = vmatpush1.msra.mxu0 %v4122
    %4169 = vmatprep.subr.mxu0 0.0
    %4170 = vmatpush1.msra.mxu0 %v4121
    %4171 = vmatprep.subr.mxu0 0.0
    %4172 = vmatpush2.msra.mxu0 0.0
    %4173 = vmatprep.subr.mxu0 0.0
    %4174 = vmatpush2.msra.mxu0 0.0
    %4175 = vmatprep.subr.mxu0 0.0
    %4176 = vmatpush2.msra.mxu0 0.0
    %4177 = vmatprep.subr.mxu0 0.0
    %4178 = vmatpush2.msra.mxu0 0.0
    %4179 = vmatprep.subr.mxu0 0.0
    %4180 = vmatpush2.msra.mxu0 0.0
    %4181 = vmatprep.subr.mxu0 0.0
    %4182 = vmatpush2.msra.mxu0 0.0
    %4183 = vmatprep.subr.mxu0 0.0
    %4184 = vmatpush2.msra.mxu0 0.0
    %4185 = vmatprep.subr.mxu0 0.0
    %4186 = vmatpush2.msra.mxu0 0.0
    %4187 = vmatprep.subr.mxu0 0.0
    %4188 = vmatpush2.msra.mxu0 0.0
    %4189 = vmatprep.subr.mxu0 0.0
    %4190 = vmatpush2.msra.mxu0 0.0
    %4191 = vmatprep.subr.mxu0 0.0
    %4192 = vmatpush2.msra.mxu0 0.0
    %4193 = vmatprep.subr.mxu0 0.0
    %4194 = vmatpush2.msra.mxu0 0.0
    %4195 = vmatprep.subr.mxu0 0.0
    %4196 = vmatpush2.msra.mxu0 0.0
    %4197 = vmatprep.subr.mxu0 0.0
    %4198 = vmatpush2.msra.mxu0 0.0
    %4199 = vmatprep.subr.mxu0 0.0
    %4200 = vmatpush2.msra.mxu0 0.0
    %4201 = vmatprep.subr.mxu0 0.0
    %4202 = vmatpush2.msra.mxu0 0.0
    %4203 = vmatprep.mubr.f32.mxu0 0.0
    %4204 = vmatmul.mubr.f32.gmra.mxu0 %v4134
    %v4205 = vpop.f32.mrf.mxu0
    %v4206 = vadd.f32 %v4131, %v4205
    %v4207 = vpop.f32.mrf.mxu0
    %4208 = vmatprep.mubr.f32.mxu0 0.0
    %4209 = vmatmul.mubr.f32.gmra.mxu0 %v4137
    %v4210 = vpop.f32.mrf.mxu0
    %v4211 = vadd.f32 %v4131, %v4210
    %v4212 = vpop.f32.mrf.mxu0
    %4213 = vdwg.mxu0
    %v4214 = vmax.f32 %v4206, 0.0
    %v4215 = vmax.f32 %v4211, 0.0
    %s4216 = scalar_lea.vmem [#allocation13], 32
    %v4217 = vld [vmem:[%s4216] sm:$0xff]
    %v4218 = vld [vmem:[%s4216 + $0x8] sm:$0xff]
    %v4219 = vld [vmem:[%s4216 + $0x10] sm:$0xff]
    %v4220 = vld [vmem:[%s4216 + $0x18] sm:$0xff]
    %s4221 = scalar_lea.vmem %s12, 1
    %v4222 = vld [vmem:[%s4221] sm:$0x1]
    %v4224 = vlaneseq
    %v4225 = vshrl.u32 %v4224, 7
    %v4226 = vsub.s32 0, %v4225
    %v4227 = vrot.slane %v4222, %v4226
    %v4230 = vsel %vm247, %v4214, 0
    %v4233 = vsel %vm247, %v4215, 0
    %4235 = vmatprep.subr.mxu0 0.0
    %4236 = vmatpush1.msra.mxu0 0.0
    %4237 = vmatprep.subr.mxu0 0.0
    %4238 = vmatpush1.msra.mxu0 0.0
    %4239 = vmatprep.subr.mxu0 0.0
    %4240 = vmatpush1.msra.mxu0 0.0
    %4241 = vmatprep.subr.mxu0 0.0
    %4242 = vmatpush1.msra.mxu0 0.0
    %4243 = vmatprep.subr.mxu0 0.0
    %4244 = vmatpush1.msra.mxu0 0.0
    %4245 = vmatprep.subr.mxu0 0.0
    %4246 = vmatpush1.msra.mxu0 0.0
    %4247 = vmatprep.subr.mxu0 0.0
    %4248 = vmatpush1.msra.mxu0 0.0
    %4249 = vmatprep.subr.mxu0 0.0
    %4250 = vmatpush1.msra.mxu0 0.0
    %4251 = vmatprep.subr.mxu0 0.0
    %4252 = vmatpush1.msra.mxu0 0.0
    %4253 = vmatprep.subr.mxu0 0.0
    %4254 = vmatpush1.msra.mxu0 0.0
    %4255 = vmatprep.subr.mxu0 0.0
    %4256 = vmatpush1.msra.mxu0 0.0
    %4257 = vmatprep.subr.mxu0 0.0
    %4258 = vmatpush1.msra.mxu0 0.0
    %4259 = vmatprep.subr.mxu0 0.0
    %4260 = vmatpush1.msra.mxu0 %v4220
    %4261 = vmatprep.subr.mxu0 0.0
    %4262 = vmatpush1.msra.mxu0 %v4219
    %4263 = vmatprep.subr.mxu0 0.0
    %4264 = vmatpush1.msra.mxu0 %v4218
    %4265 = vmatprep.subr.mxu0 0.0
    %4266 = vmatpush1.msra.mxu0 %v4217
    %4267 = vmatprep.subr.mxu0 0.0
    %4268 = vmatpush2.msra.mxu0 0.0
    %4269 = vmatprep.subr.mxu0 0.0
    %4270 = vmatpush2.msra.mxu0 0.0
    %4271 = vmatprep.subr.mxu0 0.0
    %4272 = vmatpush2.msra.mxu0 0.0
    %4273 = vmatprep.subr.mxu0 0.0
    %4274 = vmatpush2.msra.mxu0 0.0
    %4275 = vmatprep.subr.mxu0 0.0
    %4276 = vmatpush2.msra.mxu0 0.0
    %4277 = vmatprep.subr.mxu0 0.0
    %4278 = vmatpush2.msra.mxu0 0.0
    %4279 = vmatprep.subr.mxu0 0.0
    %4280 = vmatpush2.msra.mxu0 0.0
    %4281 = vmatprep.subr.mxu0 0.0
    %4282 = vmatpush2.msra.mxu0 0.0
    %4283 = vmatprep.subr.mxu0 0.0
    %4284 = vmatpush2.msra.mxu0 0.0
    %4285 = vmatprep.subr.mxu0 0.0
    %4286 = vmatpush2.msra.mxu0 0.0
    %4287 = vmatprep.subr.mxu0 0.0
    %4288 = vmatpush2.msra.mxu0 0.0
    %4289 = vmatprep.subr.mxu0 0.0
    %4290 = vmatpush2.msra.mxu0 0.0
    %4291 = vmatprep.subr.mxu0 0.0
    %4292 = vmatpush2.msra.mxu0 0.0
    %4293 = vmatprep.subr.mxu0 0.0
    %4294 = vmatpush2.msra.mxu0 0.0
    %4295 = vmatprep.subr.mxu0 0.0
    %4296 = vmatpush2.msra.mxu0 0.0
    %4297 = vmatprep.subr.mxu0 0.0
    %4298 = vmatpush2.msra.mxu0 0.0
    %4299 = vmatprep.mubr.f32.mxu0 0.0
    %4300 = vmatmul.mubr.f32.gmra.mxu0 %v4230
    %v4301 = vpop.f32.mrf.mxu0
    %v4302 = vadd.f32 %v4227, %v4301
    %v4303 = vpop.f32.mrf.mxu0
    %4304 = vmatprep.mubr.f32.mxu0 0.0
    %4305 = vmatmul.mubr.f32.gmra.mxu0 %v4233
    %v4306 = vpop.f32.mrf.mxu0
    %v4307 = vadd.f32 %v4227, %v4306
    %v4308 = vpop.f32.mrf.mxu0
    %4309 = vdwg.mxu0
    %v4310 = vadd.f32 %v4118, %v4302
    %v4311 = vadd.f32 %v4119, %v4307
    %s4312 = scalar_lea.vmem %s13, 1
    %v4313 = vld [vmem:[%s4312] sm:$0x1]
    %s4314 = scalar_lea.vmem %s14, 1
    %v4315 = vld [vmem:[%s4314] sm:$0x1]
    %v4316 = vsel %vm247, %v4310, 0.0
    %4317 = vadd.xlane.f32.xlu0 %v4316
    %v4318 = vpop.xlane.xlu0 %4317
    %v4319 = vsel %vm247, %v4311, 0.0
    %4320 = vadd.xlane.f32.xlu0 %v4319
    %v4321 = vpop.xlane.xlu0 %4320
    %v4322 = vmul.f32 %v4318, %v2020
    %v4323 = vmul.f32 %v4321, %v2020
    %v4324 = vmul.f32 %v4310, %v4310
    %v4325 = vmul.f32 %v4311, %v4311
    %v4326 = vsel %vm247, %v4324, 0.0
    %4327 = vadd.xlane.f32.xlu0 %v4326
    %v4328 = vpop.xlane.xlu0 %4327
    %v4329 = vsel %vm247, %v4325, 0.0
    %4330 = vadd.xlane.f32.xlu0 %v4329
    %v4331 = vpop.xlane.xlu0 %4330
    %v4332 = vmul.f32 %v4328, %v2020
    %v4333 = vmul.f32 %v4331, %v2020
    %v4334 = vmul.f32 %v4322, %v4322
    %v4335 = vmul.f32 %v4323, %v4323
    %v4336 = vsub.f32 %v4332, %v4334
    %v4337 = vsub.f32 %v4333, %v4335
    %v4338 = vsub.f32 %v4310, %v4322
    %v4339 = vsub.f32 %v4311, %v4323
    %v4340 = vadd.f32 %v4336, 1e-05
    %v4341 = vadd.f32 %v4337, 1e-05
    %v4342 = vrsqrt.pop %v4340
    %v4343 = vrsqrt.pop %v4341
    %v4344 = vmul.f32 %v4338, %v4342
    %v4345 = vmul.f32 %v4339, %v4343
    %v4347 = vlaneseq
    %v4348 = vshrl.u32 %v4347, 7
    %v4349 = vsub.s32 0, %v4348
    %v4350 = vrot.slane %v4313, %v4349
    %v4352 = vmul.f32 %v4344, %v4350
    %v4353 = vmul.f32 %v4345, %v4350
    %v4355 = vlaneseq
    %v4356 = vshrl.u32 %v4355, 7
    %v4357 = vsub.s32 0, %v4356
    %v4358 = vrot.slane %v4315, %v4357
    %v4360 = vadd.f32 %v4352, %v4358
    %v4361 = vadd.f32 %v4353, %v4358
    %v4362 = vld [vmem:[#allocation14] sm:$0xff]
    %v4363 = vld [vmem:[#allocation14 + $0x8] sm:$0xff]
    %v4364 = vld [vmem:[#allocation14 + $0x10] sm:$0xff]
    %v4365 = vld [vmem:[#allocation14 + $0x18] sm:$0xff]
    %v4366 = vld [vmem:[%s16] sm:$0x1]
    %v4368 = vlaneseq
    %v4369 = vshrl.u32 %v4368, 7
    %v4370 = vsub.s32 0, %v4369
    %v4371 = vrot.slane %v4366, %v4370
    %v4374 = vsel %vm247, %v4360, 0
    %v4377 = vsel %vm247, %v4361, 0
    %4379 = vmatprep.subr.mxu0 0.0
    %4380 = vmatpush1.msra.mxu0 0.0
    %4381 = vmatprep.subr.mxu0 0.0
    %4382 = vmatpush1.msra.mxu0 0.0
    %4383 = vmatprep.subr.mxu0 0.0
    %4384 = vmatpush1.msra.mxu0 0.0
    %4385 = vmatprep.subr.mxu0 0.0
    %4386 = vmatpush1.msra.mxu0 0.0
    %4387 = vmatprep.subr.mxu0 0.0
    %4388 = vmatpush1.msra.mxu0 0.0
    %4389 = vmatprep.subr.mxu0 0.0
    %4390 = vmatpush1.msra.mxu0 0.0
    %4391 = vmatprep.subr.mxu0 0.0
    %4392 = vmatpush1.msra.mxu0 0.0
    %4393 = vmatprep.subr.mxu0 0.0
    %4394 = vmatpush1.msra.mxu0 0.0
    %4395 = vmatprep.subr.mxu0 0.0
    %4396 = vmatpush1.msra.mxu0 0.0
    %4397 = vmatprep.subr.mxu0 0.0
    %4398 = vmatpush1.msra.mxu0 0.0
    %4399 = vmatprep.subr.mxu0 0.0
    %4400 = vmatpush1.msra.mxu0 0.0
    %4401 = vmatprep.subr.mxu0 0.0
    %4402 = vmatpush1.msra.mxu0 0.0
    %4403 = vmatprep.subr.mxu0 0.0
    %4404 = vmatpush1.msra.mxu0 %v4365
    %4405 = vmatprep.subr.mxu0 0.0
    %4406 = vmatpush1.msra.mxu0 %v4364
    %4407 = vmatprep.subr.mxu0 0.0
    %4408 = vmatpush1.msra.mxu0 %v4363
    %4409 = vmatprep.subr.mxu0 0.0
    %4410 = vmatpush1.msra.mxu0 %v4362
    %4411 = vmatprep.subr.mxu0 0.0
    %4412 = vmatpush2.msra.mxu0 0.0
    %4413 = vmatprep.subr.mxu0 0.0
    %4414 = vmatpush2.msra.mxu0 0.0
    %4415 = vmatprep.subr.mxu0 0.0
    %4416 = vmatpush2.msra.mxu0 0.0
    %4417 = vmatprep.subr.mxu0 0.0
    %4418 = vmatpush2.msra.mxu0 0.0
    %4419 = vmatprep.subr.mxu0 0.0
    %4420 = vmatpush2.msra.mxu0 0.0
    %4421 = vmatprep.subr.mxu0 0.0
    %4422 = vmatpush2.msra.mxu0 0.0
    %4423 = vmatprep.subr.mxu0 0.0
    %4424 = vmatpush2.msra.mxu0 0.0
    %4425 = vmatprep.subr.mxu0 0.0
    %4426 = vmatpush2.msra.mxu0 0.0
    %4427 = vmatprep.subr.mxu0 0.0
    %4428 = vmatpush2.msra.mxu0 0.0
    %4429 = vmatprep.subr.mxu0 0.0
    %4430 = vmatpush2.msra.mxu0 0.0
    %4431 = vmatprep.subr.mxu0 0.0
    %4432 = vmatpush2.msra.mxu0 0.0
    %4433 = vmatprep.subr.mxu0 0.0
    %4434 = vmatpush2.msra.mxu0 0.0
    %4435 = vmatprep.subr.mxu0 0.0
    %4436 = vmatpush2.msra.mxu0 0.0
    %4437 = vmatprep.subr.mxu0 0.0
    %4438 = vmatpush2.msra.mxu0 0.0
    %4439 = vmatprep.subr.mxu0 0.0
    %4440 = vmatpush2.msra.mxu0 0.0
    %4441 = vmatprep.subr.mxu0 0.0
    %4442 = vmatpush2.msra.mxu0 0.0
    %4443 = vmatprep.mubr.f32.mxu0 0.0
    %4444 = vmatmul.mubr.f32.gmra.mxu0 %v4374
    %v4445 = vpop.f32.mrf.mxu0
    %v4446 = vadd.f32 %v4371, %v4445
    %v4447 = vpop.f32.mrf.mxu0
    %4448 = vmatprep.mubr.f32.mxu0 0.0
    %4449 = vmatmul.mubr.f32.gmra.mxu0 %v4377
    %v4450 = vpop.f32.mrf.mxu0
    %v4451 = vadd.f32 %v4371, %v4450
    %v4452 = vpop.f32.mrf.mxu0
    %4453 = vdwg.mxu0
    %vm4454 = vcmp.gt.f32.partialorder %v4446, 0.0
    %vm4455 = vcmp.gt.f32.partialorder %v4451, 0.0
    %v4456 = vmul.f32 %v4446, 0.1
    %v4457 = vmul.f32 %v4451, 0.1
    %v4458 = vsel %vm4454, %v4446, %v4456
    %v4459 = vsel %vm4455, %v4451, %v4457
    %v4460 = vld [vmem:[#allocation16] sm:$0xff]
    %v4461 = vld [vmem:[#allocation16 + $0x8] sm:$0xff]
    %v4462 = vld [vmem:[#allocation16 + $0x10] sm:$0xff]
    %v4463 = vld [vmem:[#allocation16 + $0x18] sm:$0xff]
    %v4464 = vld [vmem:[%s18] sm:$0x1]
    %v4466 = vlaneseq
    %v4467 = vshrl.u32 %v4466, 7
    %v4468 = vsub.s32 0, %v4467
    %v4469 = vrot.slane %v4464, %v4468
    %v4472 = vsel %vm247, %v4458, 0
    %v4475 = vsel %vm247, %v4459, 0
    %4477 = vmatprep.subr.mxu0 0.0
    %4478 = vmatpush1.msra.mxu0 0.0
    %4479 = vmatprep.subr.mxu0 0.0
    %4480 = vmatpush1.msra.mxu0 0.0
    %4481 = vmatprep.subr.mxu0 0.0
    %4482 = vmatpush1.msra.mxu0 0.0
    %4483 = vmatprep.subr.mxu0 0.0
    %4484 = vmatpush1.msra.mxu0 0.0
    %4485 = vmatprep.subr.mxu0 0.0
    %4486 = vmatpush1.msra.mxu0 0.0
    %4487 = vmatprep.subr.mxu0 0.0
    %4488 = vmatpush1.msra.mxu0 0.0
    %4489 = vmatprep.subr.mxu0 0.0
    %4490 = vmatpush1.msra.mxu0 0.0
    %4491 = vmatprep.subr.mxu0 0.0
    %4492 = vmatpush1.msra.mxu0 0.0
    %4493 = vmatprep.subr.mxu0 0.0
    %4494 = vmatpush1.msra.mxu0 0.0
    %4495 = vmatprep.subr.mxu0 0.0
    %4496 = vmatpush1.msra.mxu0 0.0
    %4497 = vmatprep.subr.mxu0 0.0
    %4498 = vmatpush1.msra.mxu0 0.0
    %4499 = vmatprep.subr.mxu0 0.0
    %4500 = vmatpush1.msra.mxu0 0.0
    %4501 = vmatprep.subr.mxu0 0.0
    %4502 = vmatpush1.msra.mxu0 %v4463
    %4503 = vmatprep.subr.mxu0 0.0
    %4504 = vmatpush1.msra.mxu0 %v4462
    %4505 = vmatprep.subr.mxu0 0.0
    %4506 = vmatpush1.msra.mxu0 %v4461
    %4507 = vmatprep.subr.mxu0 0.0
    %4508 = vmatpush1.msra.mxu0 %v4460
    %4509 = vmatprep.subr.mxu0 0.0
    %4510 = vmatpush2.msra.mxu0 0.0
    %4511 = vmatprep.subr.mxu0 0.0
    %4512 = vmatpush2.msra.mxu0 0.0
    %4513 = vmatprep.subr.mxu0 0.0
    %4514 = vmatpush2.msra.mxu0 0.0
    %4515 = vmatprep.subr.mxu0 0.0
    %4516 = vmatpush2.msra.mxu0 0.0
    %4517 = vmatprep.subr.mxu0 0.0
    %4518 = vmatpush2.msra.mxu0 0.0
    %4519 = vmatprep.subr.mxu0 0.0
    %4520 = vmatpush2.msra.mxu0 0.0
    %4521 = vmatprep.subr.mxu0 0.0
    %4522 = vmatpush2.msra.mxu0 0.0
    %4523 = vmatprep.subr.mxu0 0.0
    %4524 = vmatpush2.msra.mxu0 0.0
    %4525 = vmatprep.subr.mxu0 0.0
    %4526 = vmatpush2.msra.mxu0 0.0
    %4527 = vmatprep.subr.mxu0 0.0
    %4528 = vmatpush2.msra.mxu0 0.0
    %4529 = vmatprep.subr.mxu0 0.0
    %4530 = vmatpush2.msra.mxu0 0.0
    %4531 = vmatprep.subr.mxu0 0.0
    %4532 = vmatpush2.msra.mxu0 0.0
    %4533 = vmatprep.subr.mxu0 0.0
    %4534 = vmatpush2.msra.mxu0 0.0
    %4535 = vmatprep.subr.mxu0 0.0
    %4536 = vmatpush2.msra.mxu0 0.0
    %4537 = vmatprep.subr.mxu0 0.0
    %4538 = vmatpush2.msra.mxu0 0.0
    %4539 = vmatprep.subr.mxu0 0.0
    %4540 = vmatpush2.msra.mxu0 0.0
    %4541 = vmatprep.mubr.f32.mxu0 0.0
    %4542 = vmatmul.mubr.f32.gmra.mxu0 %v4472
    %v4543 = vpop.f32.mrf.mxu0
    %v4544 = vadd.f32 %v4469, %v4543
    %v4545 = vpop.f32.mrf.mxu0
    %4546 = vmatprep.mubr.f32.mxu0 0.0
    %4547 = vmatmul.mubr.f32.gmra.mxu0 %v4475
    %v4548 = vpop.f32.mrf.mxu0
    %v4549 = vadd.f32 %v4469, %v4548
    %v4550 = vpop.f32.mrf.mxu0
    %4551 = vdwg.mxu0
    %4552 = vmax.xlane.f32.xlu0 %v4544
    %v4553 = vpop.xlane.xlu0 %4552
    %4554 = vmax.xlane.f32.xlu0 %v4549
    %v4555 = vpop.xlane.xlu0 %4554
    %v4556 = vsub.f32 %v4544, %v4553
    %v4557 = vsub.f32 %v4549, %v4555
    %v4558 = vmul.f32 %v4556, 1.442695
    %v4559 = vpow.pop %v4558
    %v4560 = vmul.f32 %v4557, 1.442695
    %v4561 = vpow.pop %v4560
    %4562 = vadd.xlane.f32.xlu0 %v4559
    %v4563 = vpop.xlane.xlu0 %4562
    %4564 = vadd.xlane.f32.xlu0 %v4561
    %v4565 = vpop.xlane.xlu0 %4564
    %v4566 = vlog2.pop %v4563
    %v4567 = vmul.f32 %v4566, 0.6931472
    %v4568 = vlog2.pop %v4565
    %v4569 = vmul.f32 %v4568, 0.6931472
    %v4570 = vsub.f32 %v4556, %v4567
    %v4571 = vsub.f32 %v4557, %v4569
    %v4572 = vsel %vm247, %v4360, 0.0
    %v4573 = vsel %vm247, %v4361, 0.0
    %4574 = vst [vmem:[#allocation17] sm:$0xff] %v4572
    %4575 = vst [vmem:[#allocation17 + $0x8] sm:$0xff] %v4573
    %4576 = vst [vmem:[#allocation18] sm:$0xff] %v4570
    %4577 = vst [vmem:[#allocation18 + $0x8] sm:$0xff] %v4571
    // Predicated region
    $region114: #{tpu_custom_call.1} parent=1 // pred_check
      _
    $region115: #{tpu_custom_call.1} parent=1 // pred_check_branch
      %4579 = sbr.rel (0) target = $region117
    $region116: #{tpu_custom_call.1} parent=1 // pred_region
      %s4581 = ssub.s32 256, 256
      %4582 = vsyncadd [#allocation4], %s4581
      %s4583 = sshll.u32 [#allocation17], 4
      %s4584 = int_to_ptr.vmem [resolvable:$true] %s4583
      %4589 = dma.vmem_to_hbm [thread:$0]  %s4584, 256, %s19, [#allocation4], 128, 128, 8
    $region117: #{tpu_custom_call.1} parent=1 // pred_fallthru
      _
    // Predicated region
    $region118: #{tpu_custom_call.1} parent=1 // pred_check
      _
    $region119: #{tpu_custom_call.1} parent=1 // pred_check_branch
      %4591 = sbr.rel (0) target = $region121
    $region120: #{tpu_custom_call.1} parent=1 // pred_region
      %s4593 = ssub.s32 256, 256
      %4594 = vsyncadd [#allocation19], %s4593
      %s4595 = sshll.u32 [#allocation18], 4
      %s4596 = int_to_ptr.vmem [resolvable:$true] %s4595
      %4601 = dma.vmem_to_hbm [thread:$0]  %s4596, 256, %s20, [#allocation19], 128, 128, 8
    $region121: #{tpu_custom_call.1} parent=1 // pred_fallthru
      _
    // Predicated region
    $region122: #{tpu_custom_call.1} parent=1 // pred_check
      _
    $region123: #{tpu_custom_call.1} parent=1 // pred_check_branch
      %4603 = sbr.rel (0) target = $region125
    $region124: #{tpu_custom_call.1} parent=1 // pred_region
      %4604 = dma.done [#allocation4], 256
    $region125: #{tpu_custom_call.1} parent=1 // pred_fallthru
      _
    // Predicated region
    $region126: #{tpu_custom_call.1} parent=1 // pred_check
      _
    $region127: #{tpu_custom_call.1} parent=1 // pred_check_branch
      %4606 = sbr.rel (0) target = $region129
    $region128: #{tpu_custom_call.1} parent=1 // pred_region
      %4607 = dma.done [#allocation19], 256
    $region129: #{tpu_custom_call.1} parent=1 // pred_fallthru
      _
    %4608 = vsyncpa [#allocation3], 1
    %4609 = vsyncpa [#allocation6], 1
    %4610 = vsyncpa [#allocation9], 1
    %4611 = vsyncpa [#allocation12], 1
    %4612 = vsyncpa [#allocation15], 1
    %4613 = vsyncpa [#allocation4], 1
    %4614 = vsyncpa [#allocation19], 1

</llo_original>
